<compile_context>
chip_gen: v5e
topology: v5e:2x2
jax: 0.10.0
libtpu: 0.0.40
codegen_flags: <defaults>
</compile_context>

<pallas_src>
import functools

import jax
import jax.numpy as jnp
from jax.experimental import pallas as pl
from jax.experimental.pallas import tpu as pltpu


HIDDEN = 400  # fixed by the Qnet definition (nn.Linear(_, 400) x 5)


# ---- index maps (top-level functions: no late-binding lambda pitfalls) ------
def _tile_map(i):
    return (i, 0)


def _resident_map(i):          # constant -> block stays VMEM-resident
    return (0, 0)


def _round_up(x, m):
    return ((x + m - 1) // m) * m


# ---- kernel ------------------------------------------------------------------
def qnet_kernel(x_ref,
                w1_ref, b1_ref,
                w2_ref, b2_ref,
                w3_ref, b3_ref,
                w4_ref, b4_ref,
                w5_ref, b5_ref,
                wo_ref, bo_ref,
                o_ref):
    """One batch tile of the full Qnet forward pass (weights VMEM-resident)."""
    h = x_ref[...].astype(jnp.bfloat16)   # (TB, state_dim)

    def hidden_layer(h_bf16, w_ref, b_ref):
        # bf16 x bf16 -> f32 accumulate on the MXU; bias + ReLU in f32 (VPU);
        # store the live intermediate back in bf16 (half the VMEM traffic).
        acc = jnp.dot(h_bf16, w_ref[...], preferred_element_type=jnp.float32)
        return jnp.maximum(acc + b_ref[...], 0.0).astype(jnp.bfloat16)

    h = hidden_layer(h, w1_ref, b1_ref)
    h = hidden_layer(h, w2_ref, b2_ref)
    h = hidden_layer(h, w3_ref, b3_ref)
    h = hidden_layer(h, w4_ref, b4_ref)
    h = hidden_layer(h, w5_ref, b5_ref)

    z = jnp.dot(h, wo_ref[...], preferred_element_type=jnp.float32) + bo_ref[...]
    # sigmoid head: clamp the exponent so exp never produces inf, exp on the
    # EUP, approximate reciprocal (vrcp) on the EUP instead of a VPU divide.
    ez = jnp.exp(jnp.minimum(-z, 80.0))
    o_ref[...] = pl.reciprocal(1.0 + ez, approx=True)


# ---- wrapper -----------------------------------------------------------------
def prepare_params(params):
    """One-time conversion: bf16 (in,out) weights, f32 (1,out) biases.

    Do this once at init — per-call casting would move more HBM bytes than the
    whole forward pass at RL batch sizes.
    """
    prepared = []
    for (w, b) in params:
        prepared.append((jnp.asarray(w, dtype=jnp.bfloat16),
                         jnp.asarray(b, dtype=jnp.float32).reshape(1, -1)))
    return prepared


@functools.partial(jax.jit, static_argnames=("batch_tile",))
def qnet_forward(x, prepared_params, *, batch_tile=1024):
    """Run Qnet forward.

    x:               (B, state_dim) float array.
    prepared_params: output of prepare_params() — bf16 (in,out) weights and
                     f32 (1,out) biases, already on device.
    """
    B, state_dim = x.shape
    action_dim = prepared_params[-1][0].shape[1]

    # ---- batch tiling -----------------------------------------------------
    if B <= 8:
        tb = B                                    # single tile == full array
    else:
        # >= 2 tiles whenever possible so v7x's two TensorCores both get work;
        # tiles stay multiples of 8 (sublane) and capped at batch_tile.
        tb = min(_round_up(batch_tile, 8), _round_up(pl.cdiv(B, 2), 8))
    b_pad = _round_up(B, tb)

    x = x.astype(jnp.float32)
    if b_pad != B:
        x = jnp.pad(x, ((0, b_pad - B), (0, 0)))
    grid = (b_pad // tb,)

    # ---- assemble args / specs ---------------------------------------------
    flat_args = [x]
    in_specs = [pl.BlockSpec((tb, state_dim), _tile_map)]
    weight_bytes = 0
    for (w, b) in prepared_params:
        flat_args += [w, b]
        # Constant index_map -> stays VMEM-resident across batch tiles; single
        # buffered since it is never re-fetched (no wasted second buffer).
        in_specs += [
            pl.BlockSpec(w.shape, _resident_map, pipeline_mode=pl.Buffered(1)),
            pl.BlockSpec(b.shape, _resident_map, pipeline_mode=pl.Buffered(1)),
        ]
        weight_bytes += w.size * w.dtype.itemsize + b.size * b.dtype.itemsize

    out_spec = pl.BlockSpec((tb, action_dim), _tile_map)

    flops = 2 * b_pad * (state_dim * HIDDEN
                         + 4 * HIDDEN * HIDDEN
                         + HIDDEN * action_dim)
    cost = pl.CostEstimate(
        flops=flops,
        transcendentals=2 * b_pad * action_dim,          # exp + vrcp per output
        bytes_accessed=weight_bytes + x.size * 4 + b_pad * action_dim * 4,
    )

    out = pl.pallas_call(
        qnet_kernel,
        out_shape=jax.ShapeDtypeStruct((b_pad, action_dim), jnp.float32),
        grid=grid,
        in_specs=in_specs,
        out_specs=out_spec,
        compiler_params=pltpu.CompilerParams(
            # Batch tiles are independent -> shard across TensorCores on v7x.
            dimension_semantics=("parallel",),
        ),
        cost_estimate=cost,
    )(*flat_args)
    return out[:B]


# ---- init & reference ---------------------------------------------------------
def init_params(key, state_dim, action_dim):
    """Deterministic synthetic init matching Qnet's layer shapes (f32)."""
    dims = [(state_dim, HIDDEN)] + [(HIDDEN, HIDDEN)] * 4 + [(HIDDEN, action_dim)]
    params = []
    for (din, dout) in dims:
        key, kw, kb = jax.random.split(key, 3)
        bound = 1.0 / jnp.sqrt(din)   # mimic nn.Linear default uniform bound
        w = jax.random.uniform(kw, (din, dout), jnp.float32, -bound, bound)
        b = jax.random.uniform(kb, (dout,), jnp.float32, -bound, bound)
        params.append((w, b))
    return params


def qnet_reference(x, params):
    """Pure-JAX reference with the same numerics (bf16 matmul inputs, f32 acc)."""
    h = x.astype(jnp.float32)
    for (w, b) in params[:-1]:
        acc = jnp.dot(h.astype(jnp.bfloat16), w.astype(jnp.bfloat16),
                      preferred_element_type=jnp.float32)
        h = jnp.maximum(acc + b, 0.0)
    w, b = params[-1]
    z = jnp.dot(h.astype(jnp.bfloat16), w.astype(jnp.bfloat16),
                preferred_element_type=jnp.float32) + b
    return jax.nn.sigmoid(z)


# TODO(synk): Qnet.sample_action (epsilon-greedy + min-phase-time gating) is
# host-side Python control flow, not part of the tensor forward pass; it is
# intentionally left out of the kernel.

if __name__ == "__main__":
    key = jax.random.PRNGKey(0)
    state_dim, action_dim, batch = 8, 2, 2

    kx, kp = jax.random.split(key)
    x = jax.random.normal(kx, (batch, state_dim), dtype=jnp.float32)
    raw_params = init_params(kp, state_dim, action_dim)
    params = prepare_params(raw_params)   # one-time bf16/f32 conversion

    # Small-batch path (single tile, grid of 1).
    out = jax.block_until_ready(qnet_forward(x, params))
    ref = qnet_reference(x, raw_params)
    assert out.shape == (batch, action_dim)
    assert jnp.allclose(out, ref, atol=2e-3, rtol=2e-3), (out, ref)

    # Multi-tile path: exercises batch grid + padding + resident weights +
    # >=2-tile split for v7x megacore.
    batch2 = 20
    x2 = jax.random.normal(jax.random.PRNGKey(1), (batch2, state_dim),
                           dtype=jnp.float32)
    out2 = jax.block_until_ready(qnet_forward(x2, params, batch_tile=8))
    ref2 = qnet_reference(x2, raw_params)
    assert out2.shape == (batch2, action_dim)
    assert jnp.allclose(out2, ref2, atol=2e-3, rtol=2e-3), (out2, ref2)

    print("KERNEL_OK")
</pallas_src>

<mosaic_0001>
module attributes {stable_mosaic.version = 11 : i64} {
  func.func @qnet_kernel(%arg0: i32, %arg1: memref<2x8xf32, #tpu.memory_space<vmem>>, %arg2: memref<8x400xbf16, #tpu.memory_space<vmem>>, %arg3: memref<1x400xf32, #tpu.memory_space<vmem>>, %arg4: memref<400x400xbf16, #tpu.memory_space<vmem>>, %arg5: memref<1x400xf32, #tpu.memory_space<vmem>>, %arg6: memref<400x400xbf16, #tpu.memory_space<vmem>>, %arg7: memref<1x400xf32, #tpu.memory_space<vmem>>, %arg8: memref<400x400xbf16, #tpu.memory_space<vmem>>, %arg9: memref<1x400xf32, #tpu.memory_space<vmem>>, %arg10: memref<400x400xbf16, #tpu.memory_space<vmem>>, %arg11: memref<1x400xf32, #tpu.memory_space<vmem>>, %arg12: memref<400x2xbf16, #tpu.memory_space<vmem>>, %arg13: memref<1x2xf32, #tpu.memory_space<vmem>>, %arg14: memref<2x2xf32, #tpu.memory_space<vmem>>) attributes {dimension_semantics = [#tpu.dimension_semantics<parallel>], iteration_bounds = array<i64: 1>, scalar_prefetch = 0 : i64, scratch_operands = 0 : i64, tpu.core_type = #tpu.core_type<tc>, window_params = [{transform_indices = @transform_0, window_bounds = array<i64: 2, 8>}, {pipeline_mode = #tpu.pipeline_mode<synchronous>, transform_indices = @transform_1, window_bounds = array<i64: 8, 400>}, {pipeline_mode = #tpu.pipeline_mode<synchronous>, transform_indices = @transform_2, window_bounds = array<i64: 1, 400>}, {pipeline_mode = #tpu.pipeline_mode<synchronous>, transform_indices = @transform_3, window_bounds = array<i64: 400, 400>}, {pipeline_mode = #tpu.pipeline_mode<synchronous>, transform_indices = @transform_4, window_bounds = array<i64: 1, 400>}, {pipeline_mode = #tpu.pipeline_mode<synchronous>, transform_indices = @transform_5, window_bounds = array<i64: 400, 400>}, {pipeline_mode = #tpu.pipeline_mode<synchronous>, transform_indices = @transform_6, window_bounds = array<i64: 1, 400>}, {pipeline_mode = #tpu.pipeline_mode<synchronous>, transform_indices = @transform_7, window_bounds = array<i64: 400, 400>}, {pipeline_mode = #tpu.pipeline_mode<synchronous>, transform_indices = @transform_8, window_bounds = array<i64: 1, 400>}, {pipeline_mode = #tpu.pipeline_mode<synchronous>, transform_indices = @transform_9, window_bounds = array<i64: 400, 400>}, {pipeline_mode = #tpu.pipeline_mode<synchronous>, transform_indices = @transform_10, window_bounds = array<i64: 1, 400>}, {pipeline_mode = #tpu.pipeline_mode<synchronous>, transform_indices = @transform_11, window_bounds = array<i64: 400, 2>}, {pipeline_mode = #tpu.pipeline_mode<synchronous>, transform_indices = @transform_12, window_bounds = array<i64: 1, 2>}, {transform_indices = @transform_13, window_bounds = array<i64: 2, 2>}]} {
    %c0 = arith.constant 0 : index
    %c0_0 = arith.constant 0 : index
    %0 = vector.load %arg1[%c0, %c0_0] : memref<2x8xf32, #tpu.memory_space<vmem>>, vector<2x8xf32>
    %1 = arith.truncf %0 : vector<2x8xf32> to vector<2x8xbf16>
    %c0_1 = arith.constant 0 : index
    %c0_2 = arith.constant 0 : index
    %2 = vector.load %arg2[%c0_1, %c0_2] : memref<8x400xbf16, #tpu.memory_space<vmem>>, vector<8x400xbf16>
    %cst = arith.constant dense<0.000000e+00> : vector<2x400xf32>
    %3 = tpu.matmul %1, %2, %cst {dimension_numbers = #tpu.dot_dimension_numbers<[1], [0], [0], [1], [0, 0, 1, 1], [], []>} : vector<2x8xbf16>, vector<8x400xbf16>, vector<2x400xf32> -> vector<2x400xf32>
    %c0_3 = arith.constant 0 : index
    %c0_4 = arith.constant 0 : index
    %4 = vector.load %arg3[%c0_3, %c0_4] : memref<1x400xf32, #tpu.memory_space<vmem>>, vector<1x400xf32>
    %5 = vector.broadcast %4 : vector<1x400xf32> to vector<2x400xf32>
    %6 = arith.addf %3, %5 : vector<2x400xf32>
    %cst_5 = arith.constant 0.000000e+00 : f32
    %7 = vector.broadcast %cst_5 : f32 to vector<2x400xf32>
    %8 = arith.maximumf %6, %7 : vector<2x400xf32>
    %9 = arith.truncf %8 : vector<2x400xf32> to vector<2x400xbf16>
    %c0_6 = arith.constant 0 : index
    %c0_7 = arith.constant 0 : index
    %10 = vector.load %arg4[%c0_6, %c0_7] : memref<400x400xbf16, #tpu.memory_space<vmem>>, vector<400x400xbf16>
    %cst_8 = arith.constant dense<0.000000e+00> : vector<2x400xf32>
    %11 = tpu.matmul %9, %10, %cst_8 {dimension_numbers = #tpu.dot_dimension_numbers<[1], [0], [0], [1], [0, 0, 1, 1], [], []>} : vector<2x400xbf16>, vector<400x400xbf16>, vector<2x400xf32> -> vector<2x400xf32>
    %c0_9 = arith.constant 0 : index
    %c0_10 = arith.constant 0 : index
    %12 = vector.load %arg5[%c0_9, %c0_10] : memref<1x400xf32, #tpu.memory_space<vmem>>, vector<1x400xf32>
    %13 = vector.broadcast %12 : vector<1x400xf32> to vector<2x400xf32>
    %14 = arith.addf %11, %13 : vector<2x400xf32>
    %cst_11 = arith.constant 0.000000e+00 : f32
    %15 = vector.broadcast %cst_11 : f32 to vector<2x400xf32>
    %16 = arith.maximumf %14, %15 : vector<2x400xf32>
    %17 = arith.truncf %16 : vector<2x400xf32> to vector<2x400xbf16>
    %c0_12 = arith.constant 0 : index
    %c0_13 = arith.constant 0 : index
    %18 = vector.load %arg6[%c0_12, %c0_13] : memref<400x400xbf16, #tpu.memory_space<vmem>>, vector<400x400xbf16>
    %cst_14 = arith.constant dense<0.000000e+00> : vector<2x400xf32>
    %19 = tpu.matmul %17, %18, %cst_14 {dimension_numbers = #tpu.dot_dimension_numbers<[1], [0], [0], [1], [0, 0, 1, 1], [], []>} : vector<2x400xbf16>, vector<400x400xbf16>, vector<2x400xf32> -> vector<2x400xf32>
    %c0_15 = arith.constant 0 : index
    %c0_16 = arith.constant 0 : index
    %20 = vector.load %arg7[%c0_15, %c0_16] : memref<1x400xf32, #tpu.memory_space<vmem>>, vector<1x400xf32>
    %21 = vector.broadcast %20 : vector<1x400xf32> to vector<2x400xf32>
    %22 = arith.addf %19, %21 : vector<2x400xf32>
    %cst_17 = arith.constant 0.000000e+00 : f32
    %23 = vector.broadcast %cst_17 : f32 to vector<2x400xf32>
    %24 = arith.maximumf %22, %23 : vector<2x400xf32>
    %25 = arith.truncf %24 : vector<2x400xf32> to vector<2x400xbf16>
    %c0_18 = arith.constant 0 : index
    %c0_19 = arith.constant 0 : index
    %26 = vector.load %arg8[%c0_18, %c0_19] : memref<400x400xbf16, #tpu.memory_space<vmem>>, vector<400x400xbf16>
    %cst_20 = arith.constant dense<0.000000e+00> : vector<2x400xf32>
    %27 = tpu.matmul %25, %26, %cst_20 {dimension_numbers = #tpu.dot_dimension_numbers<[1], [0], [0], [1], [0, 0, 1, 1], [], []>} : vector<2x400xbf16>, vector<400x400xbf16>, vector<2x400xf32> -> vector<2x400xf32>
    %c0_21 = arith.constant 0 : index
    %c0_22 = arith.constant 0 : index
    %28 = vector.load %arg9[%c0_21, %c0_22] : memref<1x400xf32, #tpu.memory_space<vmem>>, vector<1x400xf32>
    %29 = vector.broadcast %28 : vector<1x400xf32> to vector<2x400xf32>
    %30 = arith.addf %27, %29 : vector<2x400xf32>
    %cst_23 = arith.constant 0.000000e+00 : f32
    %31 = vector.broadcast %cst_23 : f32 to vector<2x400xf32>
    %32 = arith.maximumf %30, %31 : vector<2x400xf32>
    %33 = arith.truncf %32 : vector<2x400xf32> to vector<2x400xbf16>
    %c0_24 = arith.constant 0 : index
    %c0_25 = arith.constant 0 : index
    %34 = vector.load %arg10[%c0_24, %c0_25] : memref<400x400xbf16, #tpu.memory_space<vmem>>, vector<400x400xbf16>
    %cst_26 = arith.constant dense<0.000000e+00> : vector<2x400xf32>
    %35 = tpu.matmul %33, %34, %cst_26 {dimension_numbers = #tpu.dot_dimension_numbers<[1], [0], [0], [1], [0, 0, 1, 1], [], []>} : vector<2x400xbf16>, vector<400x400xbf16>, vector<2x400xf32> -> vector<2x400xf32>
    %c0_27 = arith.constant 0 : index
    %c0_28 = arith.constant 0 : index
    %36 = vector.load %arg11[%c0_27, %c0_28] : memref<1x400xf32, #tpu.memory_space<vmem>>, vector<1x400xf32>
    %37 = vector.broadcast %36 : vector<1x400xf32> to vector<2x400xf32>
    %38 = arith.addf %35, %37 : vector<2x400xf32>
    %cst_29 = arith.constant 0.000000e+00 : f32
    %39 = vector.broadcast %cst_29 : f32 to vector<2x400xf32>
    %40 = arith.maximumf %38, %39 : vector<2x400xf32>
    %41 = arith.truncf %40 : vector<2x400xf32> to vector<2x400xbf16>
    %c0_30 = arith.constant 0 : index
    %c0_31 = arith.constant 0 : index
    %42 = vector.load %arg12[%c0_30, %c0_31] : memref<400x2xbf16, #tpu.memory_space<vmem>>, vector<400x2xbf16>
    %cst_32 = arith.constant dense<0.000000e+00> : vector<2x2xf32>
    %43 = tpu.matmul %41, %42, %cst_32 {dimension_numbers = #tpu.dot_dimension_numbers<[1], [0], [0], [1], [0, 0, 1, 1], [], []>} : vector<2x400xbf16>, vector<400x2xbf16>, vector<2x2xf32> -> vector<2x2xf32>
    %c0_33 = arith.constant 0 : index
    %c0_34 = arith.constant 0 : index
    %44 = vector.load %arg13[%c0_33, %c0_34] : memref<1x2xf32, #tpu.memory_space<vmem>>, vector<1x2xf32>
    %45 = vector.broadcast %44 : vector<1x2xf32> to vector<2x2xf32>
    %46 = arith.addf %43, %45 : vector<2x2xf32>
    %cst_35 = arith.constant 0.000000e+00 : f32
    %47 = vector.broadcast %cst_35 : f32 to vector<2x2xf32>
    %48 = arith.subf %47, %46 : vector<2x2xf32>
    %cst_36 = arith.constant 8.000000e+01 : f32
    %49 = vector.broadcast %cst_36 : f32 to vector<2x2xf32>
    %50 = arith.minimumf %48, %49 : vector<2x2xf32>
    %51 = math.exp %50 : vector<2x2xf32>
    %cst_37 = arith.constant 1.000000e+00 : f32
    %52 = vector.broadcast %cst_37 : f32 to vector<2x2xf32>
    %53 = arith.addf %52, %51 : vector<2x2xf32>
    %54 = tpu.reciprocal %53 {approx = true} : vector<2x2xf32> -> vector<2x2xf32>
    %c0_38 = arith.constant 0 : index
    %c0_39 = arith.constant 0 : index
    %55 = vector.load %arg14[%c0_38, %c0_39] : memref<2x2xf32, #tpu.memory_space<vmem>>, vector<2x2xf32>
    tpu.vector_store %arg14[%c0_38, %c0_39], %54 {strides = array<i32>} : memref<2x2xf32, #tpu.memory_space<vmem>>, vector<2x2xf32>,
    return
  }
  func.func @transform_0(%arg0: i32) -> (i32, i32) {
    %c0_i32 = arith.constant 0 : i32
    %c0_i32_0 = arith.constant 0 : i32
    return %arg0, %c0_i32 : i32, i32
  }
  func.func @transform_1(%arg0: i32) -> (i32, i32) {
    %c0_i32 = arith.constant 0 : i32
    %c0_i32_0 = arith.constant 0 : i32
    %c0_i32_1 = arith.constant 0 : i32
    return %c0_i32, %c0_i32_0 : i32, i32
  }
  func.func @transform_2(%arg0: i32) -> (i32, i32) {
    %c0_i32 = arith.constant 0 : i32
    %c0_i32_0 = arith.constant 0 : i32
    %c0_i32_1 = arith.constant 0 : i32
    return %c0_i32, %c0_i32_0 : i32, i32
  }
  func.func @transform_3(%arg0: i32) -> (i32, i32) {
    %c0_i32 = arith.constant 0 : i32
    %c0_i32_0 = arith.constant 0 : i32
    %c0_i32_1 = arith.constant 0 : i32
    return %c0_i32, %c0_i32_0 : i32, i32
  }
  func.func @transform_4(%arg0: i32) -> (i32, i32) {
    %c0_i32 = arith.constant 0 : i32
    %c0_i32_0 = arith.constant 0 : i32
    %c0_i32_1 = arith.constant 0 : i32
    return %c0_i32, %c0_i32_0 : i32, i32
  }
  func.func @transform_5(%arg0: i32) -> (i32, i32) {
    %c0_i32 = arith.constant 0 : i32
    %c0_i32_0 = arith.constant 0 : i32
    %c0_i32_1 = arith.constant 0 : i32
    return %c0_i32, %c0_i32_0 : i32, i32
  }
  func.func @transform_6(%arg0: i32) -> (i32, i32) {
    %c0_i32 = arith.constant 0 : i32
    %c0_i32_0 = arith.constant 0 : i32
    %c0_i32_1 = arith.constant 0 : i32
    return %c0_i32, %c0_i32_0 : i32, i32
  }
  func.func @transform_7(%arg0: i32) -> (i32, i32) {
    %c0_i32 = arith.constant 0 : i32
    %c0_i32_0 = arith.constant 0 : i32
    %c0_i32_1 = arith.constant 0 : i32
    return %c0_i32, %c0_i32_0 : i32, i32
  }
  func.func @transform_8(%arg0: i32) -> (i32, i32) {
    %c0_i32 = arith.constant 0 : i32
    %c0_i32_0 = arith.constant 0 : i32
    %c0_i32_1 = arith.constant 0 : i32
    return %c0_i32, %c0_i32_0 : i32, i32
  }
  func.func @transform_9(%arg0: i32) -> (i32, i32) {
    %c0_i32 = arith.constant 0 : i32
    %c0_i32_0 = arith.constant 0 : i32
    %c0_i32_1 = arith.constant 0 : i32
    return %c0_i32, %c0_i32_0 : i32, i32
  }
  func.func @transform_10(%arg0: i32) -> (i32, i32) {
    %c0_i32 = arith.constant 0 : i32
    %c0_i32_0 = arith.constant 0 : i32
    %c0_i32_1 = arith.constant 0 : i32
    return %c0_i32, %c0_i32_0 : i32, i32
  }
  func.func @transform_11(%arg0: i32) -> (i32, i32) {
    %c0_i32 = arith.constant 0 : i32
    %c0_i32_0 = arith.constant 0 : i32
    %c0_i32_1 = arith.constant 0 : i32
    return %c0_i32, %c0_i32_0 : i32, i32
  }
  func.func @transform_12(%arg0: i32) -> (i32, i32) {
    %c0_i32 = arith.constant 0 : i32
    %c0_i32_0 = arith.constant 0 : i32
    %c0_i32_1 = arith.constant 0 : i32
    return %c0_i32, %c0_i32_0 : i32, i32
  }
  func.func @transform_13(%arg0: i32) -> (i32, i32) {
    %c0_i32 = arith.constant 0 : i32
    %c0_i32_0 = arith.constant 0 : i32
    return %arg0, %c0_i32 : i32, i32
  }
}

</mosaic_0001>

<llo_original>
// kernel: qnet_forward.1
$region0: #{qnet_forward.1}
  #allocation0 [shape = 'u32[]', space=smem, size = 0x4, offset = 0x4, fixed_abs, tag = 'smem constant byte address 0x4 - core index']
  #allocation1 [shape = 'u32[72,128]{1,0:T(1,128)}', space=vmem, size = 0x9000, scoped, tag = 'internal scratch']
  %s0 = inlined_call_operand.vmem [shape: f32[2,8], index: 0, kind: input, shape index: {}]
  %s1 = inlined_call_operand.vmem [shape: bf16[8,400], index: 1, kind: input, shape index: {}]
  %s2 = inlined_call_operand.vmem [shape: f32[1,400], index: 2, kind: input, shape index: {}]
  %s3 = inlined_call_operand.hbm [shape: bf16[400,400], index: 3, kind: input, shape index: {}]
  %s4 = inlined_call_operand.vmem [shape: f32[1,400], index: 4, kind: input, shape index: {}]
  %s5 = inlined_call_operand.hbm [shape: bf16[400,400], index: 5, kind: input, shape index: {}]
  %s6 = inlined_call_operand.vmem [shape: f32[1,400], index: 6, kind: input, shape index: {}]
  %s7 = inlined_call_operand.hbm [shape: bf16[400,400], index: 7, kind: input, shape index: {}]
  %s8 = inlined_call_operand.vmem [shape: f32[1,400], index: 8, kind: input, shape index: {}]
  %s9 = inlined_call_operand.hbm [shape: bf16[400,400], index: 9, kind: input, shape index: {}]
  %s10 = inlined_call_operand.vmem [shape: f32[1,400], index: 10, kind: input, shape index: {}]
  %s11 = inlined_call_operand.vmem [shape: bf16[400,2], index: 11, kind: input, shape index: {}]
  %s12 = inlined_call_operand.vmem [shape: f32[1,2], index: 12, kind: input, shape index: {}]
  %s13 = inlined_call_operand.hbm [shape: f32[2,2], index: 13, kind: output, shape index: {}]
  %s14 = sld [smem:[#allocation0]]
  $region78: #{qnet_forward.1} parent=0
    _
  %s16 = ssub.s32 1, %s14
  %s17 = scalar_select 0, %s16, %s14
  $region1: #{qnet_forward.1} parent=0
    #allocation2 [shape = 'u8[409600]{0}', space=vmem, size = 0x64000, scoped, tag = 'input window, operand 3, single buffered']
    #allocation3 [shape = 's32[1]{0}', space=sflag, size = 0x4, scoped, tag = 'scoped memory for qnet_forward.1']
    #allocation4 [shape = 's32[1]{0}', space=sflag, size = 0x4, scoped, tag = 'scoped memory for qnet_forward.1']
    #allocation5 [shape = 'u8[409600]{0}', space=vmem, size = 0x64000, scoped, tag = 'input window, operand 5, single buffered']
    #allocation6 [shape = 's32[1]{0}', space=sflag, size = 0x4, scoped, tag = 'scoped memory for qnet_forward.1']
    #allocation7 [shape = 'u8[409600]{0}', space=vmem, size = 0x64000, scoped, tag = 'input window, operand 7, single buffered']
    #allocation8 [shape = 'u8[409600]{0}', space=vmem, size = 0x64000, scoped, tag = 'input window, operand 9, single buffered']
    #allocation9 [shape = 's32[1]{0}', space=sflag, size = 0x4, scoped, tag = 'scoped memory for qnet_forward.1']
    #allocation10 [shape = 'u8[1024]{0}', space=vmem, size = 0x400, scoped, tag = 'output window, operand 0, single buffered']
    %18 = vsyncpa [#allocation3], 0
    %19 = vsyncpa [#allocation6], 0
    %20 = vsyncpa [#allocation9], 0
    %21 = vsyncpa [#allocation4], 0
    // Predicated region
    $region2: #{qnet_forward.1} parent=1 // pred_check
      _
    $region3: #{qnet_forward.1} parent=1 // pred_check_branch
      %23 = sbr.rel (0) target = $region5
    $region4: #{qnet_forward.1} parent=1 // pred_region
      _
    $region5: #{qnet_forward.1} parent=1 // pred_fallthru
      _
    // Predicated region
    $region6: #{qnet_forward.1} parent=1 // pred_check
      _
    $region7: #{qnet_forward.1} parent=1 // pred_check_branch
      %25 = sbr.rel (0) target = $region9
    $region8: #{qnet_forward.1} parent=1 // pred_region
      _
    $region9: #{qnet_forward.1} parent=1 // pred_fallthru
      _
    // Predicated region
    $region10: #{qnet_forward.1} parent=1 // pred_check
      _
    $region11: #{qnet_forward.1} parent=1 // pred_check_branch
      %27 = sbr.rel (0) target = $region13
    $region12: #{qnet_forward.1} parent=1 // pred_region
      _
    $region13: #{qnet_forward.1} parent=1 // pred_fallthru
      _
    // Predicated region
    $region14: #{qnet_forward.1} parent=1 // pred_check
      _
    $region15: #{qnet_forward.1} parent=1 // pred_check_branch
      %29 = sbr.rel (0) target = $region17
    $region16: #{qnet_forward.1} parent=1 // pred_region
      %31 = vsyncadd [#allocation3], 0
      %s32 = sshll.u32 %s3, 4
      %s33 = int_to_ptr.hbm [resolvable:$true] %s32
      %s34 = sshll.u32 [#allocation2], 4
      %s35 = int_to_ptr.vmem [resolvable:$true] %s34
      %40 = dma.hbm_to_vmem [thread:$0]  %s33, 12800, %s35, [#allocation3], 256, 256, 16
    $region17: #{qnet_forward.1} parent=1 // pred_fallthru
      _
    // Predicated region
    $region18: #{qnet_forward.1} parent=1 // pred_check
      _
    $region19: #{qnet_forward.1} parent=1 // pred_check_branch
      %42 = sbr.rel (0) target = $region21
    $region20: #{qnet_forward.1} parent=1 // pred_region
      _
    $region21: #{qnet_forward.1} parent=1 // pred_fallthru
      _
    // Predicated region
    $region22: #{qnet_forward.1} parent=1 // pred_check
      _
    $region23: #{qnet_forward.1} parent=1 // pred_check_branch
      %44 = sbr.rel (0) target = $region25
    $region24: #{qnet_forward.1} parent=1 // pred_region
      %46 = vsyncadd [#allocation6], 0
      %s47 = sshll.u32 %s5, 4
      %s48 = int_to_ptr.hbm [resolvable:$true] %s47
      %s49 = sshll.u32 [#allocation5], 4
      %s50 = int_to_ptr.vmem [resolvable:$true] %s49
      %55 = dma.hbm_to_vmem [thread:$0]  %s48, 12800, %s50, [#allocation6], 256, 256, 16
    $region25: #{qnet_forward.1} parent=1 // pred_fallthru
      _
    // Predicated region
    $region26: #{qnet_forward.1} parent=1 // pred_check
      _
    $region27: #{qnet_forward.1} parent=1 // pred_check_branch
      %57 = sbr.rel (0) target = $region29
    $region28: #{qnet_forward.1} parent=1 // pred_region
      _
    $region29: #{qnet_forward.1} parent=1 // pred_fallthru
      _
    // Predicated region
    $region30: #{qnet_forward.1} parent=1 // pred_check
      _
    $region31: #{qnet_forward.1} parent=1 // pred_check_branch
      %59 = sbr.rel (0) target = $region33
    $region32: #{qnet_forward.1} parent=1 // pred_region
      %61 = vsyncadd [#allocation6], 0
      %s62 = sshll.u32 %s7, 4
      %s63 = int_to_ptr.hbm [resolvable:$true] %s62
      %s64 = sshll.u32 [#allocation7], 4
      %s65 = int_to_ptr.vmem [resolvable:$true] %s64
      %70 = dma.hbm_to_vmem [thread:$0]  %s63, 12800, %s65, [#allocation6], 256, 256, 16
    $region33: #{qnet_forward.1} parent=1 // pred_fallthru
      _
    // Predicated region
    $region34: #{qnet_forward.1} parent=1 // pred_check
      _
    $region35: #{qnet_forward.1} parent=1 // pred_check_branch
      %72 = sbr.rel (0) target = $region37
    $region36: #{qnet_forward.1} parent=1 // pred_region
      _
    $region37: #{qnet_forward.1} parent=1 // pred_fallthru
      _
    // Predicated region
    $region38: #{qnet_forward.1} parent=1 // pred_check
      _
    $region39: #{qnet_forward.1} parent=1 // pred_check_branch
      %74 = sbr.rel (0) target = $region41
    $region40: #{qnet_forward.1} parent=1 // pred_region
      %76 = vsyncadd [#allocation9], 0
      %s77 = sshll.u32 %s9, 4
      %s78 = int_to_ptr.hbm [resolvable:$true] %s77
      %s79 = sshll.u32 [#allocation8], 4
      %s80 = int_to_ptr.vmem [resolvable:$true] %s79
      %85 = dma.hbm_to_vmem [thread:$0]  %s78, 12800, %s80, [#allocation9], 256, 256, 16
    $region41: #{qnet_forward.1} parent=1 // pred_fallthru
      _
    // Predicated region
    $region42: #{qnet_forward.1} parent=1 // pred_check
      _
    $region43: #{qnet_forward.1} parent=1 // pred_check_branch
      %87 = sbr.rel (0) target = $region45
    $region44: #{qnet_forward.1} parent=1 // pred_region
      _
    $region45: #{qnet_forward.1} parent=1 // pred_fallthru
      _
    // Predicated region
    $region46: #{qnet_forward.1} parent=1 // pred_check
      _
    $region47: #{qnet_forward.1} parent=1 // pred_check_branch
      %89 = sbr.rel (0) target = $region49
    $region48: #{qnet_forward.1} parent=1 // pred_region
      _
    $region49: #{qnet_forward.1} parent=1 // pred_fallthru
      _
    // Predicated region
    $region50: #{qnet_forward.1} parent=1 // pred_check
      _
    $region51: #{qnet_forward.1} parent=1 // pred_check_branch
      %91 = sbr.rel (0) target = $region53
    $region52: #{qnet_forward.1} parent=1 // pred_region
      _
    $region53: #{qnet_forward.1} parent=1 // pred_fallthru
      _
    // Predicated region
    $region54: #{qnet_forward.1} parent=1 // pred_check
      _
    $region55: #{qnet_forward.1} parent=1 // pred_check_branch
      %93 = sbr.rel (0) target = $region57
    $region56: #{qnet_forward.1} parent=1 // pred_region
      %95 = dma.done [#allocation3], 12800
    $region57: #{qnet_forward.1} parent=1 // pred_fallthru
      _
    // Predicated region
    $region58: #{qnet_forward.1} parent=1 // pred_check
      _
    $region59: #{qnet_forward.1} parent=1 // pred_check_branch
      %97 = sbr.rel (0) target = $region61
    $region60: #{qnet_forward.1} parent=1 // pred_region
      %99 = dma.done [#allocation6], 12800
    $region61: #{qnet_forward.1} parent=1 // pred_fallthru
      _
    // Predicated region
    $region62: #{qnet_forward.1} parent=1 // pred_check
      _
    $region63: #{qnet_forward.1} parent=1 // pred_check_branch
      %101 = sbr.rel (0) target = $region65
    $region64: #{qnet_forward.1} parent=1 // pred_region
      %103 = dma.done [#allocation6], 12800
    $region65: #{qnet_forward.1} parent=1 // pred_fallthru
      _
    // Predicated region
    $region66: #{qnet_forward.1} parent=1 // pred_check
      _
    $region67: #{qnet_forward.1} parent=1 // pred_check_branch
      %105 = sbr.rel (0) target = $region69
    $region68: #{qnet_forward.1} parent=1 // pred_region
      %107 = dma.done [#allocation9], 12800
    $region69: #{qnet_forward.1} parent=1 // pred_fallthru
      _
    %v109 = vld [vmem:[%s0] sm:$0x3]
    %v110 = vpack.c.bf16 %v109, %v109
    %v111 = vld [vmem:[%s1] sm:$0xff]
    %v112 = vld [vmem:[%s1 + $0x8] sm:$0xff]
    %v113 = vld [vmem:[%s2] sm:$0xf]
    %v115 = vperm.slane %v113, 0
    %v116 = vperm.slane %v113, 1
    %v117 = vperm.slane %v113, 2
    %v118 = vperm.slane %v113, 3
    %v125 = vunpack.c.l.b16 %v111
    %v126 = vunpack.c.h.b16 %v111
    %v127 = vunpack.c.l.b16 %v112
    %v128 = vunpack.c.h.b16 %v112
    %v129 = vpack.c.b16 %v125, %v125
    %v130 = vpack.c.b16 %v126, %v126
    %v131 = vpack.c.b16 %v127, %v127
    %v132 = vpack.c.b16 %v128, %v128
    %vm133 = vcmask 64512
    %v135 = vsel %vm133, %v110, 0
    %vm137 = vcmask 1043456
    %v139 = vsel %vm137, %v129, 0
    %v142 = vsel %vm137, %v130, 0
    %v145 = vsel %vm137, %v131, 0
    %v148 = vsel %vm137, %v132, 0
    %150 = vmatpush.bf16.msra.mxu0 0
    %151 = vmatpush.bf16.msra.mxu0 0
    %152 = vmatpush.bf16.msra.mxu0 0
    %153 = vmatpush.bf16.msra.mxu0 0
    %154 = vmatpush.bf16.msra.mxu0 0
    %155 = vmatpush.bf16.msra.mxu0 0
    %156 = vmatpush.bf16.msra.mxu0 0
    %157 = vmatpush.bf16.msra.mxu0 %v139
    %158 = vmatmul.bf16.gmra.mxu0 %v135
    %v159 = vpop.f32.mrf.mxu0
    %v160 = vadd.f32 %v115, %v159
    %v161 = vpop.f32.mrf.mxu0
    %162 = vdwg.mxu0
    %163 = vmatpush.bf16.msra.mxu0 0
    %164 = vmatpush.bf16.msra.mxu0 0
    %165 = vmatpush.bf16.msra.mxu0 0
    %166 = vmatpush.bf16.msra.mxu0 0
    %167 = vmatpush.bf16.msra.mxu0 0
    %168 = vmatpush.bf16.msra.mxu0 0
    %169 = vmatpush.bf16.msra.mxu0 0
    %170 = vmatpush.bf16.msra.mxu0 %v142
    %171 = vmatmul.bf16.gmra.mxu0 %v135
    %v172 = vpop.f32.mrf.mxu0
    %v173 = vadd.f32 %v116, %v172
    %v174 = vpop.f32.mrf.mxu0
    %175 = vdwg.mxu0
    %176 = vmatpush.bf16.msra.mxu0 0
    %177 = vmatpush.bf16.msra.mxu0 0
    %178 = vmatpush.bf16.msra.mxu0 0
    %179 = vmatpush.bf16.msra.mxu0 0
    %180 = vmatpush.bf16.msra.mxu0 0
    %181 = vmatpush.bf16.msra.mxu0 0
    %182 = vmatpush.bf16.msra.mxu0 0
    %183 = vmatpush.bf16.msra.mxu0 %v145
    %184 = vmatmul.bf16.gmra.mxu0 %v135
    %v185 = vpop.f32.mrf.mxu0
    %v186 = vadd.f32 %v117, %v185
    %v187 = vpop.f32.mrf.mxu0
    %188 = vdwg.mxu0
    %189 = vmatpush.bf16.msra.mxu0 0
    %190 = vmatpush.bf16.msra.mxu0 0
    %191 = vmatpush.bf16.msra.mxu0 0
    %192 = vmatpush.bf16.msra.mxu0 0
    %193 = vmatpush.bf16.msra.mxu0 0
    %194 = vmatpush.bf16.msra.mxu0 0
    %195 = vmatpush.bf16.msra.mxu0 0
    %196 = vmatpush.bf16.msra.mxu0 %v148
    %197 = vmatmul.bf16.gmra.mxu0 %v135
    %v198 = vpop.f32.mrf.mxu0
    %v199 = vadd.f32 %v118, %v198
    %v200 = vpop.f32.mrf.mxu0
    %201 = vdwg.mxu0
    %v202 = vmax.f32 %v160, 0.0
    %v203 = vmax.f32 %v173, 0.0
    %v204 = vmax.f32 %v186, 0.0
    %v205 = vmax.f32 %v199, 0.0
    %v206 = vpack.c.bf16 %v202, %v202
    %v207 = vpack.c.bf16 %v203, %v203
    %v208 = vpack.c.bf16 %v204, %v204
    %v209 = vpack.c.bf16 %v205, %v205
    %v210 = vld [vmem:[#allocation2] sm:$0xff]
    %v211 = vld [vmem:[#allocation2 + $0x8] sm:$0xff]
    %v212 = vld [vmem:[#allocation2 + $0x10] sm:$0xff]
    %v213 = vld [vmem:[#allocation2 + $0x18] sm:$0xff]
    %v214 = vld [vmem:[#allocation2 + $0x20] sm:$0xff]
    %v215 = vld [vmem:[#allocation2 + $0x28] sm:$0xff]
    %v216 = vld [vmem:[#allocation2 + $0x30] sm:$0xff]
    %v217 = vld [vmem:[#allocation2 + $0x38] sm:$0xff]
    %v218 = vld [vmem:[#allocation2 + $0x40] sm:$0xff]
    %v219 = vld [vmem:[#allocation2 + $0x48] sm:$0xff]
    %v220 = vld [vmem:[#allocation2 + $0x50] sm:$0xff]
    %v221 = vld [vmem:[#allocation2 + $0x58] sm:$0xff]
    %v222 = vld [vmem:[#allocation2 + $0x60] sm:$0xff]
    %v223 = vld [vmem:[#allocation2 + $0x68] sm:$0xff]
    %v224 = vld [vmem:[#allocation2 + $0x70] sm:$0xff]
    %v225 = vld [vmem:[#allocation2 + $0x78] sm:$0xff]
    %v226 = vld [vmem:[#allocation2 + $0x80] sm:$0xff]
    %v227 = vld [vmem:[#allocation2 + $0x88] sm:$0xff]
    %v228 = vld [vmem:[#allocation2 + $0x90] sm:$0xff]
    %v229 = vld [vmem:[#allocation2 + $0x98] sm:$0xff]
    %v230 = vld [vmem:[#allocation2 + $0xa0] sm:$0xff]
    %v231 = vld [vmem:[#allocation2 + $0xa8] sm:$0xff]
    %v232 = vld [vmem:[#allocation2 + $0xb0] sm:$0xff]
    %v233 = vld [vmem:[#allocation2 + $0xb8] sm:$0xff]
    %v234 = vld [vmem:[#allocation2 + $0xc0] sm:$0xff]
    %v235 = vld [vmem:[#allocation2 + $0xc8] sm:$0xff]
    %v236 = vld [vmem:[#allocation2 + $0xd0] sm:$0xff]
    %v237 = vld [vmem:[#allocation2 + $0xd8] sm:$0xff]
    %v238 = vld [vmem:[#allocation2 + $0xe0] sm:$0xff]
    %v239 = vld [vmem:[#allocation2 + $0xe8] sm:$0xff]
    %v240 = vld [vmem:[#allocation2 + $0xf0] sm:$0xff]
    %v241 = vld [vmem:[#allocation2 + $0xf8] sm:$0xff]
    %v242 = vld [vmem:[#allocation2 + $0x100] sm:$0xff]
    %v243 = vld [vmem:[#allocation2 + $0x108] sm:$0xff]
    %v244 = vld [vmem:[#allocation2 + $0x110] sm:$0xff]
    %v245 = vld [vmem:[#allocation2 + $0x118] sm:$0xff]
    %v246 = vld [vmem:[#allocation2 + $0x120] sm:$0xff]
    %v247 = vld [vmem:[#allocation2 + $0x128] sm:$0xff]
    %v248 = vld [vmem:[#allocation2 + $0x130] sm:$0xff]
    %v249 = vld [vmem:[#allocation2 + $0x138] sm:$0xff]
    %v250 = vld [vmem:[#allocation2 + $0x140] sm:$0xff]
    %v251 = vld [vmem:[#allocation2 + $0x148] sm:$0xff]
    %v252 = vld [vmem:[#allocation2 + $0x150] sm:$0xff]
    %v253 = vld [vmem:[#allocation2 + $0x158] sm:$0xff]
    %v254 = vld [vmem:[#allocation2 + $0x160] sm:$0xff]
    %v255 = vld [vmem:[#allocation2 + $0x168] sm:$0xff]
    %v256 = vld [vmem:[#allocation2 + $0x170] sm:$0xff]
    %v257 = vld [vmem:[#allocation2 + $0x178] sm:$0xff]
    %v258 = vld [vmem:[#allocation2 + $0x180] sm:$0xff]
    %v259 = vld [vmem:[#allocation2 + $0x188] sm:$0xff]
    %v260 = vld [vmem:[#allocation2 + $0x190] sm:$0xff]
    %v261 = vld [vmem:[#allocation2 + $0x198] sm:$0xff]
    %v262 = vld [vmem:[#allocation2 + $0x1a0] sm:$0xff]
    %v263 = vld [vmem:[#allocation2 + $0x1a8] sm:$0xff]
    %v264 = vld [vmem:[#allocation2 + $0x1b0] sm:$0xff]
    %v265 = vld [vmem:[#allocation2 + $0x1b8] sm:$0xff]
    %v266 = vld [vmem:[#allocation2 + $0x1c0] sm:$0xff]
    %v267 = vld [vmem:[#allocation2 + $0x1c8] sm:$0xff]
    %v268 = vld [vmem:[#allocation2 + $0x1d0] sm:$0xff]
    %v269 = vld [vmem:[#allocation2 + $0x1d8] sm:$0xff]
    %v270 = vld [vmem:[#allocation2 + $0x1e0] sm:$0xff]
    %v271 = vld [vmem:[#allocation2 + $0x1e8] sm:$0xff]
    %v272 = vld [vmem:[#allocation2 + $0x1f0] sm:$0xff]
    %v273 = vld [vmem:[#allocation2 + $0x1f8] sm:$0xff]
    %v274 = vld [vmem:[#allocation2 + $0x200] sm:$0xff]
    %v275 = vld [vmem:[#allocation2 + $0x208] sm:$0xff]
    %v276 = vld [vmem:[#allocation2 + $0x210] sm:$0xff]
    %v277 = vld [vmem:[#allocation2 + $0x218] sm:$0xff]
    %v278 = vld [vmem:[#allocation2 + $0x220] sm:$0xff]
    %v279 = vld [vmem:[#allocation2 + $0x228] sm:$0xff]
    %v280 = vld [vmem:[#allocation2 + $0x230] sm:$0xff]
    %v281 = vld [vmem:[#allocation2 + $0x238] sm:$0xff]
    %v282 = vld [vmem:[#allocation2 + $0x240] sm:$0xff]
    %v283 = vld [vmem:[#allocation2 + $0x248] sm:$0xff]
    %v284 = vld [vmem:[#allocation2 + $0x250] sm:$0xff]
    %v285 = vld [vmem:[#allocation2 + $0x258] sm:$0xff]
    %v286 = vld [vmem:[#allocation2 + $0x260] sm:$0xff]
    %v287 = vld [vmem:[#allocation2 + $0x268] sm:$0xff]
    %v288 = vld [vmem:[#allocation2 + $0x270] sm:$0xff]
    %v289 = vld [vmem:[#allocation2 + $0x278] sm:$0xff]
    %v290 = vld [vmem:[#allocation2 + $0x280] sm:$0xff]
    %v291 = vld [vmem:[#allocation2 + $0x288] sm:$0xff]
    %v292 = vld [vmem:[#allocation2 + $0x290] sm:$0xff]
    %v293 = vld [vmem:[#allocation2 + $0x298] sm:$0xff]
    %v294 = vld [vmem:[#allocation2 + $0x2a0] sm:$0xff]
    %v295 = vld [vmem:[#allocation2 + $0x2a8] sm:$0xff]
    %v296 = vld [vmem:[#allocation2 + $0x2b0] sm:$0xff]
    %v297 = vld [vmem:[#allocation2 + $0x2b8] sm:$0xff]
    %v298 = vld [vmem:[#allocation2 + $0x2c0] sm:$0xff]
    %v299 = vld [vmem:[#allocation2 + $0x2c8] sm:$0xff]
    %v300 = vld [vmem:[#allocation2 + $0x2d0] sm:$0xff]
    %v301 = vld [vmem:[#allocation2 + $0x2d8] sm:$0xff]
    %v302 = vld [vmem:[#allocation2 + $0x2e0] sm:$0xff]
    %v303 = vld [vmem:[#allocation2 + $0x2e8] sm:$0xff]
    %v304 = vld [vmem:[#allocation2 + $0x2f0] sm:$0xff]
    %v305 = vld [vmem:[#allocation2 + $0x2f8] sm:$0xff]
    %v306 = vld [vmem:[#allocation2 + $0x300] sm:$0xff]
    %v307 = vld [vmem:[#allocation2 + $0x308] sm:$0xff]
    %v308 = vld [vmem:[#allocation2 + $0x310] sm:$0xff]
    %v309 = vld [vmem:[#allocation2 + $0x318] sm:$0xff]
    %v310 = vld [vmem:[%s4] sm:$0xf]
    %v312 = vperm.slane %v310, 0
    %v313 = vperm.slane %v310, 1
    %v314 = vperm.slane %v310, 2
    %v315 = vperm.slane %v310, 3
    %v420 = vunpack.c.l.b16 %v210
    %v421 = vunpack.c.h.b16 %v210
    %v422 = vunpack.c.l.b16 %v211
    %v423 = vunpack.c.h.b16 %v211
    %v424 = vunpack.c.l.b16 %v212
    %v425 = vunpack.c.h.b16 %v212
    %v426 = vunpack.c.l.b16 %v213
    %v427 = vunpack.c.h.b16 %v213
    %v428 = vunpack.c.l.b16 %v214
    %v429 = vunpack.c.h.b16 %v214
    %v430 = vunpack.c.l.b16 %v215
    %v431 = vunpack.c.h.b16 %v215
    %v432 = vunpack.c.l.b16 %v216
    %v433 = vunpack.c.h.b16 %v216
    %v434 = vunpack.c.l.b16 %v217
    %v435 = vunpack.c.h.b16 %v217
    %v436 = vunpack.c.l.b16 %v218
    %v437 = vunpack.c.h.b16 %v218
    %v438 = vunpack.c.l.b16 %v219
    %v439 = vunpack.c.h.b16 %v219
    %v440 = vunpack.c.l.b16 %v220
    %v441 = vunpack.c.h.b16 %v220
    %v442 = vunpack.c.l.b16 %v221
    %v443 = vunpack.c.h.b16 %v221
    %v444 = vunpack.c.l.b16 %v222
    %v445 = vunpack.c.h.b16 %v222
    %v446 = vunpack.c.l.b16 %v223
    %v447 = vunpack.c.h.b16 %v223
    %v448 = vunpack.c.l.b16 %v224
    %v449 = vunpack.c.h.b16 %v224
    %v450 = vunpack.c.l.b16 %v225
    %v451 = vunpack.c.h.b16 %v225
    %v452 = vunpack.c.l.b16 %v226
    %v453 = vunpack.c.h.b16 %v226
    %v454 = vunpack.c.l.b16 %v227
    %v455 = vunpack.c.h.b16 %v227
    %v456 = vunpack.c.l.b16 %v228
    %v457 = vunpack.c.h.b16 %v228
    %v458 = vunpack.c.l.b16 %v229
    %v459 = vunpack.c.h.b16 %v229
    %v460 = vunpack.c.l.b16 %v230
    %v461 = vunpack.c.h.b16 %v230
    %v462 = vunpack.c.l.b16 %v231
    %v463 = vunpack.c.h.b16 %v231
    %v464 = vunpack.c.l.b16 %v232
    %v465 = vunpack.c.h.b16 %v232
    %v466 = vunpack.c.l.b16 %v233
    %v467 = vunpack.c.h.b16 %v233
    %v468 = vunpack.c.l.b16 %v234
    %v469 = vunpack.c.h.b16 %v234
    %v470 = vunpack.c.l.b16 %v235
    %v471 = vunpack.c.h.b16 %v235
    %v472 = vunpack.c.l.b16 %v236
    %v473 = vunpack.c.h.b16 %v236
    %v474 = vunpack.c.l.b16 %v237
    %v475 = vunpack.c.h.b16 %v237
    %v476 = vunpack.c.l.b16 %v238
    %v477 = vunpack.c.h.b16 %v238
    %v478 = vunpack.c.l.b16 %v239
    %v479 = vunpack.c.h.b16 %v239
    %v480 = vunpack.c.l.b16 %v240
    %v481 = vunpack.c.h.b16 %v240
    %v482 = vunpack.c.l.b16 %v241
    %v483 = vunpack.c.h.b16 %v241
    %v484 = vunpack.c.l.b16 %v242
    %v485 = vunpack.c.h.b16 %v242
    %v486 = vunpack.c.l.b16 %v243
    %v487 = vunpack.c.h.b16 %v243
    %v488 = vunpack.c.l.b16 %v244
    %v489 = vunpack.c.h.b16 %v244
    %v490 = vunpack.c.l.b16 %v245
    %v491 = vunpack.c.h.b16 %v245
    %v492 = vunpack.c.l.b16 %v246
    %v493 = vunpack.c.h.b16 %v246
    %v494 = vunpack.c.l.b16 %v247
    %v495 = vunpack.c.h.b16 %v247
    %v496 = vunpack.c.l.b16 %v248
    %v497 = vunpack.c.h.b16 %v248
    %v498 = vunpack.c.l.b16 %v249
    %v499 = vunpack.c.h.b16 %v249
    %v500 = vunpack.c.l.b16 %v250
    %v501 = vunpack.c.h.b16 %v250
    %v502 = vunpack.c.l.b16 %v251
    %v503 = vunpack.c.h.b16 %v251
    %v504 = vunpack.c.l.b16 %v252
    %v505 = vunpack.c.h.b16 %v252
    %v506 = vunpack.c.l.b16 %v253
    %v507 = vunpack.c.h.b16 %v253
    %v508 = vunpack.c.l.b16 %v254
    %v509 = vunpack.c.h.b16 %v254
    %v510 = vunpack.c.l.b16 %v255
    %v511 = vunpack.c.h.b16 %v255
    %v512 = vunpack.c.l.b16 %v256
    %v513 = vunpack.c.h.b16 %v256
    %v514 = vunpack.c.l.b16 %v257
    %v515 = vunpack.c.h.b16 %v257
    %v516 = vunpack.c.l.b16 %v258
    %v517 = vunpack.c.h.b16 %v258
    %v518 = vunpack.c.l.b16 %v259
    %v519 = vunpack.c.h.b16 %v259
    %v520 = vunpack.c.l.b16 %v260
    %v521 = vunpack.c.h.b16 %v260
    %v522 = vunpack.c.l.b16 %v261
    %v523 = vunpack.c.h.b16 %v261
    %v524 = vunpack.c.l.b16 %v262
    %v525 = vunpack.c.h.b16 %v262
    %v526 = vunpack.c.l.b16 %v263
    %v527 = vunpack.c.h.b16 %v263
    %v528 = vunpack.c.l.b16 %v264
    %v529 = vunpack.c.h.b16 %v264
    %v530 = vunpack.c.l.b16 %v265
    %v531 = vunpack.c.h.b16 %v265
    %v532 = vunpack.c.l.b16 %v266
    %v533 = vunpack.c.h.b16 %v266
    %v534 = vunpack.c.l.b16 %v267
    %v535 = vunpack.c.h.b16 %v267
    %v536 = vunpack.c.l.b16 %v268
    %v537 = vunpack.c.h.b16 %v268
    %v538 = vunpack.c.l.b16 %v269
    %v539 = vunpack.c.h.b16 %v269
    %v540 = vunpack.c.l.b16 %v270
    %v541 = vunpack.c.h.b16 %v270
    %v542 = vunpack.c.l.b16 %v271
    %v543 = vunpack.c.h.b16 %v271
    %v544 = vunpack.c.l.b16 %v272
    %v545 = vunpack.c.h.b16 %v272
    %v546 = vunpack.c.l.b16 %v273
    %v547 = vunpack.c.h.b16 %v273
    %v548 = vunpack.c.l.b16 %v274
    %v549 = vunpack.c.h.b16 %v274
    %v550 = vunpack.c.l.b16 %v275
    %v551 = vunpack.c.h.b16 %v275
    %v552 = vunpack.c.l.b16 %v276
    %v553 = vunpack.c.h.b16 %v276
    %v554 = vunpack.c.l.b16 %v277
    %v555 = vunpack.c.h.b16 %v277
    %v556 = vunpack.c.l.b16 %v278
    %v557 = vunpack.c.h.b16 %v278
    %v558 = vunpack.c.l.b16 %v279
    %v559 = vunpack.c.h.b16 %v279
    %v560 = vunpack.c.l.b16 %v280
    %v561 = vunpack.c.h.b16 %v280
    %v562 = vunpack.c.l.b16 %v281
    %v563 = vunpack.c.h.b16 %v281
    %v564 = vunpack.c.l.b16 %v282
    %v565 = vunpack.c.h.b16 %v282
    %v566 = vunpack.c.l.b16 %v283
    %v567 = vunpack.c.h.b16 %v283
    %v568 = vunpack.c.l.b16 %v284
    %v569 = vunpack.c.h.b16 %v284
    %v570 = vunpack.c.l.b16 %v285
    %v571 = vunpack.c.h.b16 %v285
    %v572 = vunpack.c.l.b16 %v286
    %v573 = vunpack.c.h.b16 %v286
    %v574 = vunpack.c.l.b16 %v287
    %v575 = vunpack.c.h.b16 %v287
    %v576 = vunpack.c.l.b16 %v288
    %v577 = vunpack.c.h.b16 %v288
    %v578 = vunpack.c.l.b16 %v289
    %v579 = vunpack.c.h.b16 %v289
    %v580 = vunpack.c.l.b16 %v290
    %v581 = vunpack.c.h.b16 %v290
    %v582 = vunpack.c.l.b16 %v291
    %v583 = vunpack.c.h.b16 %v291
    %v584 = vunpack.c.l.b16 %v292
    %v585 = vunpack.c.h.b16 %v292
    %v586 = vunpack.c.l.b16 %v293
    %v587 = vunpack.c.h.b16 %v293
    %v588 = vunpack.c.l.b16 %v294
    %v589 = vunpack.c.h.b16 %v294
    %v590 = vunpack.c.l.b16 %v295
    %v591 = vunpack.c.h.b16 %v295
    %v592 = vunpack.c.l.b16 %v296
    %v593 = vunpack.c.h.b16 %v296
    %v594 = vunpack.c.l.b16 %v297
    %v595 = vunpack.c.h.b16 %v297
    %v596 = vunpack.c.l.b16 %v298
    %v597 = vunpack.c.h.b16 %v298
    %v598 = vunpack.c.l.b16 %v299
    %v599 = vunpack.c.h.b16 %v299
    %v600 = vunpack.c.l.b16 %v300
    %v601 = vunpack.c.h.b16 %v300
    %v602 = vunpack.c.l.b16 %v301
    %v603 = vunpack.c.h.b16 %v301
    %v604 = vunpack.c.l.b16 %v302
    %v605 = vunpack.c.h.b16 %v302
    %v606 = vunpack.c.l.b16 %v303
    %v607 = vunpack.c.h.b16 %v303
    %v608 = vunpack.c.l.b16 %v304
    %v609 = vunpack.c.h.b16 %v304
    %v610 = vunpack.c.l.b16 %v305
    %v611 = vunpack.c.h.b16 %v305
    %v612 = vunpack.c.l.b16 %v306
    %v613 = vunpack.c.h.b16 %v306
    %v614 = vunpack.c.l.b16 %v307
    %v615 = vunpack.c.h.b16 %v307
    %v616 = vunpack.c.l.b16 %v308
    %v617 = vunpack.c.h.b16 %v308
    %v618 = vunpack.c.l.b16 %v309
    %v619 = vunpack.c.h.b16 %v309
    %v620 = vpack.c.b16 %v424, %v420
    %v621 = vpack.c.b16 %v425, %v421
    %v622 = vpack.c.b16 %v426, %v422
    %v623 = vpack.c.b16 %v427, %v423
    %v624 = vpack.c.b16 %v432, %v428
    %v625 = vpack.c.b16 %v433, %v429
    %v626 = vpack.c.b16 %v434, %v430
    %v627 = vpack.c.b16 %v435, %v431
    %v628 = vpack.c.b16 %v440, %v436
    %v629 = vpack.c.b16 %v441, %v437
    %v630 = vpack.c.b16 %v442, %v438
    %v631 = vpack.c.b16 %v443, %v439
    %v632 = vpack.c.b16 %v448, %v444
    %v633 = vpack.c.b16 %v449, %v445
    %v634 = vpack.c.b16 %v450, %v446
    %v635 = vpack.c.b16 %v451, %v447
    %v636 = vpack.c.b16 %v456, %v452
    %v637 = vpack.c.b16 %v457, %v453
    %v638 = vpack.c.b16 %v458, %v454
    %v639 = vpack.c.b16 %v459, %v455
    %v640 = vpack.c.b16 %v464, %v460
    %v641 = vpack.c.b16 %v465, %v461
    %v642 = vpack.c.b16 %v466, %v462
    %v643 = vpack.c.b16 %v467, %v463
    %v644 = vpack.c.b16 %v472, %v468
    %v645 = vpack.c.b16 %v473, %v469
    %v646 = vpack.c.b16 %v474, %v470
    %v647 = vpack.c.b16 %v475, %v471
    %v648 = vpack.c.b16 %v480, %v476
    %v649 = vpack.c.b16 %v481, %v477
    %v650 = vpack.c.b16 %v482, %v478
    %v651 = vpack.c.b16 %v483, %v479
    %v652 = vpack.c.b16 %v488, %v484
    %v653 = vpack.c.b16 %v489, %v485
    %v654 = vpack.c.b16 %v490, %v486
    %v655 = vpack.c.b16 %v491, %v487
    %v656 = vpack.c.b16 %v496, %v492
    %v657 = vpack.c.b16 %v497, %v493
    %v658 = vpack.c.b16 %v498, %v494
    %v659 = vpack.c.b16 %v499, %v495
    %v660 = vpack.c.b16 %v504, %v500
    %v661 = vpack.c.b16 %v505, %v501
    %v662 = vpack.c.b16 %v506, %v502
    %v663 = vpack.c.b16 %v507, %v503
    %v664 = vpack.c.b16 %v512, %v508
    %v665 = vpack.c.b16 %v513, %v509
    %v666 = vpack.c.b16 %v514, %v510
    %v667 = vpack.c.b16 %v515, %v511
    %v668 = vpack.c.b16 %v520, %v516
    %v669 = vpack.c.b16 %v521, %v517
    %v670 = vpack.c.b16 %v522, %v518
    %v671 = vpack.c.b16 %v523, %v519
    %v672 = vpack.c.b16 %v528, %v524
    %v673 = vpack.c.b16 %v529, %v525
    %v674 = vpack.c.b16 %v530, %v526
    %v675 = vpack.c.b16 %v531, %v527
    %v676 = vpack.c.b16 %v536, %v532
    %v677 = vpack.c.b16 %v537, %v533
    %v678 = vpack.c.b16 %v538, %v534
    %v679 = vpack.c.b16 %v539, %v535
    %v680 = vpack.c.b16 %v544, %v540
    %v681 = vpack.c.b16 %v545, %v541
    %v682 = vpack.c.b16 %v546, %v542
    %v683 = vpack.c.b16 %v547, %v543
    %v684 = vpack.c.b16 %v552, %v548
    %v685 = vpack.c.b16 %v553, %v549
    %v686 = vpack.c.b16 %v554, %v550
    %v687 = vpack.c.b16 %v555, %v551
    %v688 = vpack.c.b16 %v560, %v556
    %v689 = vpack.c.b16 %v561, %v557
    %v690 = vpack.c.b16 %v562, %v558
    %v691 = vpack.c.b16 %v563, %v559
    %v692 = vpack.c.b16 %v568, %v564
    %v693 = vpack.c.b16 %v569, %v565
    %v694 = vpack.c.b16 %v570, %v566
    %v695 = vpack.c.b16 %v571, %v567
    %v696 = vpack.c.b16 %v576, %v572
    %v697 = vpack.c.b16 %v577, %v573
    %v698 = vpack.c.b16 %v578, %v574
    %v699 = vpack.c.b16 %v579, %v575
    %v700 = vpack.c.b16 %v584, %v580
    %v701 = vpack.c.b16 %v585, %v581
    %v702 = vpack.c.b16 %v586, %v582
    %v703 = vpack.c.b16 %v587, %v583
    %v704 = vpack.c.b16 %v592, %v588
    %v705 = vpack.c.b16 %v593, %v589
    %v706 = vpack.c.b16 %v594, %v590
    %v707 = vpack.c.b16 %v595, %v591
    %v708 = vpack.c.b16 %v600, %v596
    %v709 = vpack.c.b16 %v601, %v597
    %v710 = vpack.c.b16 %v602, %v598
    %v711 = vpack.c.b16 %v603, %v599
    %v712 = vpack.c.b16 %v608, %v604
    %v713 = vpack.c.b16 %v609, %v605
    %v714 = vpack.c.b16 %v610, %v606
    %v715 = vpack.c.b16 %v611, %v607
    %v716 = vpack.c.b16 %v616, %v612
    %v717 = vpack.c.b16 %v617, %v613
    %v718 = vpack.c.b16 %v618, %v614
    %v719 = vpack.c.b16 %v619, %v615
    %vm820 = vcmask 130048
    %v822 = vsel %vm820, %v209, 0
    %824 = vmatpush.bf16.msra.mxu0 %v648
    %825 = vmatpush.bf16.msra.mxu0 %v644
    %826 = vmatpush.bf16.msra.mxu0 %v640
    %827 = vmatpush.bf16.msra.mxu0 %v636
    %828 = vmatpush.bf16.msra.mxu0 %v632
    %829 = vmatpush.bf16.msra.mxu0 %v628
    %830 = vmatpush.bf16.msra.mxu0 %v624
    %831 = vmatpush.bf16.msra.mxu0 %v620
    %832 = vmatmul.bf16.gmra.mxu0 %v206
    %v833 = vpop.f32.mrf.mxu0
    %v834 = vadd.f32 %v312, %v833
    %v835 = vpop.f32.mrf.mxu0
    %836 = vdwg.mxu0
    %837 = vmatpush.bf16.msra.mxu0 %v680
    %838 = vmatpush.bf16.msra.mxu0 %v676
    %839 = vmatpush.bf16.msra.mxu0 %v672
    %840 = vmatpush.bf16.msra.mxu0 %v668
    %841 = vmatpush.bf16.msra.mxu0 %v664
    %842 = vmatpush.bf16.msra.mxu0 %v660
    %843 = vmatpush.bf16.msra.mxu0 %v656
    %844 = vmatpush.bf16.msra.mxu0 %v652
    %845 = vmatmul.bf16.gmra.mxu0 %v207
    %v846 = vpop.f32.mrf.mxu0
    %v847 = vadd.f32 %v834, %v846
    %v848 = vpop.f32.mrf.mxu0
    %849 = vdwg.mxu0
    %850 = vmatpush.bf16.msra.mxu0 %v712
    %851 = vmatpush.bf16.msra.mxu0 %v708
    %852 = vmatpush.bf16.msra.mxu0 %v704
    %853 = vmatpush.bf16.msra.mxu0 %v700
    %854 = vmatpush.bf16.msra.mxu0 %v696
    %855 = vmatpush.bf16.msra.mxu0 %v692
    %856 = vmatpush.bf16.msra.mxu0 %v688
    %857 = vmatpush.bf16.msra.mxu0 %v684
    %858 = vmatmul.bf16.gmra.mxu0 %v208
    %v859 = vpop.f32.mrf.mxu0
    %v860 = vadd.f32 %v847, %v859
    %v861 = vpop.f32.mrf.mxu0
    %862 = vdwg.mxu0
    %863 = vmatpush.bf16.msra.mxu0 0
    %864 = vmatpush.bf16.msra.mxu0 0
    %865 = vmatpush.bf16.msra.mxu0 0
    %866 = vmatpush.bf16.msra.mxu0 0
    %867 = vmatpush.bf16.msra.mxu0 0
    %868 = vmatpush.bf16.msra.mxu0 0
    %869 = vmatpush.bf16.msra.mxu0 0
    %870 = vmatpush.bf16.msra.mxu0 %v716
    %871 = vmatmul.bf16.gmra.mxu0 %v822
    %v872 = vpop.f32.mrf.mxu0
    %v873 = vadd.f32 %v860, %v872
    %v874 = vpop.f32.mrf.mxu0
    %875 = vdwg.mxu0
    %876 = vmatpush.bf16.msra.mxu0 %v649
    %877 = vmatpush.bf16.msra.mxu0 %v645
    %878 = vmatpush.bf16.msra.mxu0 %v641
    %879 = vmatpush.bf16.msra.mxu0 %v637
    %880 = vmatpush.bf16.msra.mxu0 %v633
    %881 = vmatpush.bf16.msra.mxu0 %v629
    %882 = vmatpush.bf16.msra.mxu0 %v625
    %883 = vmatpush.bf16.msra.mxu0 %v621
    %884 = vmatmul.bf16.gmra.mxu0 %v206
    %v885 = vpop.f32.mrf.mxu0
    %v886 = vadd.f32 %v313, %v885
    %v887 = vpop.f32.mrf.mxu0
    %888 = vdwg.mxu0
    %889 = vmatpush.bf16.msra.mxu0 %v681
    %890 = vmatpush.bf16.msra.mxu0 %v677
    %891 = vmatpush.bf16.msra.mxu0 %v673
    %892 = vmatpush.bf16.msra.mxu0 %v669
    %893 = vmatpush.bf16.msra.mxu0 %v665
    %894 = vmatpush.bf16.msra.mxu0 %v661
    %895 = vmatpush.bf16.msra.mxu0 %v657
    %896 = vmatpush.bf16.msra.mxu0 %v653
    %897 = vmatmul.bf16.gmra.mxu0 %v207
    %v898 = vpop.f32.mrf.mxu0
    %v899 = vadd.f32 %v886, %v898
    %v900 = vpop.f32.mrf.mxu0
    %901 = vdwg.mxu0
    %902 = vmatpush.bf16.msra.mxu0 %v713
    %903 = vmatpush.bf16.msra.mxu0 %v709
    %904 = vmatpush.bf16.msra.mxu0 %v705
    %905 = vmatpush.bf16.msra.mxu0 %v701
    %906 = vmatpush.bf16.msra.mxu0 %v697
    %907 = vmatpush.bf16.msra.mxu0 %v693
    %908 = vmatpush.bf16.msra.mxu0 %v689
    %909 = vmatpush.bf16.msra.mxu0 %v685
    %910 = vmatmul.bf16.gmra.mxu0 %v208
    %v911 = vpop.f32.mrf.mxu0
    %v912 = vadd.f32 %v899, %v911
    %v913 = vpop.f32.mrf.mxu0
    %914 = vdwg.mxu0
    %915 = vmatpush.bf16.msra.mxu0 0
    %916 = vmatpush.bf16.msra.mxu0 0
    %917 = vmatpush.bf16.msra.mxu0 0
    %918 = vmatpush.bf16.msra.mxu0 0
    %919 = vmatpush.bf16.msra.mxu0 0
    %920 = vmatpush.bf16.msra.mxu0 0
    %921 = vmatpush.bf16.msra.mxu0 0
    %922 = vmatpush.bf16.msra.mxu0 %v717
    %923 = vmatmul.bf16.gmra.mxu0 %v822
    %v924 = vpop.f32.mrf.mxu0
    %v925 = vadd.f32 %v912, %v924
    %v926 = vpop.f32.mrf.mxu0
    %927 = vdwg.mxu0
    %928 = vmatpush.bf16.msra.mxu0 %v650
    %929 = vmatpush.bf16.msra.mxu0 %v646
    %930 = vmatpush.bf16.msra.mxu0 %v642
    %931 = vmatpush.bf16.msra.mxu0 %v638
    %932 = vmatpush.bf16.msra.mxu0 %v634
    %933 = vmatpush.bf16.msra.mxu0 %v630
    %934 = vmatpush.bf16.msra.mxu0 %v626
    %935 = vmatpush.bf16.msra.mxu0 %v622
    %936 = vmatmul.bf16.gmra.mxu0 %v206
    %v937 = vpop.f32.mrf.mxu0
    %v938 = vadd.f32 %v314, %v937
    %v939 = vpop.f32.mrf.mxu0
    %940 = vdwg.mxu0
    %941 = vmatpush.bf16.msra.mxu0 %v682
    %942 = vmatpush.bf16.msra.mxu0 %v678
    %943 = vmatpush.bf16.msra.mxu0 %v674
    %944 = vmatpush.bf16.msra.mxu0 %v670
    %945 = vmatpush.bf16.msra.mxu0 %v666
    %946 = vmatpush.bf16.msra.mxu0 %v662
    %947 = vmatpush.bf16.msra.mxu0 %v658
    %948 = vmatpush.bf16.msra.mxu0 %v654
    %949 = vmatmul.bf16.gmra.mxu0 %v207
    %v950 = vpop.f32.mrf.mxu0
    %v951 = vadd.f32 %v938, %v950
    %v952 = vpop.f32.mrf.mxu0
    %953 = vdwg.mxu0
    %954 = vmatpush.bf16.msra.mxu0 %v714
    %955 = vmatpush.bf16.msra.mxu0 %v710
    %956 = vmatpush.bf16.msra.mxu0 %v706
    %957 = vmatpush.bf16.msra.mxu0 %v702
    %958 = vmatpush.bf16.msra.mxu0 %v698
    %959 = vmatpush.bf16.msra.mxu0 %v694
    %960 = vmatpush.bf16.msra.mxu0 %v690
    %961 = vmatpush.bf16.msra.mxu0 %v686
    %962 = vmatmul.bf16.gmra.mxu0 %v208
    %v963 = vpop.f32.mrf.mxu0
    %v964 = vadd.f32 %v951, %v963
    %v965 = vpop.f32.mrf.mxu0
    %966 = vdwg.mxu0
    %967 = vmatpush.bf16.msra.mxu0 0
    %968 = vmatpush.bf16.msra.mxu0 0
    %969 = vmatpush.bf16.msra.mxu0 0
    %970 = vmatpush.bf16.msra.mxu0 0
    %971 = vmatpush.bf16.msra.mxu0 0
    %972 = vmatpush.bf16.msra.mxu0 0
    %973 = vmatpush.bf16.msra.mxu0 0
    %974 = vmatpush.bf16.msra.mxu0 %v718
    %975 = vmatmul.bf16.gmra.mxu0 %v822
    %v976 = vpop.f32.mrf.mxu0
    %v977 = vadd.f32 %v964, %v976
    %v978 = vpop.f32.mrf.mxu0
    %979 = vdwg.mxu0
    %980 = vmatpush.bf16.msra.mxu0 %v651
    %981 = vmatpush.bf16.msra.mxu0 %v647
    %982 = vmatpush.bf16.msra.mxu0 %v643
    %983 = vmatpush.bf16.msra.mxu0 %v639
    %984 = vmatpush.bf16.msra.mxu0 %v635
    %985 = vmatpush.bf16.msra.mxu0 %v631
    %986 = vmatpush.bf16.msra.mxu0 %v627
    %987 = vmatpush.bf16.msra.mxu0 %v623
    %988 = vmatmul.bf16.gmra.mxu0 %v206
    %v989 = vpop.f32.mrf.mxu0
    %v990 = vadd.f32 %v315, %v989
    %v991 = vpop.f32.mrf.mxu0
    %992 = vdwg.mxu0
    %993 = vmatpush.bf16.msra.mxu0 %v683
    %994 = vmatpush.bf16.msra.mxu0 %v679
    %995 = vmatpush.bf16.msra.mxu0 %v675
    %996 = vmatpush.bf16.msra.mxu0 %v671
    %997 = vmatpush.bf16.msra.mxu0 %v667
    %998 = vmatpush.bf16.msra.mxu0 %v663
    %999 = vmatpush.bf16.msra.mxu0 %v659
    %1000 = vmatpush.bf16.msra.mxu0 %v655
    %1001 = vmatmul.bf16.gmra.mxu0 %v207
    %v1002 = vpop.f32.mrf.mxu0
    %v1003 = vadd.f32 %v990, %v1002
    %v1004 = vpop.f32.mrf.mxu0
    %1005 = vdwg.mxu0
    %1006 = vmatpush.bf16.msra.mxu0 %v715
    %1007 = vmatpush.bf16.msra.mxu0 %v711
    %1008 = vmatpush.bf16.msra.mxu0 %v707
    %1009 = vmatpush.bf16.msra.mxu0 %v703
    %1010 = vmatpush.bf16.msra.mxu0 %v699
    %1011 = vmatpush.bf16.msra.mxu0 %v695
    %1012 = vmatpush.bf16.msra.mxu0 %v691
    %1013 = vmatpush.bf16.msra.mxu0 %v687
    %1014 = vmatmul.bf16.gmra.mxu0 %v208
    %v1015 = vpop.f32.mrf.mxu0
    %v1016 = vadd.f32 %v1003, %v1015
    %v1017 = vpop.f32.mrf.mxu0
    %1018 = vdwg.mxu0
    %1019 = vmatpush.bf16.msra.mxu0 0
    %1020 = vmatpush.bf16.msra.mxu0 0
    %1021 = vmatpush.bf16.msra.mxu0 0
    %1022 = vmatpush.bf16.msra.mxu0 0
    %1023 = vmatpush.bf16.msra.mxu0 0
    %1024 = vmatpush.bf16.msra.mxu0 0
    %1025 = vmatpush.bf16.msra.mxu0 0
    %1026 = vmatpush.bf16.msra.mxu0 %v719
    %1027 = vmatmul.bf16.gmra.mxu0 %v822
    %v1028 = vpop.f32.mrf.mxu0
    %v1029 = vadd.f32 %v1016, %v1028
    %v1030 = vpop.f32.mrf.mxu0
    %1031 = vdwg.mxu0
    %v1032 = vmax.f32 %v873, 0.0
    %v1033 = vmax.f32 %v925, 0.0
    %v1034 = vmax.f32 %v977, 0.0
    %v1035 = vmax.f32 %v1029, 0.0
    %v1036 = vpack.c.bf16 %v1032, %v1032
    %v1037 = vpack.c.bf16 %v1033, %v1033
    %v1038 = vpack.c.bf16 %v1034, %v1034
    %v1039 = vpack.c.bf16 %v1035, %v1035
    %v1040 = vld [vmem:[#allocation5] sm:$0xff]
    %v1041 = vld [vmem:[#allocation5 + $0x8] sm:$0xff]
    %v1042 = vld [vmem:[#allocation5 + $0x10] sm:$0xff]
    %v1043 = vld [vmem:[#allocation5 + $0x18] sm:$0xff]
    %v1044 = vld [vmem:[#allocation5 + $0x20] sm:$0xff]
    %v1045 = vld [vmem:[#allocation5 + $0x28] sm:$0xff]
    %v1046 = vld [vmem:[#allocation5 + $0x30] sm:$0xff]
    %v1047 = vld [vmem:[#allocation5 + $0x38] sm:$0xff]
    %v1048 = vld [vmem:[#allocation5 + $0x40] sm:$0xff]
    %v1049 = vld [vmem:[#allocation5 + $0x48] sm:$0xff]
    %v1050 = vld [vmem:[#allocation5 + $0x50] sm:$0xff]
    %v1051 = vld [vmem:[#allocation5 + $0x58] sm:$0xff]
    %v1052 = vld [vmem:[#allocation5 + $0x60] sm:$0xff]
    %v1053 = vld [vmem:[#allocation5 + $0x68] sm:$0xff]
    %v1054 = vld [vmem:[#allocation5 + $0x70] sm:$0xff]
    %v1055 = vld [vmem:[#allocation5 + $0x78] sm:$0xff]
    %v1056 = vld [vmem:[#allocation5 + $0x80] sm:$0xff]
    %v1057 = vld [vmem:[#allocation5 + $0x88] sm:$0xff]
    %v1058 = vld [vmem:[#allocation5 + $0x90] sm:$0xff]
    %v1059 = vld [vmem:[#allocation5 + $0x98] sm:$0xff]
    %v1060 = vld [vmem:[#allocation5 + $0xa0] sm:$0xff]
    %v1061 = vld [vmem:[#allocation5 + $0xa8] sm:$0xff]
    %v1062 = vld [vmem:[#allocation5 + $0xb0] sm:$0xff]
    %v1063 = vld [vmem:[#allocation5 + $0xb8] sm:$0xff]
    %v1064 = vld [vmem:[#allocation5 + $0xc0] sm:$0xff]
    %v1065 = vld [vmem:[#allocation5 + $0xc8] sm:$0xff]
    %v1066 = vld [vmem:[#allocation5 + $0xd0] sm:$0xff]
    %v1067 = vld [vmem:[#allocation5 + $0xd8] sm:$0xff]
    %v1068 = vld [vmem:[#allocation5 + $0xe0] sm:$0xff]
    %v1069 = vld [vmem:[#allocation5 + $0xe8] sm:$0xff]
    %v1070 = vld [vmem:[#allocation5 + $0xf0] sm:$0xff]
    %v1071 = vld [vmem:[#allocation5 + $0xf8] sm:$0xff]
    %v1072 = vld [vmem:[#allocation5 + $0x100] sm:$0xff]
    %v1073 = vld [vmem:[#allocation5 + $0x108] sm:$0xff]
    %v1074 = vld [vmem:[#allocation5 + $0x110] sm:$0xff]
    %v1075 = vld [vmem:[#allocation5 + $0x118] sm:$0xff]
    %v1076 = vld [vmem:[#allocation5 + $0x120] sm:$0xff]
    %v1077 = vld [vmem:[#allocation5 + $0x128] sm:$0xff]
    %v1078 = vld [vmem:[#allocation5 + $0x130] sm:$0xff]
    %v1079 = vld [vmem:[#allocation5 + $0x138] sm:$0xff]
    %v1080 = vld [vmem:[#allocation5 + $0x140] sm:$0xff]
    %v1081 = vld [vmem:[#allocation5 + $0x148] sm:$0xff]
    %v1082 = vld [vmem:[#allocation5 + $0x150] sm:$0xff]
    %v1083 = vld [vmem:[#allocation5 + $0x158] sm:$0xff]
    %v1084 = vld [vmem:[#allocation5 + $0x160] sm:$0xff]
    %v1085 = vld [vmem:[#allocation5 + $0x168] sm:$0xff]
    %v1086 = vld [vmem:[#allocation5 + $0x170] sm:$0xff]
    %v1087 = vld [vmem:[#allocation5 + $0x178] sm:$0xff]
    %v1088 = vld [vmem:[#allocation5 + $0x180] sm:$0xff]
    %v1089 = vld [vmem:[#allocation5 + $0x188] sm:$0xff]
    %v1090 = vld [vmem:[#allocation5 + $0x190] sm:$0xff]
    %v1091 = vld [vmem:[#allocation5 + $0x198] sm:$0xff]
    %v1092 = vld [vmem:[#allocation5 + $0x1a0] sm:$0xff]
    %v1093 = vld [vmem:[#allocation5 + $0x1a8] sm:$0xff]
    %v1094 = vld [vmem:[#allocation5 + $0x1b0] sm:$0xff]
    %v1095 = vld [vmem:[#allocation5 + $0x1b8] sm:$0xff]
    %v1096 = vld [vmem:[#allocation5 + $0x1c0] sm:$0xff]
    %v1097 = vld [vmem:[#allocation5 + $0x1c8] sm:$0xff]
    %v1098 = vld [vmem:[#allocation5 + $0x1d0] sm:$0xff]
    %v1099 = vld [vmem:[#allocation5 + $0x1d8] sm:$0xff]
    %v1100 = vld [vmem:[#allocation5 + $0x1e0] sm:$0xff]
    %v1101 = vld [vmem:[#allocation5 + $0x1e8] sm:$0xff]
    %v1102 = vld [vmem:[#allocation5 + $0x1f0] sm:$0xff]
    %v1103 = vld [vmem:[#allocation5 + $0x1f8] sm:$0xff]
    %v1104 = vld [vmem:[#allocation5 + $0x200] sm:$0xff]
    %v1105 = vld [vmem:[#allocation5 + $0x208] sm:$0xff]
    %v1106 = vld [vmem:[#allocation5 + $0x210] sm:$0xff]
    %v1107 = vld [vmem:[#allocation5 + $0x218] sm:$0xff]
    %v1108 = vld [vmem:[#allocation5 + $0x220] sm:$0xff]
    %v1109 = vld [vmem:[#allocation5 + $0x228] sm:$0xff]
    %v1110 = vld [vmem:[#allocation5 + $0x230] sm:$0xff]
    %v1111 = vld [vmem:[#allocation5 + $0x238] sm:$0xff]
    %v1112 = vld [vmem:[#allocation5 + $0x240] sm:$0xff]
    %v1113 = vld [vmem:[#allocation5 + $0x248] sm:$0xff]
    %v1114 = vld [vmem:[#allocation5 + $0x250] sm:$0xff]
    %v1115 = vld [vmem:[#allocation5 + $0x258] sm:$0xff]
    %v1116 = vld [vmem:[#allocation5 + $0x260] sm:$0xff]
    %v1117 = vld [vmem:[#allocation5 + $0x268] sm:$0xff]
    %v1118 = vld [vmem:[#allocation5 + $0x270] sm:$0xff]
    %v1119 = vld [vmem:[#allocation5 + $0x278] sm:$0xff]
    %v1120 = vld [vmem:[#allocation5 + $0x280] sm:$0xff]
    %v1121 = vld [vmem:[#allocation5 + $0x288] sm:$0xff]
    %v1122 = vld [vmem:[#allocation5 + $0x290] sm:$0xff]
    %v1123 = vld [vmem:[#allocation5 + $0x298] sm:$0xff]
    %v1124 = vld [vmem:[#allocation5 + $0x2a0] sm:$0xff]
    %v1125 = vld [vmem:[#allocation5 + $0x2a8] sm:$0xff]
    %v1126 = vld [vmem:[#allocation5 + $0x2b0] sm:$0xff]
    %v1127 = vld [vmem:[#allocation5 + $0x2b8] sm:$0xff]
    %v1128 = vld [vmem:[#allocation5 + $0x2c0] sm:$0xff]
    %v1129 = vld [vmem:[#allocation5 + $0x2c8] sm:$0xff]
    %v1130 = vld [vmem:[#allocation5 + $0x2d0] sm:$0xff]
    %v1131 = vld [vmem:[#allocation5 + $0x2d8] sm:$0xff]
    %v1132 = vld [vmem:[#allocation5 + $0x2e0] sm:$0xff]
    %v1133 = vld [vmem:[#allocation5 + $0x2e8] sm:$0xff]
    %v1134 = vld [vmem:[#allocation5 + $0x2f0] sm:$0xff]
    %v1135 = vld [vmem:[#allocation5 + $0x2f8] sm:$0xff]
    %v1136 = vld [vmem:[#allocation5 + $0x300] sm:$0xff]
    %v1137 = vld [vmem:[#allocation5 + $0x308] sm:$0xff]
    %v1138 = vld [vmem:[#allocation5 + $0x310] sm:$0xff]
    %v1139 = vld [vmem:[#allocation5 + $0x318] sm:$0xff]
    %v1140 = vld [vmem:[%s6] sm:$0xf]
    %v1142 = vperm.slane %v1140, 0
    %v1143 = vperm.slane %v1140, 1
    %v1144 = vperm.slane %v1140, 2
    %v1145 = vperm.slane %v1140, 3
    %v1250 = vunpack.c.l.b16 %v1040
    %v1251 = vunpack.c.h.b16 %v1040
    %v1252 = vunpack.c.l.b16 %v1041
    %v1253 = vunpack.c.h.b16 %v1041
    %v1254 = vunpack.c.l.b16 %v1042
    %v1255 = vunpack.c.h.b16 %v1042
    %v1256 = vunpack.c.l.b16 %v1043
    %v1257 = vunpack.c.h.b16 %v1043
    %v1258 = vunpack.c.l.b16 %v1044
    %v1259 = vunpack.c.h.b16 %v1044
    %v1260 = vunpack.c.l.b16 %v1045
    %v1261 = vunpack.c.h.b16 %v1045
    %v1262 = vunpack.c.l.b16 %v1046
    %v1263 = vunpack.c.h.b16 %v1046
    %v1264 = vunpack.c.l.b16 %v1047
    %v1265 = vunpack.c.h.b16 %v1047
    %v1266 = vunpack.c.l.b16 %v1048
    %v1267 = vunpack.c.h.b16 %v1048
    %v1268 = vunpack.c.l.b16 %v1049
    %v1269 = vunpack.c.h.b16 %v1049
    %v1270 = vunpack.c.l.b16 %v1050
    %v1271 = vunpack.c.h.b16 %v1050
    %v1272 = vunpack.c.l.b16 %v1051
    %v1273 = vunpack.c.h.b16 %v1051
    %v1274 = vunpack.c.l.b16 %v1052
    %v1275 = vunpack.c.h.b16 %v1052
    %v1276 = vunpack.c.l.b16 %v1053
    %v1277 = vunpack.c.h.b16 %v1053
    %v1278 = vunpack.c.l.b16 %v1054
    %v1279 = vunpack.c.h.b16 %v1054
    %v1280 = vunpack.c.l.b16 %v1055
    %v1281 = vunpack.c.h.b16 %v1055
    %v1282 = vunpack.c.l.b16 %v1056
    %v1283 = vunpack.c.h.b16 %v1056
    %v1284 = vunpack.c.l.b16 %v1057
    %v1285 = vunpack.c.h.b16 %v1057
    %v1286 = vunpack.c.l.b16 %v1058
    %v1287 = vunpack.c.h.b16 %v1058
    %v1288 = vunpack.c.l.b16 %v1059
    %v1289 = vunpack.c.h.b16 %v1059
    %v1290 = vunpack.c.l.b16 %v1060
    %v1291 = vunpack.c.h.b16 %v1060
    %v1292 = vunpack.c.l.b16 %v1061
    %v1293 = vunpack.c.h.b16 %v1061
    %v1294 = vunpack.c.l.b16 %v1062
    %v1295 = vunpack.c.h.b16 %v1062
    %v1296 = vunpack.c.l.b16 %v1063
    %v1297 = vunpack.c.h.b16 %v1063
    %v1298 = vunpack.c.l.b16 %v1064
    %v1299 = vunpack.c.h.b16 %v1064
    %v1300 = vunpack.c.l.b16 %v1065
    %v1301 = vunpack.c.h.b16 %v1065
    %v1302 = vunpack.c.l.b16 %v1066
    %v1303 = vunpack.c.h.b16 %v1066
    %v1304 = vunpack.c.l.b16 %v1067
    %v1305 = vunpack.c.h.b16 %v1067
    %v1306 = vunpack.c.l.b16 %v1068
    %v1307 = vunpack.c.h.b16 %v1068
    %v1308 = vunpack.c.l.b16 %v1069
    %v1309 = vunpack.c.h.b16 %v1069
    %v1310 = vunpack.c.l.b16 %v1070
    %v1311 = vunpack.c.h.b16 %v1070
    %v1312 = vunpack.c.l.b16 %v1071
    %v1313 = vunpack.c.h.b16 %v1071
    %v1314 = vunpack.c.l.b16 %v1072
    %v1315 = vunpack.c.h.b16 %v1072
    %v1316 = vunpack.c.l.b16 %v1073
    %v1317 = vunpack.c.h.b16 %v1073
    %v1318 = vunpack.c.l.b16 %v1074
    %v1319 = vunpack.c.h.b16 %v1074
    %v1320 = vunpack.c.l.b16 %v1075
    %v1321 = vunpack.c.h.b16 %v1075
    %v1322 = vunpack.c.l.b16 %v1076
    %v1323 = vunpack.c.h.b16 %v1076
    %v1324 = vunpack.c.l.b16 %v1077
    %v1325 = vunpack.c.h.b16 %v1077
    %v1326 = vunpack.c.l.b16 %v1078
    %v1327 = vunpack.c.h.b16 %v1078
    %v1328 = vunpack.c.l.b16 %v1079
    %v1329 = vunpack.c.h.b16 %v1079
    %v1330 = vunpack.c.l.b16 %v1080
    %v1331 = vunpack.c.h.b16 %v1080
    %v1332 = vunpack.c.l.b16 %v1081
    %v1333 = vunpack.c.h.b16 %v1081
    %v1334 = vunpack.c.l.b16 %v1082
    %v1335 = vunpack.c.h.b16 %v1082
    %v1336 = vunpack.c.l.b16 %v1083
    %v1337 = vunpack.c.h.b16 %v1083
    %v1338 = vunpack.c.l.b16 %v1084
    %v1339 = vunpack.c.h.b16 %v1084
    %v1340 = vunpack.c.l.b16 %v1085
    %v1341 = vunpack.c.h.b16 %v1085
    %v1342 = vunpack.c.l.b16 %v1086
    %v1343 = vunpack.c.h.b16 %v1086
    %v1344 = vunpack.c.l.b16 %v1087
    %v1345 = vunpack.c.h.b16 %v1087
    %v1346 = vunpack.c.l.b16 %v1088
    %v1347 = vunpack.c.h.b16 %v1088
    %v1348 = vunpack.c.l.b16 %v1089
    %v1349 = vunpack.c.h.b16 %v1089
    %v1350 = vunpack.c.l.b16 %v1090
    %v1351 = vunpack.c.h.b16 %v1090
    %v1352 = vunpack.c.l.b16 %v1091
    %v1353 = vunpack.c.h.b16 %v1091
    %v1354 = vunpack.c.l.b16 %v1092
    %v1355 = vunpack.c.h.b16 %v1092
    %v1356 = vunpack.c.l.b16 %v1093
    %v1357 = vunpack.c.h.b16 %v1093
    %v1358 = vunpack.c.l.b16 %v1094
    %v1359 = vunpack.c.h.b16 %v1094
    %v1360 = vunpack.c.l.b16 %v1095
    %v1361 = vunpack.c.h.b16 %v1095
    %v1362 = vunpack.c.l.b16 %v1096
    %v1363 = vunpack.c.h.b16 %v1096
    %v1364 = vunpack.c.l.b16 %v1097
    %v1365 = vunpack.c.h.b16 %v1097
    %v1366 = vunpack.c.l.b16 %v1098
    %v1367 = vunpack.c.h.b16 %v1098
    %v1368 = vunpack.c.l.b16 %v1099
    %v1369 = vunpack.c.h.b16 %v1099
    %v1370 = vunpack.c.l.b16 %v1100
    %v1371 = vunpack.c.h.b16 %v1100
    %v1372 = vunpack.c.l.b16 %v1101
    %v1373 = vunpack.c.h.b16 %v1101
    %v1374 = vunpack.c.l.b16 %v1102
    %v1375 = vunpack.c.h.b16 %v1102
    %v1376 = vunpack.c.l.b16 %v1103
    %v1377 = vunpack.c.h.b16 %v1103
    %v1378 = vunpack.c.l.b16 %v1104
    %v1379 = vunpack.c.h.b16 %v1104
    %v1380 = vunpack.c.l.b16 %v1105
    %v1381 = vunpack.c.h.b16 %v1105
    %v1382 = vunpack.c.l.b16 %v1106
    %v1383 = vunpack.c.h.b16 %v1106
    %v1384 = vunpack.c.l.b16 %v1107
    %v1385 = vunpack.c.h.b16 %v1107
    %v1386 = vunpack.c.l.b16 %v1108
    %v1387 = vunpack.c.h.b16 %v1108
    %v1388 = vunpack.c.l.b16 %v1109
    %v1389 = vunpack.c.h.b16 %v1109
    %v1390 = vunpack.c.l.b16 %v1110
    %v1391 = vunpack.c.h.b16 %v1110
    %v1392 = vunpack.c.l.b16 %v1111
    %v1393 = vunpack.c.h.b16 %v1111
    %v1394 = vunpack.c.l.b16 %v1112
    %v1395 = vunpack.c.h.b16 %v1112
    %v1396 = vunpack.c.l.b16 %v1113
    %v1397 = vunpack.c.h.b16 %v1113
    %v1398 = vunpack.c.l.b16 %v1114
    %v1399 = vunpack.c.h.b16 %v1114
    %v1400 = vunpack.c.l.b16 %v1115
    %v1401 = vunpack.c.h.b16 %v1115
    %v1402 = vunpack.c.l.b16 %v1116
    %v1403 = vunpack.c.h.b16 %v1116
    %v1404 = vunpack.c.l.b16 %v1117
    %v1405 = vunpack.c.h.b16 %v1117
    %v1406 = vunpack.c.l.b16 %v1118
    %v1407 = vunpack.c.h.b16 %v1118
    %v1408 = vunpack.c.l.b16 %v1119
    %v1409 = vunpack.c.h.b16 %v1119
    %v1410 = vunpack.c.l.b16 %v1120
    %v1411 = vunpack.c.h.b16 %v1120
    %v1412 = vunpack.c.l.b16 %v1121
    %v1413 = vunpack.c.h.b16 %v1121
    %v1414 = vunpack.c.l.b16 %v1122
    %v1415 = vunpack.c.h.b16 %v1122
    %v1416 = vunpack.c.l.b16 %v1123
    %v1417 = vunpack.c.h.b16 %v1123
    %v1418 = vunpack.c.l.b16 %v1124
    %v1419 = vunpack.c.h.b16 %v1124
    %v1420 = vunpack.c.l.b16 %v1125
    %v1421 = vunpack.c.h.b16 %v1125
    %v1422 = vunpack.c.l.b16 %v1126
    %v1423 = vunpack.c.h.b16 %v1126
    %v1424 = vunpack.c.l.b16 %v1127
    %v1425 = vunpack.c.h.b16 %v1127
    %v1426 = vunpack.c.l.b16 %v1128
    %v1427 = vunpack.c.h.b16 %v1128
    %v1428 = vunpack.c.l.b16 %v1129
    %v1429 = vunpack.c.h.b16 %v1129
    %v1430 = vunpack.c.l.b16 %v1130
    %v1431 = vunpack.c.h.b16 %v1130
    %v1432 = vunpack.c.l.b16 %v1131
    %v1433 = vunpack.c.h.b16 %v1131
    %v1434 = vunpack.c.l.b16 %v1132
    %v1435 = vunpack.c.h.b16 %v1132
    %v1436 = vunpack.c.l.b16 %v1133
    %v1437 = vunpack.c.h.b16 %v1133
    %v1438 = vunpack.c.l.b16 %v1134
    %v1439 = vunpack.c.h.b16 %v1134
    %v1440 = vunpack.c.l.b16 %v1135
    %v1441 = vunpack.c.h.b16 %v1135
    %v1442 = vunpack.c.l.b16 %v1136
    %v1443 = vunpack.c.h.b16 %v1136
    %v1444 = vunpack.c.l.b16 %v1137
    %v1445 = vunpack.c.h.b16 %v1137
    %v1446 = vunpack.c.l.b16 %v1138
    %v1447 = vunpack.c.h.b16 %v1138
    %v1448 = vunpack.c.l.b16 %v1139
    %v1449 = vunpack.c.h.b16 %v1139
    %v1450 = vpack.c.b16 %v1254, %v1250
    %v1451 = vpack.c.b16 %v1255, %v1251
    %v1452 = vpack.c.b16 %v1256, %v1252
    %v1453 = vpack.c.b16 %v1257, %v1253
    %v1454 = vpack.c.b16 %v1262, %v1258
    %v1455 = vpack.c.b16 %v1263, %v1259
    %v1456 = vpack.c.b16 %v1264, %v1260
    %v1457 = vpack.c.b16 %v1265, %v1261
    %v1458 = vpack.c.b16 %v1270, %v1266
    %v1459 = vpack.c.b16 %v1271, %v1267
    %v1460 = vpack.c.b16 %v1272, %v1268
    %v1461 = vpack.c.b16 %v1273, %v1269
    %v1462 = vpack.c.b16 %v1278, %v1274
    %v1463 = vpack.c.b16 %v1279, %v1275
    %v1464 = vpack.c.b16 %v1280, %v1276
    %v1465 = vpack.c.b16 %v1281, %v1277
    %v1466 = vpack.c.b16 %v1286, %v1282
    %v1467 = vpack.c.b16 %v1287, %v1283
    %v1468 = vpack.c.b16 %v1288, %v1284
    %v1469 = vpack.c.b16 %v1289, %v1285
    %v1470 = vpack.c.b16 %v1294, %v1290
    %v1471 = vpack.c.b16 %v1295, %v1291
    %v1472 = vpack.c.b16 %v1296, %v1292
    %v1473 = vpack.c.b16 %v1297, %v1293
    %v1474 = vpack.c.b16 %v1302, %v1298
    %v1475 = vpack.c.b16 %v1303, %v1299
    %v1476 = vpack.c.b16 %v1304, %v1300
    %v1477 = vpack.c.b16 %v1305, %v1301
    %v1478 = vpack.c.b16 %v1310, %v1306
    %v1479 = vpack.c.b16 %v1311, %v1307
    %v1480 = vpack.c.b16 %v1312, %v1308
    %v1481 = vpack.c.b16 %v1313, %v1309
    %v1482 = vpack.c.b16 %v1318, %v1314
    %v1483 = vpack.c.b16 %v1319, %v1315
    %v1484 = vpack.c.b16 %v1320, %v1316
    %v1485 = vpack.c.b16 %v1321, %v1317
    %v1486 = vpack.c.b16 %v1326, %v1322
    %v1487 = vpack.c.b16 %v1327, %v1323
    %v1488 = vpack.c.b16 %v1328, %v1324
    %v1489 = vpack.c.b16 %v1329, %v1325
    %v1490 = vpack.c.b16 %v1334, %v1330
    %v1491 = vpack.c.b16 %v1335, %v1331
    %v1492 = vpack.c.b16 %v1336, %v1332
    %v1493 = vpack.c.b16 %v1337, %v1333
    %v1494 = vpack.c.b16 %v1342, %v1338
    %v1495 = vpack.c.b16 %v1343, %v1339
    %v1496 = vpack.c.b16 %v1344, %v1340
    %v1497 = vpack.c.b16 %v1345, %v1341
    %v1498 = vpack.c.b16 %v1350, %v1346
    %v1499 = vpack.c.b16 %v1351, %v1347
    %v1500 = vpack.c.b16 %v1352, %v1348
    %v1501 = vpack.c.b16 %v1353, %v1349
    %v1502 = vpack.c.b16 %v1358, %v1354
    %v1503 = vpack.c.b16 %v1359, %v1355
    %v1504 = vpack.c.b16 %v1360, %v1356
    %v1505 = vpack.c.b16 %v1361, %v1357
    %v1506 = vpack.c.b16 %v1366, %v1362
    %v1507 = vpack.c.b16 %v1367, %v1363
    %v1508 = vpack.c.b16 %v1368, %v1364
    %v1509 = vpack.c.b16 %v1369, %v1365
    %v1510 = vpack.c.b16 %v1374, %v1370
    %v1511 = vpack.c.b16 %v1375, %v1371
    %v1512 = vpack.c.b16 %v1376, %v1372
    %v1513 = vpack.c.b16 %v1377, %v1373
    %v1514 = vpack.c.b16 %v1382, %v1378
    %v1515 = vpack.c.b16 %v1383, %v1379
    %v1516 = vpack.c.b16 %v1384, %v1380
    %v1517 = vpack.c.b16 %v1385, %v1381
    %v1518 = vpack.c.b16 %v1390, %v1386
    %v1519 = vpack.c.b16 %v1391, %v1387
    %v1520 = vpack.c.b16 %v1392, %v1388
    %v1521 = vpack.c.b16 %v1393, %v1389
    %v1522 = vpack.c.b16 %v1398, %v1394
    %v1523 = vpack.c.b16 %v1399, %v1395
    %v1524 = vpack.c.b16 %v1400, %v1396
    %v1525 = vpack.c.b16 %v1401, %v1397
    %v1526 = vpack.c.b16 %v1406, %v1402
    %v1527 = vpack.c.b16 %v1407, %v1403
    %v1528 = vpack.c.b16 %v1408, %v1404
    %v1529 = vpack.c.b16 %v1409, %v1405
    %v1530 = vpack.c.b16 %v1414, %v1410
    %v1531 = vpack.c.b16 %v1415, %v1411
    %v1532 = vpack.c.b16 %v1416, %v1412
    %v1533 = vpack.c.b16 %v1417, %v1413
    %v1534 = vpack.c.b16 %v1422, %v1418
    %v1535 = vpack.c.b16 %v1423, %v1419
    %v1536 = vpack.c.b16 %v1424, %v1420
    %v1537 = vpack.c.b16 %v1425, %v1421
    %v1538 = vpack.c.b16 %v1430, %v1426
    %v1539 = vpack.c.b16 %v1431, %v1427
    %v1540 = vpack.c.b16 %v1432, %v1428
    %v1541 = vpack.c.b16 %v1433, %v1429
    %v1542 = vpack.c.b16 %v1438, %v1434
    %v1543 = vpack.c.b16 %v1439, %v1435
    %v1544 = vpack.c.b16 %v1440, %v1436
    %v1545 = vpack.c.b16 %v1441, %v1437
    %v1546 = vpack.c.b16 %v1446, %v1442
    %v1547 = vpack.c.b16 %v1447, %v1443
    %v1548 = vpack.c.b16 %v1448, %v1444
    %v1549 = vpack.c.b16 %v1449, %v1445
    %v1651 = vsel %vm820, %v1039, 0
    %1653 = vmatpush.bf16.msra.mxu0 %v1478
    %1654 = vmatpush.bf16.msra.mxu0 %v1474
    %1655 = vmatpush.bf16.msra.mxu0 %v1470
    %1656 = vmatpush.bf16.msra.mxu0 %v1466
    %1657 = vmatpush.bf16.msra.mxu0 %v1462
    %1658 = vmatpush.bf16.msra.mxu0 %v1458
    %1659 = vmatpush.bf16.msra.mxu0 %v1454
    %1660 = vmatpush.bf16.msra.mxu0 %v1450
    %1661 = vmatmul.bf16.gmra.mxu0 %v1036
    %v1662 = vpop.f32.mrf.mxu0
    %v1663 = vadd.f32 %v1142, %v1662
    %v1664 = vpop.f32.mrf.mxu0
    %1665 = vdwg.mxu0
    %1666 = vmatpush.bf16.msra.mxu0 %v1510
    %1667 = vmatpush.bf16.msra.mxu0 %v1506
    %1668 = vmatpush.bf16.msra.mxu0 %v1502
    %1669 = vmatpush.bf16.msra.mxu0 %v1498
    %1670 = vmatpush.bf16.msra.mxu0 %v1494
    %1671 = vmatpush.bf16.msra.mxu0 %v1490
    %1672 = vmatpush.bf16.msra.mxu0 %v1486
    %1673 = vmatpush.bf16.msra.mxu0 %v1482
    %1674 = vmatmul.bf16.gmra.mxu0 %v1037
    %v1675 = vpop.f32.mrf.mxu0
    %v1676 = vadd.f32 %v1663, %v1675
    %v1677 = vpop.f32.mrf.mxu0
    %1678 = vdwg.mxu0
    %1679 = vmatpush.bf16.msra.mxu0 %v1542
    %1680 = vmatpush.bf16.msra.mxu0 %v1538
    %1681 = vmatpush.bf16.msra.mxu0 %v1534
    %1682 = vmatpush.bf16.msra.mxu0 %v1530
    %1683 = vmatpush.bf16.msra.mxu0 %v1526
    %1684 = vmatpush.bf16.msra.mxu0 %v1522
    %1685 = vmatpush.bf16.msra.mxu0 %v1518
    %1686 = vmatpush.bf16.msra.mxu0 %v1514
    %1687 = vmatmul.bf16.gmra.mxu0 %v1038
    %v1688 = vpop.f32.mrf.mxu0
    %v1689 = vadd.f32 %v1676, %v1688
    %v1690 = vpop.f32.mrf.mxu0
    %1691 = vdwg.mxu0
    %1692 = vmatpush.bf16.msra.mxu0 0
    %1693 = vmatpush.bf16.msra.mxu0 0
    %1694 = vmatpush.bf16.msra.mxu0 0
    %1695 = vmatpush.bf16.msra.mxu0 0
    %1696 = vmatpush.bf16.msra.mxu0 0
    %1697 = vmatpush.bf16.msra.mxu0 0
    %1698 = vmatpush.bf16.msra.mxu0 0
    %1699 = vmatpush.bf16.msra.mxu0 %v1546
    %1700 = vmatmul.bf16.gmra.mxu0 %v1651
    %v1701 = vpop.f32.mrf.mxu0
    %v1702 = vadd.f32 %v1689, %v1701
    %v1703 = vpop.f32.mrf.mxu0
    %1704 = vdwg.mxu0
    %1705 = vmatpush.bf16.msra.mxu0 %v1479
    %1706 = vmatpush.bf16.msra.mxu0 %v1475
    %1707 = vmatpush.bf16.msra.mxu0 %v1471
    %1708 = vmatpush.bf16.msra.mxu0 %v1467
    %1709 = vmatpush.bf16.msra.mxu0 %v1463
    %1710 = vmatpush.bf16.msra.mxu0 %v1459
    %1711 = vmatpush.bf16.msra.mxu0 %v1455
    %1712 = vmatpush.bf16.msra.mxu0 %v1451
    %1713 = vmatmul.bf16.gmra.mxu0 %v1036
    %v1714 = vpop.f32.mrf.mxu0
    %v1715 = vadd.f32 %v1143, %v1714
    %v1716 = vpop.f32.mrf.mxu0
    %1717 = vdwg.mxu0
    %1718 = vmatpush.bf16.msra.mxu0 %v1511
    %1719 = vmatpush.bf16.msra.mxu0 %v1507
    %1720 = vmatpush.bf16.msra.mxu0 %v1503
    %1721 = vmatpush.bf16.msra.mxu0 %v1499
    %1722 = vmatpush.bf16.msra.mxu0 %v1495
    %1723 = vmatpush.bf16.msra.mxu0 %v1491
    %1724 = vmatpush.bf16.msra.mxu0 %v1487
    %1725 = vmatpush.bf16.msra.mxu0 %v1483
    %1726 = vmatmul.bf16.gmra.mxu0 %v1037
    %v1727 = vpop.f32.mrf.mxu0
    %v1728 = vadd.f32 %v1715, %v1727
    %v1729 = vpop.f32.mrf.mxu0
    %1730 = vdwg.mxu0
    %1731 = vmatpush.bf16.msra.mxu0 %v1543
    %1732 = vmatpush.bf16.msra.mxu0 %v1539
    %1733 = vmatpush.bf16.msra.mxu0 %v1535
    %1734 = vmatpush.bf16.msra.mxu0 %v1531
    %1735 = vmatpush.bf16.msra.mxu0 %v1527
    %1736 = vmatpush.bf16.msra.mxu0 %v1523
    %1737 = vmatpush.bf16.msra.mxu0 %v1519
    %1738 = vmatpush.bf16.msra.mxu0 %v1515
    %1739 = vmatmul.bf16.gmra.mxu0 %v1038
    %v1740 = vpop.f32.mrf.mxu0
    %v1741 = vadd.f32 %v1728, %v1740
    %v1742 = vpop.f32.mrf.mxu0
    %1743 = vdwg.mxu0
    %1744 = vmatpush.bf16.msra.mxu0 0
    %1745 = vmatpush.bf16.msra.mxu0 0
    %1746 = vmatpush.bf16.msra.mxu0 0
    %1747 = vmatpush.bf16.msra.mxu0 0
    %1748 = vmatpush.bf16.msra.mxu0 0
    %1749 = vmatpush.bf16.msra.mxu0 0
    %1750 = vmatpush.bf16.msra.mxu0 0
    %1751 = vmatpush.bf16.msra.mxu0 %v1547
    %1752 = vmatmul.bf16.gmra.mxu0 %v1651
    %v1753 = vpop.f32.mrf.mxu0
    %v1754 = vadd.f32 %v1741, %v1753
    %v1755 = vpop.f32.mrf.mxu0
    %1756 = vdwg.mxu0
    %1757 = vmatpush.bf16.msra.mxu0 %v1480
    %1758 = vmatpush.bf16.msra.mxu0 %v1476
    %1759 = vmatpush.bf16.msra.mxu0 %v1472
    %1760 = vmatpush.bf16.msra.mxu0 %v1468
    %1761 = vmatpush.bf16.msra.mxu0 %v1464
    %1762 = vmatpush.bf16.msra.mxu0 %v1460
    %1763 = vmatpush.bf16.msra.mxu0 %v1456
    %1764 = vmatpush.bf16.msra.mxu0 %v1452
    %1765 = vmatmul.bf16.gmra.mxu0 %v1036
    %v1766 = vpop.f32.mrf.mxu0
    %v1767 = vadd.f32 %v1144, %v1766
    %v1768 = vpop.f32.mrf.mxu0
    %1769 = vdwg.mxu0
    %1770 = vmatpush.bf16.msra.mxu0 %v1512
    %1771 = vmatpush.bf16.msra.mxu0 %v1508
    %1772 = vmatpush.bf16.msra.mxu0 %v1504
    %1773 = vmatpush.bf16.msra.mxu0 %v1500
    %1774 = vmatpush.bf16.msra.mxu0 %v1496
    %1775 = vmatpush.bf16.msra.mxu0 %v1492
    %1776 = vmatpush.bf16.msra.mxu0 %v1488
    %1777 = vmatpush.bf16.msra.mxu0 %v1484
    %1778 = vmatmul.bf16.gmra.mxu0 %v1037
    %v1779 = vpop.f32.mrf.mxu0
    %v1780 = vadd.f32 %v1767, %v1779
    %v1781 = vpop.f32.mrf.mxu0
    %1782 = vdwg.mxu0
    %1783 = vmatpush.bf16.msra.mxu0 %v1544
    %1784 = vmatpush.bf16.msra.mxu0 %v1540
    %1785 = vmatpush.bf16.msra.mxu0 %v1536
    %1786 = vmatpush.bf16.msra.mxu0 %v1532
    %1787 = vmatpush.bf16.msra.mxu0 %v1528
    %1788 = vmatpush.bf16.msra.mxu0 %v1524
    %1789 = vmatpush.bf16.msra.mxu0 %v1520
    %1790 = vmatpush.bf16.msra.mxu0 %v1516
    %1791 = vmatmul.bf16.gmra.mxu0 %v1038
    %v1792 = vpop.f32.mrf.mxu0
    %v1793 = vadd.f32 %v1780, %v1792
    %v1794 = vpop.f32.mrf.mxu0
    %1795 = vdwg.mxu0
    %1796 = vmatpush.bf16.msra.mxu0 0
    %1797 = vmatpush.bf16.msra.mxu0 0
    %1798 = vmatpush.bf16.msra.mxu0 0
    %1799 = vmatpush.bf16.msra.mxu0 0
    %1800 = vmatpush.bf16.msra.mxu0 0
    %1801 = vmatpush.bf16.msra.mxu0 0
    %1802 = vmatpush.bf16.msra.mxu0 0
    %1803 = vmatpush.bf16.msra.mxu0 %v1548
    %1804 = vmatmul.bf16.gmra.mxu0 %v1651
    %v1805 = vpop.f32.mrf.mxu0
    %v1806 = vadd.f32 %v1793, %v1805
    %v1807 = vpop.f32.mrf.mxu0
    %1808 = vdwg.mxu0
    %1809 = vmatpush.bf16.msra.mxu0 %v1481
    %1810 = vmatpush.bf16.msra.mxu0 %v1477
    %1811 = vmatpush.bf16.msra.mxu0 %v1473
    %1812 = vmatpush.bf16.msra.mxu0 %v1469
    %1813 = vmatpush.bf16.msra.mxu0 %v1465
    %1814 = vmatpush.bf16.msra.mxu0 %v1461
    %1815 = vmatpush.bf16.msra.mxu0 %v1457
    %1816 = vmatpush.bf16.msra.mxu0 %v1453
    %1817 = vmatmul.bf16.gmra.mxu0 %v1036
    %v1818 = vpop.f32.mrf.mxu0
    %v1819 = vadd.f32 %v1145, %v1818
    %v1820 = vpop.f32.mrf.mxu0
    %1821 = vdwg.mxu0
    %1822 = vmatpush.bf16.msra.mxu0 %v1513
    %1823 = vmatpush.bf16.msra.mxu0 %v1509
    %1824 = vmatpush.bf16.msra.mxu0 %v1505
    %1825 = vmatpush.bf16.msra.mxu0 %v1501
    %1826 = vmatpush.bf16.msra.mxu0 %v1497
    %1827 = vmatpush.bf16.msra.mxu0 %v1493
    %1828 = vmatpush.bf16.msra.mxu0 %v1489
    %1829 = vmatpush.bf16.msra.mxu0 %v1485
    %1830 = vmatmul.bf16.gmra.mxu0 %v1037
    %v1831 = vpop.f32.mrf.mxu0
    %v1832 = vadd.f32 %v1819, %v1831
    %v1833 = vpop.f32.mrf.mxu0
    %1834 = vdwg.mxu0
    %1835 = vmatpush.bf16.msra.mxu0 %v1545
    %1836 = vmatpush.bf16.msra.mxu0 %v1541
    %1837 = vmatpush.bf16.msra.mxu0 %v1537
    %1838 = vmatpush.bf16.msra.mxu0 %v1533
    %1839 = vmatpush.bf16.msra.mxu0 %v1529
    %1840 = vmatpush.bf16.msra.mxu0 %v1525
    %1841 = vmatpush.bf16.msra.mxu0 %v1521
    %1842 = vmatpush.bf16.msra.mxu0 %v1517
    %1843 = vmatmul.bf16.gmra.mxu0 %v1038
    %v1844 = vpop.f32.mrf.mxu0
    %v1845 = vadd.f32 %v1832, %v1844
    %v1846 = vpop.f32.mrf.mxu0
    %1847 = vdwg.mxu0
    %1848 = vmatpush.bf16.msra.mxu0 0
    %1849 = vmatpush.bf16.msra.mxu0 0
    %1850 = vmatpush.bf16.msra.mxu0 0
    %1851 = vmatpush.bf16.msra.mxu0 0
    %1852 = vmatpush.bf16.msra.mxu0 0
    %1853 = vmatpush.bf16.msra.mxu0 0
    %1854 = vmatpush.bf16.msra.mxu0 0
    %1855 = vmatpush.bf16.msra.mxu0 %v1549
    %1856 = vmatmul.bf16.gmra.mxu0 %v1651
    %v1857 = vpop.f32.mrf.mxu0
    %v1858 = vadd.f32 %v1845, %v1857
    %v1859 = vpop.f32.mrf.mxu0
    %1860 = vdwg.mxu0
    %v1861 = vmax.f32 %v1702, 0.0
    %v1862 = vmax.f32 %v1754, 0.0
    %v1863 = vmax.f32 %v1806, 0.0
    %v1864 = vmax.f32 %v1858, 0.0
    %v1865 = vpack.c.bf16 %v1861, %v1861
    %v1866 = vpack.c.bf16 %v1862, %v1862
    %v1867 = vpack.c.bf16 %v1863, %v1863
    %v1868 = vpack.c.bf16 %v1864, %v1864
    %v1869 = vld [vmem:[#allocation7] sm:$0xff]
    %v1870 = vld [vmem:[#allocation7 + $0x8] sm:$0xff]
    %v1871 = vld [vmem:[#allocation7 + $0x10] sm:$0xff]
    %v1872 = vld [vmem:[#allocation7 + $0x18] sm:$0xff]
    %v1873 = vld [vmem:[#allocation7 + $0x20] sm:$0xff]
    %v1874 = vld [vmem:[#allocation7 + $0x28] sm:$0xff]
    %v1875 = vld [vmem:[#allocation7 + $0x30] sm:$0xff]
    %v1876 = vld [vmem:[#allocation7 + $0x38] sm:$0xff]
    %v1877 = vld [vmem:[#allocation7 + $0x40] sm:$0xff]
    %v1878 = vld [vmem:[#allocation7 + $0x48] sm:$0xff]
    %v1879 = vld [vmem:[#allocation7 + $0x50] sm:$0xff]
    %v1880 = vld [vmem:[#allocation7 + $0x58] sm:$0xff]
    %v1881 = vld [vmem:[#allocation7 + $0x60] sm:$0xff]
    %v1882 = vld [vmem:[#allocation7 + $0x68] sm:$0xff]
    %v1883 = vld [vmem:[#allocation7 + $0x70] sm:$0xff]
    %v1884 = vld [vmem:[#allocation7 + $0x78] sm:$0xff]
    %v1885 = vld [vmem:[#allocation7 + $0x80] sm:$0xff]
    %v1886 = vld [vmem:[#allocation7 + $0x88] sm:$0xff]
    %v1887 = vld [vmem:[#allocation7 + $0x90] sm:$0xff]
    %v1888 = vld [vmem:[#allocation7 + $0x98] sm:$0xff]
    %v1889 = vld [vmem:[#allocation7 + $0xa0] sm:$0xff]
    %v1890 = vld [vmem:[#allocation7 + $0xa8] sm:$0xff]
    %v1891 = vld [vmem:[#allocation7 + $0xb0] sm:$0xff]
    %v1892 = vld [vmem:[#allocation7 + $0xb8] sm:$0xff]
    %v1893 = vld [vmem:[#allocation7 + $0xc0] sm:$0xff]
    %v1894 = vld [vmem:[#allocation7 + $0xc8] sm:$0xff]
    %v1895 = vld [vmem:[#allocation7 + $0xd0] sm:$0xff]
    %v1896 = vld [vmem:[#allocation7 + $0xd8] sm:$0xff]
    %v1897 = vld [vmem:[#allocation7 + $0xe0] sm:$0xff]
    %v1898 = vld [vmem:[#allocation7 + $0xe8] sm:$0xff]
    %v1899 = vld [vmem:[#allocation7 + $0xf0] sm:$0xff]
    %v1900 = vld [vmem:[#allocation7 + $0xf8] sm:$0xff]
    %v1901 = vld [vmem:[#allocation7 + $0x100] sm:$0xff]
    %v1902 = vld [vmem:[#allocation7 + $0x108] sm:$0xff]
    %v1903 = vld [vmem:[#allocation7 + $0x110] sm:$0xff]
    %v1904 = vld [vmem:[#allocation7 + $0x118] sm:$0xff]
    %v1905 = vld [vmem:[#allocation7 + $0x120] sm:$0xff]
    %v1906 = vld [vmem:[#allocation7 + $0x128] sm:$0xff]
    %v1907 = vld [vmem:[#allocation7 + $0x130] sm:$0xff]
    %v1908 = vld [vmem:[#allocation7 + $0x138] sm:$0xff]
    %v1909 = vld [vmem:[#allocation7 + $0x140] sm:$0xff]
    %v1910 = vld [vmem:[#allocation7 + $0x148] sm:$0xff]
    %v1911 = vld [vmem:[#allocation7 + $0x150] sm:$0xff]
    %v1912 = vld [vmem:[#allocation7 + $0x158] sm:$0xff]
    %v1913 = vld [vmem:[#allocation7 + $0x160] sm:$0xff]
    %v1914 = vld [vmem:[#allocation7 + $0x168] sm:$0xff]
    %v1915 = vld [vmem:[#allocation7 + $0x170] sm:$0xff]
    %v1916 = vld [vmem:[#allocation7 + $0x178] sm:$0xff]
    %v1917 = vld [vmem:[#allocation7 + $0x180] sm:$0xff]
    %v1918 = vld [vmem:[#allocation7 + $0x188] sm:$0xff]
    %v1919 = vld [vmem:[#allocation7 + $0x190] sm:$0xff]
    %v1920 = vld [vmem:[#allocation7 + $0x198] sm:$0xff]
    %v1921 = vld [vmem:[#allocation7 + $0x1a0] sm:$0xff]
    %v1922 = vld [vmem:[#allocation7 + $0x1a8] sm:$0xff]
    %v1923 = vld [vmem:[#allocation7 + $0x1b0] sm:$0xff]
    %v1924 = vld [vmem:[#allocation7 + $0x1b8] sm:$0xff]
    %v1925 = vld [vmem:[#allocation7 + $0x1c0] sm:$0xff]
    %v1926 = vld [vmem:[#allocation7 + $0x1c8] sm:$0xff]
    %v1927 = vld [vmem:[#allocation7 + $0x1d0] sm:$0xff]
    %v1928 = vld [vmem:[#allocation7 + $0x1d8] sm:$0xff]
    %v1929 = vld [vmem:[#allocation7 + $0x1e0] sm:$0xff]
    %v1930 = vld [vmem:[#allocation7 + $0x1e8] sm:$0xff]
    %v1931 = vld [vmem:[#allocation7 + $0x1f0] sm:$0xff]
    %v1932 = vld [vmem:[#allocation7 + $0x1f8] sm:$0xff]
    %v1933 = vld [vmem:[#allocation7 + $0x200] sm:$0xff]
    %v1934 = vld [vmem:[#allocation7 + $0x208] sm:$0xff]
    %v1935 = vld [vmem:[#allocation7 + $0x210] sm:$0xff]
    %v1936 = vld [vmem:[#allocation7 + $0x218] sm:$0xff]
    %v1937 = vld [vmem:[#allocation7 + $0x220] sm:$0xff]
    %v1938 = vld [vmem:[#allocation7 + $0x228] sm:$0xff]
    %v1939 = vld [vmem:[#allocation7 + $0x230] sm:$0xff]
    %v1940 = vld [vmem:[#allocation7 + $0x238] sm:$0xff]
    %v1941 = vld [vmem:[#allocation7 + $0x240] sm:$0xff]
    %v1942 = vld [vmem:[#allocation7 + $0x248] sm:$0xff]
    %v1943 = vld [vmem:[#allocation7 + $0x250] sm:$0xff]
    %v1944 = vld [vmem:[#allocation7 + $0x258] sm:$0xff]
    %v1945 = vld [vmem:[#allocation7 + $0x260] sm:$0xff]
    %v1946 = vld [vmem:[#allocation7 + $0x268] sm:$0xff]
    %v1947 = vld [vmem:[#allocation7 + $0x270] sm:$0xff]
    %v1948 = vld [vmem:[#allocation7 + $0x278] sm:$0xff]
    %v1949 = vld [vmem:[#allocation7 + $0x280] sm:$0xff]
    %v1950 = vld [vmem:[#allocation7 + $0x288] sm:$0xff]
    %v1951 = vld [vmem:[#allocation7 + $0x290] sm:$0xff]
    %v1952 = vld [vmem:[#allocation7 + $0x298] sm:$0xff]
    %v1953 = vld [vmem:[#allocation7 + $0x2a0] sm:$0xff]
    %v1954 = vld [vmem:[#allocation7 + $0x2a8] sm:$0xff]
    %v1955 = vld [vmem:[#allocation7 + $0x2b0] sm:$0xff]
    %v1956 = vld [vmem:[#allocation7 + $0x2b8] sm:$0xff]
    %v1957 = vld [vmem:[#allocation7 + $0x2c0] sm:$0xff]
    %v1958 = vld [vmem:[#allocation7 + $0x2c8] sm:$0xff]
    %v1959 = vld [vmem:[#allocation7 + $0x2d0] sm:$0xff]
    %v1960 = vld [vmem:[#allocation7 + $0x2d8] sm:$0xff]
    %v1961 = vld [vmem:[#allocation7 + $0x2e0] sm:$0xff]
    %v1962 = vld [vmem:[#allocation7 + $0x2e8] sm:$0xff]
    %v1963 = vld [vmem:[#allocation7 + $0x2f0] sm:$0xff]
    %v1964 = vld [vmem:[#allocation7 + $0x2f8] sm:$0xff]
    %v1965 = vld [vmem:[#allocation7 + $0x300] sm:$0xff]
    %v1966 = vld [vmem:[#allocation7 + $0x308] sm:$0xff]
    %v1967 = vld [vmem:[#allocation7 + $0x310] sm:$0xff]
    %v1968 = vld [vmem:[#allocation7 + $0x318] sm:$0xff]
    %v1969 = vld [vmem:[%s8] sm:$0xf]
    %v1971 = vperm.slane %v1969, 0
    %v1972 = vperm.slane %v1969, 1
    %v1973 = vperm.slane %v1969, 2
    %v1974 = vperm.slane %v1969, 3
    %v2079 = vunpack.c.l.b16 %v1869
    %v2080 = vunpack.c.h.b16 %v1869
    %v2081 = vunpack.c.l.b16 %v1870
    %v2082 = vunpack.c.h.b16 %v1870
    %v2083 = vunpack.c.l.b16 %v1871
    %v2084 = vunpack.c.h.b16 %v1871
    %v2085 = vunpack.c.l.b16 %v1872
    %v2086 = vunpack.c.h.b16 %v1872
    %v2087 = vunpack.c.l.b16 %v1873
    %v2088 = vunpack.c.h.b16 %v1873
    %v2089 = vunpack.c.l.b16 %v1874
    %v2090 = vunpack.c.h.b16 %v1874
    %v2091 = vunpack.c.l.b16 %v1875
    %v2092 = vunpack.c.h.b16 %v1875
    %v2093 = vunpack.c.l.b16 %v1876
    %v2094 = vunpack.c.h.b16 %v1876
    %v2095 = vunpack.c.l.b16 %v1877
    %v2096 = vunpack.c.h.b16 %v1877
    %v2097 = vunpack.c.l.b16 %v1878
    %v2098 = vunpack.c.h.b16 %v1878
    %v2099 = vunpack.c.l.b16 %v1879
    %v2100 = vunpack.c.h.b16 %v1879
    %v2101 = vunpack.c.l.b16 %v1880
    %v2102 = vunpack.c.h.b16 %v1880
    %v2103 = vunpack.c.l.b16 %v1881
    %v2104 = vunpack.c.h.b16 %v1881
    %v2105 = vunpack.c.l.b16 %v1882
    %v2106 = vunpack.c.h.b16 %v1882
    %v2107 = vunpack.c.l.b16 %v1883
    %v2108 = vunpack.c.h.b16 %v1883
    %v2109 = vunpack.c.l.b16 %v1884
    %v2110 = vunpack.c.h.b16 %v1884
    %v2111 = vunpack.c.l.b16 %v1885
    %v2112 = vunpack.c.h.b16 %v1885
    %v2113 = vunpack.c.l.b16 %v1886
    %v2114 = vunpack.c.h.b16 %v1886
    %v2115 = vunpack.c.l.b16 %v1887
    %v2116 = vunpack.c.h.b16 %v1887
    %v2117 = vunpack.c.l.b16 %v1888
    %v2118 = vunpack.c.h.b16 %v1888
    %v2119 = vunpack.c.l.b16 %v1889
    %v2120 = vunpack.c.h.b16 %v1889
    %v2121 = vunpack.c.l.b16 %v1890
    %v2122 = vunpack.c.h.b16 %v1890
    %v2123 = vunpack.c.l.b16 %v1891
    %v2124 = vunpack.c.h.b16 %v1891
    %v2125 = vunpack.c.l.b16 %v1892
    %v2126 = vunpack.c.h.b16 %v1892
    %v2127 = vunpack.c.l.b16 %v1893
    %v2128 = vunpack.c.h.b16 %v1893
    %v2129 = vunpack.c.l.b16 %v1894
    %v2130 = vunpack.c.h.b16 %v1894
    %v2131 = vunpack.c.l.b16 %v1895
    %v2132 = vunpack.c.h.b16 %v1895
    %v2133 = vunpack.c.l.b16 %v1896
    %v2134 = vunpack.c.h.b16 %v1896
    %v2135 = vunpack.c.l.b16 %v1897
    %v2136 = vunpack.c.h.b16 %v1897
    %v2137 = vunpack.c.l.b16 %v1898
    %v2138 = vunpack.c.h.b16 %v1898
    %v2139 = vunpack.c.l.b16 %v1899
    %v2140 = vunpack.c.h.b16 %v1899
    %v2141 = vunpack.c.l.b16 %v1900
    %v2142 = vunpack.c.h.b16 %v1900
    %v2143 = vunpack.c.l.b16 %v1901
    %v2144 = vunpack.c.h.b16 %v1901
    %v2145 = vunpack.c.l.b16 %v1902
    %v2146 = vunpack.c.h.b16 %v1902
    %v2147 = vunpack.c.l.b16 %v1903
    %v2148 = vunpack.c.h.b16 %v1903
    %v2149 = vunpack.c.l.b16 %v1904
    %v2150 = vunpack.c.h.b16 %v1904
    %v2151 = vunpack.c.l.b16 %v1905
    %v2152 = vunpack.c.h.b16 %v1905
    %v2153 = vunpack.c.l.b16 %v1906
    %v2154 = vunpack.c.h.b16 %v1906
    %v2155 = vunpack.c.l.b16 %v1907
    %v2156 = vunpack.c.h.b16 %v1907
    %v2157 = vunpack.c.l.b16 %v1908
    %v2158 = vunpack.c.h.b16 %v1908
    %v2159 = vunpack.c.l.b16 %v1909
    %v2160 = vunpack.c.h.b16 %v1909
    %v2161 = vunpack.c.l.b16 %v1910
    %v2162 = vunpack.c.h.b16 %v1910
    %v2163 = vunpack.c.l.b16 %v1911
    %v2164 = vunpack.c.h.b16 %v1911
    %v2165 = vunpack.c.l.b16 %v1912
    %v2166 = vunpack.c.h.b16 %v1912
    %v2167 = vunpack.c.l.b16 %v1913
    %v2168 = vunpack.c.h.b16 %v1913
    %v2169 = vunpack.c.l.b16 %v1914
    %v2170 = vunpack.c.h.b16 %v1914
    %v2171 = vunpack.c.l.b16 %v1915
    %v2172 = vunpack.c.h.b16 %v1915
    %v2173 = vunpack.c.l.b16 %v1916
    %v2174 = vunpack.c.h.b16 %v1916
    %v2175 = vunpack.c.l.b16 %v1917
    %v2176 = vunpack.c.h.b16 %v1917
    %v2177 = vunpack.c.l.b16 %v1918
    %v2178 = vunpack.c.h.b16 %v1918
    %v2179 = vunpack.c.l.b16 %v1919
    %v2180 = vunpack.c.h.b16 %v1919
    %v2181 = vunpack.c.l.b16 %v1920
    %v2182 = vunpack.c.h.b16 %v1920
    %v2183 = vunpack.c.l.b16 %v1921
    %v2184 = vunpack.c.h.b16 %v1921
    %v2185 = vunpack.c.l.b16 %v1922
    %v2186 = vunpack.c.h.b16 %v1922
    %v2187 = vunpack.c.l.b16 %v1923
    %v2188 = vunpack.c.h.b16 %v1923
    %v2189 = vunpack.c.l.b16 %v1924
    %v2190 = vunpack.c.h.b16 %v1924
    %v2191 = vunpack.c.l.b16 %v1925
    %v2192 = vunpack.c.h.b16 %v1925
    %v2193 = vunpack.c.l.b16 %v1926
    %v2194 = vunpack.c.h.b16 %v1926
    %v2195 = vunpack.c.l.b16 %v1927
    %v2196 = vunpack.c.h.b16 %v1927
    %v2197 = vunpack.c.l.b16 %v1928
    %v2198 = vunpack.c.h.b16 %v1928
    %v2199 = vunpack.c.l.b16 %v1929
    %v2200 = vunpack.c.h.b16 %v1929
    %v2201 = vunpack.c.l.b16 %v1930
    %v2202 = vunpack.c.h.b16 %v1930
    %v2203 = vunpack.c.l.b16 %v1931
    %v2204 = vunpack.c.h.b16 %v1931
    %v2205 = vunpack.c.l.b16 %v1932
    %v2206 = vunpack.c.h.b16 %v1932
    %v2207 = vunpack.c.l.b16 %v1933
    %v2208 = vunpack.c.h.b16 %v1933
    %v2209 = vunpack.c.l.b16 %v1934
    %v2210 = vunpack.c.h.b16 %v1934
    %v2211 = vunpack.c.l.b16 %v1935
    %v2212 = vunpack.c.h.b16 %v1935
    %v2213 = vunpack.c.l.b16 %v1936
    %v2214 = vunpack.c.h.b16 %v1936
    %v2215 = vunpack.c.l.b16 %v1937
    %v2216 = vunpack.c.h.b16 %v1937
    %v2217 = vunpack.c.l.b16 %v1938
    %v2218 = vunpack.c.h.b16 %v1938
    %v2219 = vunpack.c.l.b16 %v1939
    %v2220 = vunpack.c.h.b16 %v1939
    %v2221 = vunpack.c.l.b16 %v1940
    %v2222 = vunpack.c.h.b16 %v1940
    %v2223 = vunpack.c.l.b16 %v1941
    %v2224 = vunpack.c.h.b16 %v1941
    %v2225 = vunpack.c.l.b16 %v1942
    %v2226 = vunpack.c.h.b16 %v1942
    %v2227 = vunpack.c.l.b16 %v1943
    %v2228 = vunpack.c.h.b16 %v1943
    %v2229 = vunpack.c.l.b16 %v1944
    %v2230 = vunpack.c.h.b16 %v1944
    %v2231 = vunpack.c.l.b16 %v1945
    %v2232 = vunpack.c.h.b16 %v1945
    %v2233 = vunpack.c.l.b16 %v1946
    %v2234 = vunpack.c.h.b16 %v1946
    %v2235 = vunpack.c.l.b16 %v1947
    %v2236 = vunpack.c.h.b16 %v1947
    %v2237 = vunpack.c.l.b16 %v1948
    %v2238 = vunpack.c.h.b16 %v1948
    %v2239 = vunpack.c.l.b16 %v1949
    %v2240 = vunpack.c.h.b16 %v1949
    %v2241 = vunpack.c.l.b16 %v1950
    %v2242 = vunpack.c.h.b16 %v1950
    %v2243 = vunpack.c.l.b16 %v1951
    %v2244 = vunpack.c.h.b16 %v1951
    %v2245 = vunpack.c.l.b16 %v1952
    %v2246 = vunpack.c.h.b16 %v1952
    %v2247 = vunpack.c.l.b16 %v1953
    %v2248 = vunpack.c.h.b16 %v1953
    %v2249 = vunpack.c.l.b16 %v1954
    %v2250 = vunpack.c.h.b16 %v1954
    %v2251 = vunpack.c.l.b16 %v1955
    %v2252 = vunpack.c.h.b16 %v1955
    %v2253 = vunpack.c.l.b16 %v1956
    %v2254 = vunpack.c.h.b16 %v1956
    %v2255 = vunpack.c.l.b16 %v1957
    %v2256 = vunpack.c.h.b16 %v1957
    %v2257 = vunpack.c.l.b16 %v1958
    %v2258 = vunpack.c.h.b16 %v1958
    %v2259 = vunpack.c.l.b16 %v1959
    %v2260 = vunpack.c.h.b16 %v1959
    %v2261 = vunpack.c.l.b16 %v1960
    %v2262 = vunpack.c.h.b16 %v1960
    %v2263 = vunpack.c.l.b16 %v1961
    %v2264 = vunpack.c.h.b16 %v1961
    %v2265 = vunpack.c.l.b16 %v1962
    %v2266 = vunpack.c.h.b16 %v1962
    %v2267 = vunpack.c.l.b16 %v1963
    %v2268 = vunpack.c.h.b16 %v1963
    %v2269 = vunpack.c.l.b16 %v1964
    %v2270 = vunpack.c.h.b16 %v1964
    %v2271 = vunpack.c.l.b16 %v1965
    %v2272 = vunpack.c.h.b16 %v1965
    %v2273 = vunpack.c.l.b16 %v1966
    %v2274 = vunpack.c.h.b16 %v1966
    %v2275 = vunpack.c.l.b16 %v1967
    %v2276 = vunpack.c.h.b16 %v1967
    %v2277 = vunpack.c.l.b16 %v1968
    %v2278 = vunpack.c.h.b16 %v1968
    %v2279 = vpack.c.b16 %v2083, %v2079
    %v2280 = vpack.c.b16 %v2084, %v2080
    %v2281 = vpack.c.b16 %v2085, %v2081
    %v2282 = vpack.c.b16 %v2086, %v2082
    %v2283 = vpack.c.b16 %v2091, %v2087
    %v2284 = vpack.c.b16 %v2092, %v2088
    %v2285 = vpack.c.b16 %v2093, %v2089
    %v2286 = vpack.c.b16 %v2094, %v2090
    %v2287 = vpack.c.b16 %v2099, %v2095
    %v2288 = vpack.c.b16 %v2100, %v2096
    %v2289 = vpack.c.b16 %v2101, %v2097
    %v2290 = vpack.c.b16 %v2102, %v2098
    %v2291 = vpack.c.b16 %v2107, %v2103
    %v2292 = vpack.c.b16 %v2108, %v2104
    %v2293 = vpack.c.b16 %v2109, %v2105
    %v2294 = vpack.c.b16 %v2110, %v2106
    %v2295 = vpack.c.b16 %v2115, %v2111
    %v2296 = vpack.c.b16 %v2116, %v2112
    %v2297 = vpack.c.b16 %v2117, %v2113
    %v2298 = vpack.c.b16 %v2118, %v2114
    %v2299 = vpack.c.b16 %v2123, %v2119
    %v2300 = vpack.c.b16 %v2124, %v2120
    %v2301 = vpack.c.b16 %v2125, %v2121
    %v2302 = vpack.c.b16 %v2126, %v2122
    %v2303 = vpack.c.b16 %v2131, %v2127
    %v2304 = vpack.c.b16 %v2132, %v2128
    %v2305 = vpack.c.b16 %v2133, %v2129
    %v2306 = vpack.c.b16 %v2134, %v2130
    %v2307 = vpack.c.b16 %v2139, %v2135
    %v2308 = vpack.c.b16 %v2140, %v2136
    %v2309 = vpack.c.b16 %v2141, %v2137
    %v2310 = vpack.c.b16 %v2142, %v2138
    %v2311 = vpack.c.b16 %v2147, %v2143
    %v2312 = vpack.c.b16 %v2148, %v2144
    %v2313 = vpack.c.b16 %v2149, %v2145
    %v2314 = vpack.c.b16 %v2150, %v2146
    %v2315 = vpack.c.b16 %v2155, %v2151
    %v2316 = vpack.c.b16 %v2156, %v2152
    %v2317 = vpack.c.b16 %v2157, %v2153
    %v2318 = vpack.c.b16 %v2158, %v2154
    %v2319 = vpack.c.b16 %v2163, %v2159
    %v2320 = vpack.c.b16 %v2164, %v2160
    %v2321 = vpack.c.b16 %v2165, %v2161
    %v2322 = vpack.c.b16 %v2166, %v2162
    %v2323 = vpack.c.b16 %v2171, %v2167
    %v2324 = vpack.c.b16 %v2172, %v2168
    %v2325 = vpack.c.b16 %v2173, %v2169
    %v2326 = vpack.c.b16 %v2174, %v2170
    %v2327 = vpack.c.b16 %v2179, %v2175
    %v2328 = vpack.c.b16 %v2180, %v2176
    %v2329 = vpack.c.b16 %v2181, %v2177
    %v2330 = vpack.c.b16 %v2182, %v2178
    %v2331 = vpack.c.b16 %v2187, %v2183
    %v2332 = vpack.c.b16 %v2188, %v2184
    %v2333 = vpack.c.b16 %v2189, %v2185
    %v2334 = vpack.c.b16 %v2190, %v2186
    %v2335 = vpack.c.b16 %v2195, %v2191
    %v2336 = vpack.c.b16 %v2196, %v2192
    %v2337 = vpack.c.b16 %v2197, %v2193
    %v2338 = vpack.c.b16 %v2198, %v2194
    %v2339 = vpack.c.b16 %v2203, %v2199
    %v2340 = vpack.c.b16 %v2204, %v2200
    %v2341 = vpack.c.b16 %v2205, %v2201
    %v2342 = vpack.c.b16 %v2206, %v2202
    %v2343 = vpack.c.b16 %v2211, %v2207
    %v2344 = vpack.c.b16 %v2212, %v2208
    %v2345 = vpack.c.b16 %v2213, %v2209
    %v2346 = vpack.c.b16 %v2214, %v2210
    %v2347 = vpack.c.b16 %v2219, %v2215
    %v2348 = vpack.c.b16 %v2220, %v2216
    %v2349 = vpack.c.b16 %v2221, %v2217
    %v2350 = vpack.c.b16 %v2222, %v2218
    %v2351 = vpack.c.b16 %v2227, %v2223
    %v2352 = vpack.c.b16 %v2228, %v2224
    %v2353 = vpack.c.b16 %v2229, %v2225
    %v2354 = vpack.c.b16 %v2230, %v2226
    %v2355 = vpack.c.b16 %v2235, %v2231
    %v2356 = vpack.c.b16 %v2236, %v2232
    %v2357 = vpack.c.b16 %v2237, %v2233
    %v2358 = vpack.c.b16 %v2238, %v2234
    %v2359 = vpack.c.b16 %v2243, %v2239
    %v2360 = vpack.c.b16 %v2244, %v2240
    %v2361 = vpack.c.b16 %v2245, %v2241
    %v2362 = vpack.c.b16 %v2246, %v2242
    %v2363 = vpack.c.b16 %v2251, %v2247
    %v2364 = vpack.c.b16 %v2252, %v2248
    %v2365 = vpack.c.b16 %v2253, %v2249
    %v2366 = vpack.c.b16 %v2254, %v2250
    %v2367 = vpack.c.b16 %v2259, %v2255
    %v2368 = vpack.c.b16 %v2260, %v2256
    %v2369 = vpack.c.b16 %v2261, %v2257
    %v2370 = vpack.c.b16 %v2262, %v2258
    %v2371 = vpack.c.b16 %v2267, %v2263
    %v2372 = vpack.c.b16 %v2268, %v2264
    %v2373 = vpack.c.b16 %v2269, %v2265
    %v2374 = vpack.c.b16 %v2270, %v2266
    %v2375 = vpack.c.b16 %v2275, %v2271
    %v2376 = vpack.c.b16 %v2276, %v2272
    %v2377 = vpack.c.b16 %v2277, %v2273
    %v2378 = vpack.c.b16 %v2278, %v2274
    %v2480 = vsel %vm820, %v1868, 0
    %2482 = vmatpush.bf16.msra.mxu0 %v2307
    %2483 = vmatpush.bf16.msra.mxu0 %v2303
    %2484 = vmatpush.bf16.msra.mxu0 %v2299
    %2485 = vmatpush.bf16.msra.mxu0 %v2295
    %2486 = vmatpush.bf16.msra.mxu0 %v2291
    %2487 = vmatpush.bf16.msra.mxu0 %v2287
    %2488 = vmatpush.bf16.msra.mxu0 %v2283
    %2489 = vmatpush.bf16.msra.mxu0 %v2279
    %2490 = vmatmul.bf16.gmra.mxu0 %v1865
    %v2491 = vpop.f32.mrf.mxu0
    %v2492 = vadd.f32 %v1971, %v2491
    %v2493 = vpop.f32.mrf.mxu0
    %2494 = vdwg.mxu0
    %2495 = vmatpush.bf16.msra.mxu0 %v2339
    %2496 = vmatpush.bf16.msra.mxu0 %v2335
    %2497 = vmatpush.bf16.msra.mxu0 %v2331
    %2498 = vmatpush.bf16.msra.mxu0 %v2327
    %2499 = vmatpush.bf16.msra.mxu0 %v2323
    %2500 = vmatpush.bf16.msra.mxu0 %v2319
    %2501 = vmatpush.bf16.msra.mxu0 %v2315
    %2502 = vmatpush.bf16.msra.mxu0 %v2311
    %2503 = vmatmul.bf16.gmra.mxu0 %v1866
    %v2504 = vpop.f32.mrf.mxu0
    %v2505 = vadd.f32 %v2492, %v2504
    %v2506 = vpop.f32.mrf.mxu0
    %2507 = vdwg.mxu0
    %2508 = vmatpush.bf16.msra.mxu0 %v2371
    %2509 = vmatpush.bf16.msra.mxu0 %v2367
    %2510 = vmatpush.bf16.msra.mxu0 %v2363
    %2511 = vmatpush.bf16.msra.mxu0 %v2359
    %2512 = vmatpush.bf16.msra.mxu0 %v2355
    %2513 = vmatpush.bf16.msra.mxu0 %v2351
    %2514 = vmatpush.bf16.msra.mxu0 %v2347
    %2515 = vmatpush.bf16.msra.mxu0 %v2343
    %2516 = vmatmul.bf16.gmra.mxu0 %v1867
    %v2517 = vpop.f32.mrf.mxu0
    %v2518 = vadd.f32 %v2505, %v2517
    %v2519 = vpop.f32.mrf.mxu0
    %2520 = vdwg.mxu0
    %2521 = vmatpush.bf16.msra.mxu0 0
    %2522 = vmatpush.bf16.msra.mxu0 0
    %2523 = vmatpush.bf16.msra.mxu0 0
    %2524 = vmatpush.bf16.msra.mxu0 0
    %2525 = vmatpush.bf16.msra.mxu0 0
    %2526 = vmatpush.bf16.msra.mxu0 0
    %2527 = vmatpush.bf16.msra.mxu0 0
    %2528 = vmatpush.bf16.msra.mxu0 %v2375
    %2529 = vmatmul.bf16.gmra.mxu0 %v2480
    %v2530 = vpop.f32.mrf.mxu0
    %v2531 = vadd.f32 %v2518, %v2530
    %v2532 = vpop.f32.mrf.mxu0
    %2533 = vdwg.mxu0
    %2534 = vmatpush.bf16.msra.mxu0 %v2308
    %2535 = vmatpush.bf16.msra.mxu0 %v2304
    %2536 = vmatpush.bf16.msra.mxu0 %v2300
    %2537 = vmatpush.bf16.msra.mxu0 %v2296
    %2538 = vmatpush.bf16.msra.mxu0 %v2292
    %2539 = vmatpush.bf16.msra.mxu0 %v2288
    %2540 = vmatpush.bf16.msra.mxu0 %v2284
    %2541 = vmatpush.bf16.msra.mxu0 %v2280
    %2542 = vmatmul.bf16.gmra.mxu0 %v1865
    %v2543 = vpop.f32.mrf.mxu0
    %v2544 = vadd.f32 %v1972, %v2543
    %v2545 = vpop.f32.mrf.mxu0
    %2546 = vdwg.mxu0
    %2547 = vmatpush.bf16.msra.mxu0 %v2340
    %2548 = vmatpush.bf16.msra.mxu0 %v2336
    %2549 = vmatpush.bf16.msra.mxu0 %v2332
    %2550 = vmatpush.bf16.msra.mxu0 %v2328
    %2551 = vmatpush.bf16.msra.mxu0 %v2324
    %2552 = vmatpush.bf16.msra.mxu0 %v2320
    %2553 = vmatpush.bf16.msra.mxu0 %v2316
    %2554 = vmatpush.bf16.msra.mxu0 %v2312
    %2555 = vmatmul.bf16.gmra.mxu0 %v1866
    %v2556 = vpop.f32.mrf.mxu0
    %v2557 = vadd.f32 %v2544, %v2556
    %v2558 = vpop.f32.mrf.mxu0
    %2559 = vdwg.mxu0
    %2560 = vmatpush.bf16.msra.mxu0 %v2372
    %2561 = vmatpush.bf16.msra.mxu0 %v2368
    %2562 = vmatpush.bf16.msra.mxu0 %v2364
    %2563 = vmatpush.bf16.msra.mxu0 %v2360
    %2564 = vmatpush.bf16.msra.mxu0 %v2356
    %2565 = vmatpush.bf16.msra.mxu0 %v2352
    %2566 = vmatpush.bf16.msra.mxu0 %v2348
    %2567 = vmatpush.bf16.msra.mxu0 %v2344
    %2568 = vmatmul.bf16.gmra.mxu0 %v1867
    %v2569 = vpop.f32.mrf.mxu0
    %v2570 = vadd.f32 %v2557, %v2569
    %v2571 = vpop.f32.mrf.mxu0
    %2572 = vdwg.mxu0
    %2573 = vmatpush.bf16.msra.mxu0 0
    %2574 = vmatpush.bf16.msra.mxu0 0
    %2575 = vmatpush.bf16.msra.mxu0 0
    %2576 = vmatpush.bf16.msra.mxu0 0
    %2577 = vmatpush.bf16.msra.mxu0 0
    %2578 = vmatpush.bf16.msra.mxu0 0
    %2579 = vmatpush.bf16.msra.mxu0 0
    %2580 = vmatpush.bf16.msra.mxu0 %v2376
    %2581 = vmatmul.bf16.gmra.mxu0 %v2480
    %v2582 = vpop.f32.mrf.mxu0
    %v2583 = vadd.f32 %v2570, %v2582
    %v2584 = vpop.f32.mrf.mxu0
    %2585 = vdwg.mxu0
    %2586 = vmatpush.bf16.msra.mxu0 %v2309
    %2587 = vmatpush.bf16.msra.mxu0 %v2305
    %2588 = vmatpush.bf16.msra.mxu0 %v2301
    %2589 = vmatpush.bf16.msra.mxu0 %v2297
    %2590 = vmatpush.bf16.msra.mxu0 %v2293
    %2591 = vmatpush.bf16.msra.mxu0 %v2289
    %2592 = vmatpush.bf16.msra.mxu0 %v2285
    %2593 = vmatpush.bf16.msra.mxu0 %v2281
    %2594 = vmatmul.bf16.gmra.mxu0 %v1865
    %v2595 = vpop.f32.mrf.mxu0
    %v2596 = vadd.f32 %v1973, %v2595
    %v2597 = vpop.f32.mrf.mxu0
    %2598 = vdwg.mxu0
    %2599 = vmatpush.bf16.msra.mxu0 %v2341
    %2600 = vmatpush.bf16.msra.mxu0 %v2337
    %2601 = vmatpush.bf16.msra.mxu0 %v2333
    %2602 = vmatpush.bf16.msra.mxu0 %v2329
    %2603 = vmatpush.bf16.msra.mxu0 %v2325
    %2604 = vmatpush.bf16.msra.mxu0 %v2321
    %2605 = vmatpush.bf16.msra.mxu0 %v2317
    %2606 = vmatpush.bf16.msra.mxu0 %v2313
    %2607 = vmatmul.bf16.gmra.mxu0 %v1866
    %v2608 = vpop.f32.mrf.mxu0
    %v2609 = vadd.f32 %v2596, %v2608
    %v2610 = vpop.f32.mrf.mxu0
    %2611 = vdwg.mxu0
    %2612 = vmatpush.bf16.msra.mxu0 %v2373
    %2613 = vmatpush.bf16.msra.mxu0 %v2369
    %2614 = vmatpush.bf16.msra.mxu0 %v2365
    %2615 = vmatpush.bf16.msra.mxu0 %v2361
    %2616 = vmatpush.bf16.msra.mxu0 %v2357
    %2617 = vmatpush.bf16.msra.mxu0 %v2353
    %2618 = vmatpush.bf16.msra.mxu0 %v2349
    %2619 = vmatpush.bf16.msra.mxu0 %v2345
    %2620 = vmatmul.bf16.gmra.mxu0 %v1867
    %v2621 = vpop.f32.mrf.mxu0
    %v2622 = vadd.f32 %v2609, %v2621
    %v2623 = vpop.f32.mrf.mxu0
    %2624 = vdwg.mxu0
    %2625 = vmatpush.bf16.msra.mxu0 0
    %2626 = vmatpush.bf16.msra.mxu0 0
    %2627 = vmatpush.bf16.msra.mxu0 0
    %2628 = vmatpush.bf16.msra.mxu0 0
    %2629 = vmatpush.bf16.msra.mxu0 0
    %2630 = vmatpush.bf16.msra.mxu0 0
    %2631 = vmatpush.bf16.msra.mxu0 0
    %2632 = vmatpush.bf16.msra.mxu0 %v2377
    %2633 = vmatmul.bf16.gmra.mxu0 %v2480
    %v2634 = vpop.f32.mrf.mxu0
    %v2635 = vadd.f32 %v2622, %v2634
    %v2636 = vpop.f32.mrf.mxu0
    %2637 = vdwg.mxu0
    %2638 = vmatpush.bf16.msra.mxu0 %v2310
    %2639 = vmatpush.bf16.msra.mxu0 %v2306
    %2640 = vmatpush.bf16.msra.mxu0 %v2302
    %2641 = vmatpush.bf16.msra.mxu0 %v2298
    %2642 = vmatpush.bf16.msra.mxu0 %v2294
    %2643 = vmatpush.bf16.msra.mxu0 %v2290
    %2644 = vmatpush.bf16.msra.mxu0 %v2286
    %2645 = vmatpush.bf16.msra.mxu0 %v2282
    %2646 = vmatmul.bf16.gmra.mxu0 %v1865
    %v2647 = vpop.f32.mrf.mxu0
    %v2648 = vadd.f32 %v1974, %v2647
    %v2649 = vpop.f32.mrf.mxu0
    %2650 = vdwg.mxu0
    %2651 = vmatpush.bf16.msra.mxu0 %v2342
    %2652 = vmatpush.bf16.msra.mxu0 %v2338
    %2653 = vmatpush.bf16.msra.mxu0 %v2334
    %2654 = vmatpush.bf16.msra.mxu0 %v2330
    %2655 = vmatpush.bf16.msra.mxu0 %v2326
    %2656 = vmatpush.bf16.msra.mxu0 %v2322
    %2657 = vmatpush.bf16.msra.mxu0 %v2318
    %2658 = vmatpush.bf16.msra.mxu0 %v2314
    %2659 = vmatmul.bf16.gmra.mxu0 %v1866
    %v2660 = vpop.f32.mrf.mxu0
    %v2661 = vadd.f32 %v2648, %v2660
    %v2662 = vpop.f32.mrf.mxu0
    %2663 = vdwg.mxu0
    %2664 = vmatpush.bf16.msra.mxu0 %v2374
    %2665 = vmatpush.bf16.msra.mxu0 %v2370
    %2666 = vmatpush.bf16.msra.mxu0 %v2366
    %2667 = vmatpush.bf16.msra.mxu0 %v2362
    %2668 = vmatpush.bf16.msra.mxu0 %v2358
    %2669 = vmatpush.bf16.msra.mxu0 %v2354
    %2670 = vmatpush.bf16.msra.mxu0 %v2350
    %2671 = vmatpush.bf16.msra.mxu0 %v2346
    %2672 = vmatmul.bf16.gmra.mxu0 %v1867
    %v2673 = vpop.f32.mrf.mxu0
    %v2674 = vadd.f32 %v2661, %v2673
    %v2675 = vpop.f32.mrf.mxu0
    %2676 = vdwg.mxu0
    %2677 = vmatpush.bf16.msra.mxu0 0
    %2678 = vmatpush.bf16.msra.mxu0 0
    %2679 = vmatpush.bf16.msra.mxu0 0
    %2680 = vmatpush.bf16.msra.mxu0 0
    %2681 = vmatpush.bf16.msra.mxu0 0
    %2682 = vmatpush.bf16.msra.mxu0 0
    %2683 = vmatpush.bf16.msra.mxu0 0
    %2684 = vmatpush.bf16.msra.mxu0 %v2378
    %2685 = vmatmul.bf16.gmra.mxu0 %v2480
    %v2686 = vpop.f32.mrf.mxu0
    %v2687 = vadd.f32 %v2674, %v2686
    %v2688 = vpop.f32.mrf.mxu0
    %2689 = vdwg.mxu0
    %v2690 = vmax.f32 %v2531, 0.0
    %v2691 = vmax.f32 %v2583, 0.0
    %v2692 = vmax.f32 %v2635, 0.0
    %v2693 = vmax.f32 %v2687, 0.0
    %v2694 = vpack.c.bf16 %v2690, %v2690
    %v2695 = vpack.c.bf16 %v2691, %v2691
    %v2696 = vpack.c.bf16 %v2692, %v2692
    %v2697 = vpack.c.bf16 %v2693, %v2693
    %v2698 = vld [vmem:[#allocation8] sm:$0xff]
    %v2699 = vld [vmem:[#allocation8 + $0x8] sm:$0xff]
    %v2700 = vld [vmem:[#allocation8 + $0x10] sm:$0xff]
    %v2701 = vld [vmem:[#allocation8 + $0x18] sm:$0xff]
    %v2702 = vld [vmem:[#allocation8 + $0x20] sm:$0xff]
    %v2703 = vld [vmem:[#allocation8 + $0x28] sm:$0xff]
    %v2704 = vld [vmem:[#allocation8 + $0x30] sm:$0xff]
    %v2705 = vld [vmem:[#allocation8 + $0x38] sm:$0xff]
    %v2706 = vld [vmem:[#allocation8 + $0x40] sm:$0xff]
    %v2707 = vld [vmem:[#allocation8 + $0x48] sm:$0xff]
    %v2708 = vld [vmem:[#allocation8 + $0x50] sm:$0xff]
    %v2709 = vld [vmem:[#allocation8 + $0x58] sm:$0xff]
    %v2710 = vld [vmem:[#allocation8 + $0x60] sm:$0xff]
    %v2711 = vld [vmem:[#allocation8 + $0x68] sm:$0xff]
    %v2712 = vld [vmem:[#allocation8 + $0x70] sm:$0xff]
    %v2713 = vld [vmem:[#allocation8 + $0x78] sm:$0xff]
    %v2714 = vld [vmem:[#allocation8 + $0x80] sm:$0xff]
    %v2715 = vld [vmem:[#allocation8 + $0x88] sm:$0xff]
    %v2716 = vld [vmem:[#allocation8 + $0x90] sm:$0xff]
    %v2717 = vld [vmem:[#allocation8 + $0x98] sm:$0xff]
    %v2718 = vld [vmem:[#allocation8 + $0xa0] sm:$0xff]
    %v2719 = vld [vmem:[#allocation8 + $0xa8] sm:$0xff]
    %v2720 = vld [vmem:[#allocation8 + $0xb0] sm:$0xff]
    %v2721 = vld [vmem:[#allocation8 + $0xb8] sm:$0xff]
    %v2722 = vld [vmem:[#allocation8 + $0xc0] sm:$0xff]
    %v2723 = vld [vmem:[#allocation8 + $0xc8] sm:$0xff]
    %v2724 = vld [vmem:[#allocation8 + $0xd0] sm:$0xff]
    %v2725 = vld [vmem:[#allocation8 + $0xd8] sm:$0xff]
    %v2726 = vld [vmem:[#allocation8 + $0xe0] sm:$0xff]
    %v2727 = vld [vmem:[#allocation8 + $0xe8] sm:$0xff]
    %v2728 = vld [vmem:[#allocation8 + $0xf0] sm:$0xff]
    %v2729 = vld [vmem:[#allocation8 + $0xf8] sm:$0xff]
    %v2730 = vld [vmem:[#allocation8 + $0x100] sm:$0xff]
    %v2731 = vld [vmem:[#allocation8 + $0x108] sm:$0xff]
    %v2732 = vld [vmem:[#allocation8 + $0x110] sm:$0xff]
    %v2733 = vld [vmem:[#allocation8 + $0x118] sm:$0xff]
    %v2734 = vld [vmem:[#allocation8 + $0x120] sm:$0xff]
    %v2735 = vld [vmem:[#allocation8 + $0x128] sm:$0xff]
    %v2736 = vld [vmem:[#allocation8 + $0x130] sm:$0xff]
    %v2737 = vld [vmem:[#allocation8 + $0x138] sm:$0xff]
    %v2738 = vld [vmem:[#allocation8 + $0x140] sm:$0xff]
    %v2739 = vld [vmem:[#allocation8 + $0x148] sm:$0xff]
    %v2740 = vld [vmem:[#allocation8 + $0x150] sm:$0xff]
    %v2741 = vld [vmem:[#allocation8 + $0x158] sm:$0xff]
    %v2742 = vld [vmem:[#allocation8 + $0x160] sm:$0xff]
    %v2743 = vld [vmem:[#allocation8 + $0x168] sm:$0xff]
    %v2744 = vld [vmem:[#allocation8 + $0x170] sm:$0xff]
    %v2745 = vld [vmem:[#allocation8 + $0x178] sm:$0xff]
    %v2746 = vld [vmem:[#allocation8 + $0x180] sm:$0xff]
    %v2747 = vld [vmem:[#allocation8 + $0x188] sm:$0xff]
    %v2748 = vld [vmem:[#allocation8 + $0x190] sm:$0xff]
    %v2749 = vld [vmem:[#allocation8 + $0x198] sm:$0xff]
    %v2750 = vld [vmem:[#allocation8 + $0x1a0] sm:$0xff]
    %v2751 = vld [vmem:[#allocation8 + $0x1a8] sm:$0xff]
    %v2752 = vld [vmem:[#allocation8 + $0x1b0] sm:$0xff]
    %v2753 = vld [vmem:[#allocation8 + $0x1b8] sm:$0xff]
    %v2754 = vld [vmem:[#allocation8 + $0x1c0] sm:$0xff]
    %v2755 = vld [vmem:[#allocation8 + $0x1c8] sm:$0xff]
    %v2756 = vld [vmem:[#allocation8 + $0x1d0] sm:$0xff]
    %v2757 = vld [vmem:[#allocation8 + $0x1d8] sm:$0xff]
    %v2758 = vld [vmem:[#allocation8 + $0x1e0] sm:$0xff]
    %v2759 = vld [vmem:[#allocation8 + $0x1e8] sm:$0xff]
    %v2760 = vld [vmem:[#allocation8 + $0x1f0] sm:$0xff]
    %v2761 = vld [vmem:[#allocation8 + $0x1f8] sm:$0xff]
    %v2762 = vld [vmem:[#allocation8 + $0x200] sm:$0xff]
    %v2763 = vld [vmem:[#allocation8 + $0x208] sm:$0xff]
    %v2764 = vld [vmem:[#allocation8 + $0x210] sm:$0xff]
    %v2765 = vld [vmem:[#allocation8 + $0x218] sm:$0xff]
    %v2766 = vld [vmem:[#allocation8 + $0x220] sm:$0xff]
    %v2767 = vld [vmem:[#allocation8 + $0x228] sm:$0xff]
    %v2768 = vld [vmem:[#allocation8 + $0x230] sm:$0xff]
    %v2769 = vld [vmem:[#allocation8 + $0x238] sm:$0xff]
    %v2770 = vld [vmem:[#allocation8 + $0x240] sm:$0xff]
    %v2771 = vld [vmem:[#allocation8 + $0x248] sm:$0xff]
    %v2772 = vld [vmem:[#allocation8 + $0x250] sm:$0xff]
    %v2773 = vld [vmem:[#allocation8 + $0x258] sm:$0xff]
    %v2774 = vld [vmem:[#allocation8 + $0x260] sm:$0xff]
    %v2775 = vld [vmem:[#allocation8 + $0x268] sm:$0xff]
    %v2776 = vld [vmem:[#allocation8 + $0x270] sm:$0xff]
    %v2777 = vld [vmem:[#allocation8 + $0x278] sm:$0xff]
    %v2778 = vld [vmem:[#allocation8 + $0x280] sm:$0xff]
    %v2779 = vld [vmem:[#allocation8 + $0x288] sm:$0xff]
    %v2780 = vld [vmem:[#allocation8 + $0x290] sm:$0xff]
    %v2781 = vld [vmem:[#allocation8 + $0x298] sm:$0xff]
    %v2782 = vld [vmem:[#allocation8 + $0x2a0] sm:$0xff]
    %v2783 = vld [vmem:[#allocation8 + $0x2a8] sm:$0xff]
    %v2784 = vld [vmem:[#allocation8 + $0x2b0] sm:$0xff]
    %v2785 = vld [vmem:[#allocation8 + $0x2b8] sm:$0xff]
    %v2786 = vld [vmem:[#allocation8 + $0x2c0] sm:$0xff]
    %v2787 = vld [vmem:[#allocation8 + $0x2c8] sm:$0xff]
    %v2788 = vld [vmem:[#allocation8 + $0x2d0] sm:$0xff]
    %v2789 = vld [vmem:[#allocation8 + $0x2d8] sm:$0xff]
    %v2790 = vld [vmem:[#allocation8 + $0x2e0] sm:$0xff]
    %v2791 = vld [vmem:[#allocation8 + $0x2e8] sm:$0xff]
    %v2792 = vld [vmem:[#allocation8 + $0x2f0] sm:$0xff]
    %v2793 = vld [vmem:[#allocation8 + $0x2f8] sm:$0xff]
    %v2794 = vld [vmem:[#allocation8 + $0x300] sm:$0xff]
    %v2795 = vld [vmem:[#allocation8 + $0x308] sm:$0xff]
    %v2796 = vld [vmem:[#allocation8 + $0x310] sm:$0xff]
    %v2797 = vld [vmem:[#allocation8 + $0x318] sm:$0xff]
    %v2798 = vld [vmem:[%s10] sm:$0xf]
    %v2800 = vperm.slane %v2798, 0
    %v2801 = vperm.slane %v2798, 1
    %v2802 = vperm.slane %v2798, 2
    %v2803 = vperm.slane %v2798, 3
    %v2908 = vunpack.c.l.b16 %v2698
    %v2909 = vunpack.c.h.b16 %v2698
    %v2910 = vunpack.c.l.b16 %v2699
    %v2911 = vunpack.c.h.b16 %v2699
    %v2912 = vunpack.c.l.b16 %v2700
    %v2913 = vunpack.c.h.b16 %v2700
    %v2914 = vunpack.c.l.b16 %v2701
    %v2915 = vunpack.c.h.b16 %v2701
    %v2916 = vunpack.c.l.b16 %v2702
    %v2917 = vunpack.c.h.b16 %v2702
    %v2918 = vunpack.c.l.b16 %v2703
    %v2919 = vunpack.c.h.b16 %v2703
    %v2920 = vunpack.c.l.b16 %v2704
    %v2921 = vunpack.c.h.b16 %v2704
    %v2922 = vunpack.c.l.b16 %v2705
    %v2923 = vunpack.c.h.b16 %v2705
    %v2924 = vunpack.c.l.b16 %v2706
    %v2925 = vunpack.c.h.b16 %v2706
    %v2926 = vunpack.c.l.b16 %v2707
    %v2927 = vunpack.c.h.b16 %v2707
    %v2928 = vunpack.c.l.b16 %v2708
    %v2929 = vunpack.c.h.b16 %v2708
    %v2930 = vunpack.c.l.b16 %v2709
    %v2931 = vunpack.c.h.b16 %v2709
    %v2932 = vunpack.c.l.b16 %v2710
    %v2933 = vunpack.c.h.b16 %v2710
    %v2934 = vunpack.c.l.b16 %v2711
    %v2935 = vunpack.c.h.b16 %v2711
    %v2936 = vunpack.c.l.b16 %v2712
    %v2937 = vunpack.c.h.b16 %v2712
    %v2938 = vunpack.c.l.b16 %v2713
    %v2939 = vunpack.c.h.b16 %v2713
    %v2940 = vunpack.c.l.b16 %v2714
    %v2941 = vunpack.c.h.b16 %v2714
    %v2942 = vunpack.c.l.b16 %v2715
    %v2943 = vunpack.c.h.b16 %v2715
    %v2944 = vunpack.c.l.b16 %v2716
    %v2945 = vunpack.c.h.b16 %v2716
    %v2946 = vunpack.c.l.b16 %v2717
    %v2947 = vunpack.c.h.b16 %v2717
    %v2948 = vunpack.c.l.b16 %v2718
    %v2949 = vunpack.c.h.b16 %v2718
    %v2950 = vunpack.c.l.b16 %v2719
    %v2951 = vunpack.c.h.b16 %v2719
    %v2952 = vunpack.c.l.b16 %v2720
    %v2953 = vunpack.c.h.b16 %v2720
    %v2954 = vunpack.c.l.b16 %v2721
    %v2955 = vunpack.c.h.b16 %v2721
    %v2956 = vunpack.c.l.b16 %v2722
    %v2957 = vunpack.c.h.b16 %v2722
    %v2958 = vunpack.c.l.b16 %v2723
    %v2959 = vunpack.c.h.b16 %v2723
    %v2960 = vunpack.c.l.b16 %v2724
    %v2961 = vunpack.c.h.b16 %v2724
    %v2962 = vunpack.c.l.b16 %v2725
    %v2963 = vunpack.c.h.b16 %v2725
    %v2964 = vunpack.c.l.b16 %v2726
    %v2965 = vunpack.c.h.b16 %v2726
    %v2966 = vunpack.c.l.b16 %v2727
    %v2967 = vunpack.c.h.b16 %v2727
    %v2968 = vunpack.c.l.b16 %v2728
    %v2969 = vunpack.c.h.b16 %v2728
    %v2970 = vunpack.c.l.b16 %v2729
    %v2971 = vunpack.c.h.b16 %v2729
    %v2972 = vunpack.c.l.b16 %v2730
    %v2973 = vunpack.c.h.b16 %v2730
    %v2974 = vunpack.c.l.b16 %v2731
    %v2975 = vunpack.c.h.b16 %v2731
    %v2976 = vunpack.c.l.b16 %v2732
    %v2977 = vunpack.c.h.b16 %v2732
    %v2978 = vunpack.c.l.b16 %v2733
    %v2979 = vunpack.c.h.b16 %v2733
    %v2980 = vunpack.c.l.b16 %v2734
    %v2981 = vunpack.c.h.b16 %v2734
    %v2982 = vunpack.c.l.b16 %v2735
    %v2983 = vunpack.c.h.b16 %v2735
    %v2984 = vunpack.c.l.b16 %v2736
    %v2985 = vunpack.c.h.b16 %v2736
    %v2986 = vunpack.c.l.b16 %v2737
    %v2987 = vunpack.c.h.b16 %v2737
    %v2988 = vunpack.c.l.b16 %v2738
    %v2989 = vunpack.c.h.b16 %v2738
    %v2990 = vunpack.c.l.b16 %v2739
    %v2991 = vunpack.c.h.b16 %v2739
    %v2992 = vunpack.c.l.b16 %v2740
    %v2993 = vunpack.c.h.b16 %v2740
    %v2994 = vunpack.c.l.b16 %v2741
    %v2995 = vunpack.c.h.b16 %v2741
    %v2996 = vunpack.c.l.b16 %v2742
    %v2997 = vunpack.c.h.b16 %v2742
    %v2998 = vunpack.c.l.b16 %v2743
    %v2999 = vunpack.c.h.b16 %v2743
    %v3000 = vunpack.c.l.b16 %v2744
    %v3001 = vunpack.c.h.b16 %v2744
    %v3002 = vunpack.c.l.b16 %v2745
    %v3003 = vunpack.c.h.b16 %v2745
    %v3004 = vunpack.c.l.b16 %v2746
    %v3005 = vunpack.c.h.b16 %v2746
    %v3006 = vunpack.c.l.b16 %v2747
    %v3007 = vunpack.c.h.b16 %v2747
    %v3008 = vunpack.c.l.b16 %v2748
    %v3009 = vunpack.c.h.b16 %v2748
    %v3010 = vunpack.c.l.b16 %v2749
    %v3011 = vunpack.c.h.b16 %v2749
    %v3012 = vunpack.c.l.b16 %v2750
    %v3013 = vunpack.c.h.b16 %v2750
    %v3014 = vunpack.c.l.b16 %v2751
    %v3015 = vunpack.c.h.b16 %v2751
    %v3016 = vunpack.c.l.b16 %v2752
    %v3017 = vunpack.c.h.b16 %v2752
    %v3018 = vunpack.c.l.b16 %v2753
    %v3019 = vunpack.c.h.b16 %v2753
    %v3020 = vunpack.c.l.b16 %v2754
    %v3021 = vunpack.c.h.b16 %v2754
    %v3022 = vunpack.c.l.b16 %v2755
    %v3023 = vunpack.c.h.b16 %v2755
    %v3024 = vunpack.c.l.b16 %v2756
    %v3025 = vunpack.c.h.b16 %v2756
    %v3026 = vunpack.c.l.b16 %v2757
    %v3027 = vunpack.c.h.b16 %v2757
    %v3028 = vunpack.c.l.b16 %v2758
    %v3029 = vunpack.c.h.b16 %v2758
    %v3030 = vunpack.c.l.b16 %v2759
    %v3031 = vunpack.c.h.b16 %v2759
    %v3032 = vunpack.c.l.b16 %v2760
    %v3033 = vunpack.c.h.b16 %v2760
    %v3034 = vunpack.c.l.b16 %v2761
    %v3035 = vunpack.c.h.b16 %v2761
    %v3036 = vunpack.c.l.b16 %v2762
    %v3037 = vunpack.c.h.b16 %v2762
    %v3038 = vunpack.c.l.b16 %v2763
    %v3039 = vunpack.c.h.b16 %v2763
    %v3040 = vunpack.c.l.b16 %v2764
    %v3041 = vunpack.c.h.b16 %v2764
    %v3042 = vunpack.c.l.b16 %v2765
    %v3043 = vunpack.c.h.b16 %v2765
    %v3044 = vunpack.c.l.b16 %v2766
    %v3045 = vunpack.c.h.b16 %v2766
    %v3046 = vunpack.c.l.b16 %v2767
    %v3047 = vunpack.c.h.b16 %v2767
    %v3048 = vunpack.c.l.b16 %v2768
    %v3049 = vunpack.c.h.b16 %v2768
    %v3050 = vunpack.c.l.b16 %v2769
    %v3051 = vunpack.c.h.b16 %v2769
    %v3052 = vunpack.c.l.b16 %v2770
    %v3053 = vunpack.c.h.b16 %v2770
    %v3054 = vunpack.c.l.b16 %v2771
    %v3055 = vunpack.c.h.b16 %v2771
    %v3056 = vunpack.c.l.b16 %v2772
    %v3057 = vunpack.c.h.b16 %v2772
    %v3058 = vunpack.c.l.b16 %v2773
    %v3059 = vunpack.c.h.b16 %v2773
    %v3060 = vunpack.c.l.b16 %v2774
    %v3061 = vunpack.c.h.b16 %v2774
    %v3062 = vunpack.c.l.b16 %v2775
    %v3063 = vunpack.c.h.b16 %v2775
    %v3064 = vunpack.c.l.b16 %v2776
    %v3065 = vunpack.c.h.b16 %v2776
    %v3066 = vunpack.c.l.b16 %v2777
    %v3067 = vunpack.c.h.b16 %v2777
    %v3068 = vunpack.c.l.b16 %v2778
    %v3069 = vunpack.c.h.b16 %v2778
    %v3070 = vunpack.c.l.b16 %v2779
    %v3071 = vunpack.c.h.b16 %v2779
    %v3072 = vunpack.c.l.b16 %v2780
    %v3073 = vunpack.c.h.b16 %v2780
    %v3074 = vunpack.c.l.b16 %v2781
    %v3075 = vunpack.c.h.b16 %v2781
    %v3076 = vunpack.c.l.b16 %v2782
    %v3077 = vunpack.c.h.b16 %v2782
    %v3078 = vunpack.c.l.b16 %v2783
    %v3079 = vunpack.c.h.b16 %v2783
    %v3080 = vunpack.c.l.b16 %v2784
    %v3081 = vunpack.c.h.b16 %v2784
    %v3082 = vunpack.c.l.b16 %v2785
    %v3083 = vunpack.c.h.b16 %v2785
    %v3084 = vunpack.c.l.b16 %v2786
    %v3085 = vunpack.c.h.b16 %v2786
    %v3086 = vunpack.c.l.b16 %v2787
    %v3087 = vunpack.c.h.b16 %v2787
    %v3088 = vunpack.c.l.b16 %v2788
    %v3089 = vunpack.c.h.b16 %v2788
    %v3090 = vunpack.c.l.b16 %v2789
    %v3091 = vunpack.c.h.b16 %v2789
    %v3092 = vunpack.c.l.b16 %v2790
    %v3093 = vunpack.c.h.b16 %v2790
    %v3094 = vunpack.c.l.b16 %v2791
    %v3095 = vunpack.c.h.b16 %v2791
    %v3096 = vunpack.c.l.b16 %v2792
    %v3097 = vunpack.c.h.b16 %v2792
    %v3098 = vunpack.c.l.b16 %v2793
    %v3099 = vunpack.c.h.b16 %v2793
    %v3100 = vunpack.c.l.b16 %v2794
    %v3101 = vunpack.c.h.b16 %v2794
    %v3102 = vunpack.c.l.b16 %v2795
    %v3103 = vunpack.c.h.b16 %v2795
    %v3104 = vunpack.c.l.b16 %v2796
    %v3105 = vunpack.c.h.b16 %v2796
    %v3106 = vunpack.c.l.b16 %v2797
    %v3107 = vunpack.c.h.b16 %v2797
    %v3108 = vpack.c.b16 %v2912, %v2908
    %v3109 = vpack.c.b16 %v2913, %v2909
    %v3110 = vpack.c.b16 %v2914, %v2910
    %v3111 = vpack.c.b16 %v2915, %v2911
    %v3112 = vpack.c.b16 %v2920, %v2916
    %v3113 = vpack.c.b16 %v2921, %v2917
    %v3114 = vpack.c.b16 %v2922, %v2918
    %v3115 = vpack.c.b16 %v2923, %v2919
    %v3116 = vpack.c.b16 %v2928, %v2924
    %v3117 = vpack.c.b16 %v2929, %v2925
    %v3118 = vpack.c.b16 %v2930, %v2926
    %v3119 = vpack.c.b16 %v2931, %v2927
    %v3120 = vpack.c.b16 %v2936, %v2932
    %v3121 = vpack.c.b16 %v2937, %v2933
    %v3122 = vpack.c.b16 %v2938, %v2934
    %v3123 = vpack.c.b16 %v2939, %v2935
    %v3124 = vpack.c.b16 %v2944, %v2940
    %v3125 = vpack.c.b16 %v2945, %v2941
    %v3126 = vpack.c.b16 %v2946, %v2942
    %v3127 = vpack.c.b16 %v2947, %v2943
    %v3128 = vpack.c.b16 %v2952, %v2948
    %v3129 = vpack.c.b16 %v2953, %v2949
    %v3130 = vpack.c.b16 %v2954, %v2950
    %v3131 = vpack.c.b16 %v2955, %v2951
    %v3132 = vpack.c.b16 %v2960, %v2956
    %v3133 = vpack.c.b16 %v2961, %v2957
    %v3134 = vpack.c.b16 %v2962, %v2958
    %v3135 = vpack.c.b16 %v2963, %v2959
    %v3136 = vpack.c.b16 %v2968, %v2964
    %v3137 = vpack.c.b16 %v2969, %v2965
    %v3138 = vpack.c.b16 %v2970, %v2966
    %v3139 = vpack.c.b16 %v2971, %v2967
    %v3140 = vpack.c.b16 %v2976, %v2972
    %v3141 = vpack.c.b16 %v2977, %v2973
    %v3142 = vpack.c.b16 %v2978, %v2974
    %v3143 = vpack.c.b16 %v2979, %v2975
    %v3144 = vpack.c.b16 %v2984, %v2980
    %v3145 = vpack.c.b16 %v2985, %v2981
    %v3146 = vpack.c.b16 %v2986, %v2982
    %v3147 = vpack.c.b16 %v2987, %v2983
    %v3148 = vpack.c.b16 %v2992, %v2988
    %v3149 = vpack.c.b16 %v2993, %v2989
    %v3150 = vpack.c.b16 %v2994, %v2990
    %v3151 = vpack.c.b16 %v2995, %v2991
    %v3152 = vpack.c.b16 %v3000, %v2996
    %v3153 = vpack.c.b16 %v3001, %v2997
    %v3154 = vpack.c.b16 %v3002, %v2998
    %v3155 = vpack.c.b16 %v3003, %v2999
    %v3156 = vpack.c.b16 %v3008, %v3004
    %v3157 = vpack.c.b16 %v3009, %v3005
    %v3158 = vpack.c.b16 %v3010, %v3006
    %v3159 = vpack.c.b16 %v3011, %v3007
    %v3160 = vpack.c.b16 %v3016, %v3012
    %v3161 = vpack.c.b16 %v3017, %v3013
    %v3162 = vpack.c.b16 %v3018, %v3014
    %v3163 = vpack.c.b16 %v3019, %v3015
    %v3164 = vpack.c.b16 %v3024, %v3020
    %v3165 = vpack.c.b16 %v3025, %v3021
    %v3166 = vpack.c.b16 %v3026, %v3022
    %v3167 = vpack.c.b16 %v3027, %v3023
    %v3168 = vpack.c.b16 %v3032, %v3028
    %v3169 = vpack.c.b16 %v3033, %v3029
    %v3170 = vpack.c.b16 %v3034, %v3030
    %v3171 = vpack.c.b16 %v3035, %v3031
    %v3172 = vpack.c.b16 %v3040, %v3036
    %v3173 = vpack.c.b16 %v3041, %v3037
    %v3174 = vpack.c.b16 %v3042, %v3038
    %v3175 = vpack.c.b16 %v3043, %v3039
    %v3176 = vpack.c.b16 %v3048, %v3044
    %v3177 = vpack.c.b16 %v3049, %v3045
    %v3178 = vpack.c.b16 %v3050, %v3046
    %v3179 = vpack.c.b16 %v3051, %v3047
    %v3180 = vpack.c.b16 %v3056, %v3052
    %v3181 = vpack.c.b16 %v3057, %v3053
    %v3182 = vpack.c.b16 %v3058, %v3054
    %v3183 = vpack.c.b16 %v3059, %v3055
    %v3184 = vpack.c.b16 %v3064, %v3060
    %v3185 = vpack.c.b16 %v3065, %v3061
    %v3186 = vpack.c.b16 %v3066, %v3062
    %v3187 = vpack.c.b16 %v3067, %v3063
    %v3188 = vpack.c.b16 %v3072, %v3068
    %v3189 = vpack.c.b16 %v3073, %v3069
    %v3190 = vpack.c.b16 %v3074, %v3070
    %v3191 = vpack.c.b16 %v3075, %v3071
    %v3192 = vpack.c.b16 %v3080, %v3076
    %v3193 = vpack.c.b16 %v3081, %v3077
    %v3194 = vpack.c.b16 %v3082, %v3078
    %v3195 = vpack.c.b16 %v3083, %v3079
    %v3196 = vpack.c.b16 %v3088, %v3084
    %v3197 = vpack.c.b16 %v3089, %v3085
    %v3198 = vpack.c.b16 %v3090, %v3086
    %v3199 = vpack.c.b16 %v3091, %v3087
    %v3200 = vpack.c.b16 %v3096, %v3092
    %v3201 = vpack.c.b16 %v3097, %v3093
    %v3202 = vpack.c.b16 %v3098, %v3094
    %v3203 = vpack.c.b16 %v3099, %v3095
    %v3204 = vpack.c.b16 %v3104, %v3100
    %v3205 = vpack.c.b16 %v3105, %v3101
    %v3206 = vpack.c.b16 %v3106, %v3102
    %v3207 = vpack.c.b16 %v3107, %v3103
    %v3309 = vsel %vm820, %v2697, 0
    %3311 = vmatpush.bf16.msra.mxu0 %v3136
    %3312 = vmatpush.bf16.msra.mxu0 %v3132
    %3313 = vmatpush.bf16.msra.mxu0 %v3128
    %3314 = vmatpush.bf16.msra.mxu0 %v3124
    %3315 = vmatpush.bf16.msra.mxu0 %v3120
    %3316 = vmatpush.bf16.msra.mxu0 %v3116
    %3317 = vmatpush.bf16.msra.mxu0 %v3112
    %3318 = vmatpush.bf16.msra.mxu0 %v3108
    %3319 = vmatmul.bf16.gmra.mxu0 %v2694
    %v3320 = vpop.f32.mrf.mxu0
    %v3321 = vadd.f32 %v2800, %v3320
    %v3322 = vpop.f32.mrf.mxu0
    %3323 = vdwg.mxu0
    %3324 = vmatpush.bf16.msra.mxu0 %v3168
    %3325 = vmatpush.bf16.msra.mxu0 %v3164
    %3326 = vmatpush.bf16.msra.mxu0 %v3160
    %3327 = vmatpush.bf16.msra.mxu0 %v3156
    %3328 = vmatpush.bf16.msra.mxu0 %v3152
    %3329 = vmatpush.bf16.msra.mxu0 %v3148
    %3330 = vmatpush.bf16.msra.mxu0 %v3144
    %3331 = vmatpush.bf16.msra.mxu0 %v3140
    %3332 = vmatmul.bf16.gmra.mxu0 %v2695
    %v3333 = vpop.f32.mrf.mxu0
    %v3334 = vadd.f32 %v3321, %v3333
    %v3335 = vpop.f32.mrf.mxu0
    %3336 = vdwg.mxu0
    %3337 = vmatpush.bf16.msra.mxu0 %v3200
    %3338 = vmatpush.bf16.msra.mxu0 %v3196
    %3339 = vmatpush.bf16.msra.mxu0 %v3192
    %3340 = vmatpush.bf16.msra.mxu0 %v3188
    %3341 = vmatpush.bf16.msra.mxu0 %v3184
    %3342 = vmatpush.bf16.msra.mxu0 %v3180
    %3343 = vmatpush.bf16.msra.mxu0 %v3176
    %3344 = vmatpush.bf16.msra.mxu0 %v3172
    %3345 = vmatmul.bf16.gmra.mxu0 %v2696
    %v3346 = vpop.f32.mrf.mxu0
    %v3347 = vadd.f32 %v3334, %v3346
    %v3348 = vpop.f32.mrf.mxu0
    %3349 = vdwg.mxu0
    %3350 = vmatpush.bf16.msra.mxu0 0
    %3351 = vmatpush.bf16.msra.mxu0 0
    %3352 = vmatpush.bf16.msra.mxu0 0
    %3353 = vmatpush.bf16.msra.mxu0 0
    %3354 = vmatpush.bf16.msra.mxu0 0
    %3355 = vmatpush.bf16.msra.mxu0 0
    %3356 = vmatpush.bf16.msra.mxu0 0
    %3357 = vmatpush.bf16.msra.mxu0 %v3204
    %3358 = vmatmul.bf16.gmra.mxu0 %v3309
    %v3359 = vpop.f32.mrf.mxu0
    %v3360 = vadd.f32 %v3347, %v3359
    %v3361 = vpop.f32.mrf.mxu0
    %3362 = vdwg.mxu0
    %3363 = vmatpush.bf16.msra.mxu0 %v3137
    %3364 = vmatpush.bf16.msra.mxu0 %v3133
    %3365 = vmatpush.bf16.msra.mxu0 %v3129
    %3366 = vmatpush.bf16.msra.mxu0 %v3125
    %3367 = vmatpush.bf16.msra.mxu0 %v3121
    %3368 = vmatpush.bf16.msra.mxu0 %v3117
    %3369 = vmatpush.bf16.msra.mxu0 %v3113
    %3370 = vmatpush.bf16.msra.mxu0 %v3109
    %3371 = vmatmul.bf16.gmra.mxu0 %v2694
    %v3372 = vpop.f32.mrf.mxu0
    %v3373 = vadd.f32 %v2801, %v3372
    %v3374 = vpop.f32.mrf.mxu0
    %3375 = vdwg.mxu0
    %3376 = vmatpush.bf16.msra.mxu0 %v3169
    %3377 = vmatpush.bf16.msra.mxu0 %v3165
    %3378 = vmatpush.bf16.msra.mxu0 %v3161
    %3379 = vmatpush.bf16.msra.mxu0 %v3157
    %3380 = vmatpush.bf16.msra.mxu0 %v3153
    %3381 = vmatpush.bf16.msra.mxu0 %v3149
    %3382 = vmatpush.bf16.msra.mxu0 %v3145
    %3383 = vmatpush.bf16.msra.mxu0 %v3141
    %3384 = vmatmul.bf16.gmra.mxu0 %v2695
    %v3385 = vpop.f32.mrf.mxu0
    %v3386 = vadd.f32 %v3373, %v3385
    %v3387 = vpop.f32.mrf.mxu0
    %3388 = vdwg.mxu0
    %3389 = vmatpush.bf16.msra.mxu0 %v3201
    %3390 = vmatpush.bf16.msra.mxu0 %v3197
    %3391 = vmatpush.bf16.msra.mxu0 %v3193
    %3392 = vmatpush.bf16.msra.mxu0 %v3189
    %3393 = vmatpush.bf16.msra.mxu0 %v3185
    %3394 = vmatpush.bf16.msra.mxu0 %v3181
    %3395 = vmatpush.bf16.msra.mxu0 %v3177
    %3396 = vmatpush.bf16.msra.mxu0 %v3173
    %3397 = vmatmul.bf16.gmra.mxu0 %v2696
    %v3398 = vpop.f32.mrf.mxu0
    %v3399 = vadd.f32 %v3386, %v3398
    %v3400 = vpop.f32.mrf.mxu0
    %3401 = vdwg.mxu0
    %3402 = vmatpush.bf16.msra.mxu0 0
    %3403 = vmatpush.bf16.msra.mxu0 0
    %3404 = vmatpush.bf16.msra.mxu0 0
    %3405 = vmatpush.bf16.msra.mxu0 0
    %3406 = vmatpush.bf16.msra.mxu0 0
    %3407 = vmatpush.bf16.msra.mxu0 0
    %3408 = vmatpush.bf16.msra.mxu0 0
    %3409 = vmatpush.bf16.msra.mxu0 %v3205
    %3410 = vmatmul.bf16.gmra.mxu0 %v3309
    %v3411 = vpop.f32.mrf.mxu0
    %v3412 = vadd.f32 %v3399, %v3411
    %v3413 = vpop.f32.mrf.mxu0
    %3414 = vdwg.mxu0
    %3415 = vmatpush.bf16.msra.mxu0 %v3138
    %3416 = vmatpush.bf16.msra.mxu0 %v3134
    %3417 = vmatpush.bf16.msra.mxu0 %v3130
    %3418 = vmatpush.bf16.msra.mxu0 %v3126
    %3419 = vmatpush.bf16.msra.mxu0 %v3122
    %3420 = vmatpush.bf16.msra.mxu0 %v3118
    %3421 = vmatpush.bf16.msra.mxu0 %v3114
    %3422 = vmatpush.bf16.msra.mxu0 %v3110
    %3423 = vmatmul.bf16.gmra.mxu0 %v2694
    %v3424 = vpop.f32.mrf.mxu0
    %v3425 = vadd.f32 %v2802, %v3424
    %v3426 = vpop.f32.mrf.mxu0
    %3427 = vdwg.mxu0
    %3428 = vmatpush.bf16.msra.mxu0 %v3170
    %3429 = vmatpush.bf16.msra.mxu0 %v3166
    %3430 = vmatpush.bf16.msra.mxu0 %v3162
    %3431 = vmatpush.bf16.msra.mxu0 %v3158
    %3432 = vmatpush.bf16.msra.mxu0 %v3154
    %3433 = vmatpush.bf16.msra.mxu0 %v3150
    %3434 = vmatpush.bf16.msra.mxu0 %v3146
    %3435 = vmatpush.bf16.msra.mxu0 %v3142
    %3436 = vmatmul.bf16.gmra.mxu0 %v2695
    %v3437 = vpop.f32.mrf.mxu0
    %v3438 = vadd.f32 %v3425, %v3437
    %v3439 = vpop.f32.mrf.mxu0
    %3440 = vdwg.mxu0
    %3441 = vmatpush.bf16.msra.mxu0 %v3202
    %3442 = vmatpush.bf16.msra.mxu0 %v3198
    %3443 = vmatpush.bf16.msra.mxu0 %v3194
    %3444 = vmatpush.bf16.msra.mxu0 %v3190
    %3445 = vmatpush.bf16.msra.mxu0 %v3186
    %3446 = vmatpush.bf16.msra.mxu0 %v3182
    %3447 = vmatpush.bf16.msra.mxu0 %v3178
    %3448 = vmatpush.bf16.msra.mxu0 %v3174
    %3449 = vmatmul.bf16.gmra.mxu0 %v2696
    %v3450 = vpop.f32.mrf.mxu0
    %v3451 = vadd.f32 %v3438, %v3450
    %v3452 = vpop.f32.mrf.mxu0
    %3453 = vdwg.mxu0
    %3454 = vmatpush.bf16.msra.mxu0 0
    %3455 = vmatpush.bf16.msra.mxu0 0
    %3456 = vmatpush.bf16.msra.mxu0 0
    %3457 = vmatpush.bf16.msra.mxu0 0
    %3458 = vmatpush.bf16.msra.mxu0 0
    %3459 = vmatpush.bf16.msra.mxu0 0
    %3460 = vmatpush.bf16.msra.mxu0 0
    %3461 = vmatpush.bf16.msra.mxu0 %v3206
    %3462 = vmatmul.bf16.gmra.mxu0 %v3309
    %v3463 = vpop.f32.mrf.mxu0
    %v3464 = vadd.f32 %v3451, %v3463
    %v3465 = vpop.f32.mrf.mxu0
    %3466 = vdwg.mxu0
    %3467 = vmatpush.bf16.msra.mxu0 %v3139
    %3468 = vmatpush.bf16.msra.mxu0 %v3135
    %3469 = vmatpush.bf16.msra.mxu0 %v3131
    %3470 = vmatpush.bf16.msra.mxu0 %v3127
    %3471 = vmatpush.bf16.msra.mxu0 %v3123
    %3472 = vmatpush.bf16.msra.mxu0 %v3119
    %3473 = vmatpush.bf16.msra.mxu0 %v3115
    %3474 = vmatpush.bf16.msra.mxu0 %v3111
    %3475 = vmatmul.bf16.gmra.mxu0 %v2694
    %v3476 = vpop.f32.mrf.mxu0
    %v3477 = vadd.f32 %v2803, %v3476
    %v3478 = vpop.f32.mrf.mxu0
    %3479 = vdwg.mxu0
    %3480 = vmatpush.bf16.msra.mxu0 %v3171
    %3481 = vmatpush.bf16.msra.mxu0 %v3167
    %3482 = vmatpush.bf16.msra.mxu0 %v3163
    %3483 = vmatpush.bf16.msra.mxu0 %v3159
    %3484 = vmatpush.bf16.msra.mxu0 %v3155
    %3485 = vmatpush.bf16.msra.mxu0 %v3151
    %3486 = vmatpush.bf16.msra.mxu0 %v3147
    %3487 = vmatpush.bf16.msra.mxu0 %v3143
    %3488 = vmatmul.bf16.gmra.mxu0 %v2695
    %v3489 = vpop.f32.mrf.mxu0
    %v3490 = vadd.f32 %v3477, %v3489
    %v3491 = vpop.f32.mrf.mxu0
    %3492 = vdwg.mxu0
    %3493 = vmatpush.bf16.msra.mxu0 %v3203
    %3494 = vmatpush.bf16.msra.mxu0 %v3199
    %3495 = vmatpush.bf16.msra.mxu0 %v3195
    %3496 = vmatpush.bf16.msra.mxu0 %v3191
    %3497 = vmatpush.bf16.msra.mxu0 %v3187
    %3498 = vmatpush.bf16.msra.mxu0 %v3183
    %3499 = vmatpush.bf16.msra.mxu0 %v3179
    %3500 = vmatpush.bf16.msra.mxu0 %v3175
    %3501 = vmatmul.bf16.gmra.mxu0 %v2696
    %v3502 = vpop.f32.mrf.mxu0
    %v3503 = vadd.f32 %v3490, %v3502
    %v3504 = vpop.f32.mrf.mxu0
    %3505 = vdwg.mxu0
    %3506 = vmatpush.bf16.msra.mxu0 0
    %3507 = vmatpush.bf16.msra.mxu0 0
    %3508 = vmatpush.bf16.msra.mxu0 0
    %3509 = vmatpush.bf16.msra.mxu0 0
    %3510 = vmatpush.bf16.msra.mxu0 0
    %3511 = vmatpush.bf16.msra.mxu0 0
    %3512 = vmatpush.bf16.msra.mxu0 0
    %3513 = vmatpush.bf16.msra.mxu0 %v3207
    %3514 = vmatmul.bf16.gmra.mxu0 %v3309
    %v3515 = vpop.f32.mrf.mxu0
    %v3516 = vadd.f32 %v3503, %v3515
    %v3517 = vpop.f32.mrf.mxu0
    %3518 = vdwg.mxu0
    %v3519 = vmax.f32 %v3360, 0.0
    %v3520 = vmax.f32 %v3412, 0.0
    %v3521 = vmax.f32 %v3464, 0.0
    %v3522 = vmax.f32 %v3516, 0.0
    %v3523 = vpack.c.bf16 %v3519, %v3519
    %v3524 = vpack.c.bf16 %v3520, %v3520
    %v3525 = vpack.c.bf16 %v3521, %v3521
    %v3526 = vpack.c.bf16 %v3522, %v3522
    %v3527 = vld [vmem:[%s11] sm:$0xf]
    %v3528 = vld [vmem:[%s11 + $0x4] sm:$0xf]
    %v3529 = vld [vmem:[%s11 + $0x8] sm:$0xf]
    %v3530 = vld [vmem:[%s11 + $0xc] sm:$0xf]
    %v3531 = vld [vmem:[%s11 + $0x10] sm:$0xf]
    %v3532 = vld [vmem:[%s11 + $0x14] sm:$0xf]
    %v3533 = vld [vmem:[%s11 + $0x18] sm:$0xf]
    %v3534 = vld [vmem:[%s11 + $0x1c] sm:$0xf]
    %v3535 = vld [vmem:[%s11 + $0x20] sm:$0xf]
    %v3536 = vld [vmem:[%s11 + $0x24] sm:$0xf]
    %v3537 = vld [vmem:[%s11 + $0x28] sm:$0xf]
    %v3538 = vld [vmem:[%s11 + $0x2c] sm:$0xf]
    %v3539 = vld [vmem:[%s11 + $0x30] sm:$0xf]
    %v3540 = vld [vmem:[%s11 + $0x34] sm:$0xf]
    %v3541 = vld [vmem:[%s11 + $0x38] sm:$0xf]
    %v3542 = vld [vmem:[%s11 + $0x3c] sm:$0xf]
    %v3543 = vld [vmem:[%s11 + $0x40] sm:$0xf]
    %v3544 = vld [vmem:[%s11 + $0x44] sm:$0xf]
    %v3545 = vld [vmem:[%s11 + $0x48] sm:$0xf]
    %v3546 = vld [vmem:[%s11 + $0x4c] sm:$0xf]
    %v3547 = vld [vmem:[%s11 + $0x50] sm:$0xf]
    %v3548 = vld [vmem:[%s11 + $0x54] sm:$0xf]
    %v3549 = vld [vmem:[%s11 + $0x58] sm:$0xf]
    %v3550 = vld [vmem:[%s11 + $0x5c] sm:$0xf]
    %v3551 = vld [vmem:[%s11 + $0x60] sm:$0xf]
    %v3552 = vld [vmem:[%s11 + $0x64] sm:$0xf]
    %v3553 = vld [vmem:[%s11 + $0x68] sm:$0xf]
    %v3554 = vld [vmem:[%s11 + $0x6c] sm:$0xf]
    %v3555 = vld [vmem:[%s11 + $0x70] sm:$0xf]
    %v3556 = vld [vmem:[%s11 + $0x74] sm:$0xf]
    %v3557 = vld [vmem:[%s11 + $0x78] sm:$0xf]
    %v3558 = vld [vmem:[%s11 + $0x7c] sm:$0xf]
    %v3559 = vld [vmem:[%s11 + $0x80] sm:$0xf]
    %v3560 = vld [vmem:[%s11 + $0x84] sm:$0xf]
    %v3561 = vld [vmem:[%s11 + $0x88] sm:$0xf]
    %v3562 = vld [vmem:[%s11 + $0x8c] sm:$0xf]
    %v3563 = vld [vmem:[%s11 + $0x90] sm:$0xf]
    %v3564 = vld [vmem:[%s11 + $0x94] sm:$0xf]
    %v3565 = vld [vmem:[%s11 + $0x98] sm:$0xf]
    %v3566 = vld [vmem:[%s11 + $0x9c] sm:$0xf]
    %v3567 = vld [vmem:[%s11 + $0xa0] sm:$0xf]
    %v3568 = vld [vmem:[%s11 + $0xa4] sm:$0xf]
    %v3569 = vld [vmem:[%s11 + $0xa8] sm:$0xf]
    %v3570 = vld [vmem:[%s11 + $0xac] sm:$0xf]
    %v3571 = vld [vmem:[%s11 + $0xb0] sm:$0xf]
    %v3572 = vld [vmem:[%s11 + $0xb4] sm:$0xf]
    %v3573 = vld [vmem:[%s11 + $0xb8] sm:$0xf]
    %v3574 = vld [vmem:[%s11 + $0xbc] sm:$0xf]
    %v3575 = vld [vmem:[%s11 + $0xc0] sm:$0xf]
    %v3576 = vld [vmem:[%s11 + $0xc4] sm:$0xf]
    %v3577 = vld [vmem:[%s12] sm:$0x1]
    %v3579 = vperm.slane %v3577, 0
    %v3631 = vunpack.c.l.b16 %v3527
    %v3632 = vunpack.c.l.b16 %v3528
    %v3633 = vunpack.c.l.b16 %v3529
    %v3634 = vunpack.c.l.b16 %v3530
    %v3635 = vunpack.c.l.b16 %v3531
    %v3636 = vunpack.c.l.b16 %v3532
    %v3637 = vunpack.c.l.b16 %v3533
    %v3638 = vunpack.c.l.b16 %v3534
    %v3639 = vunpack.c.l.b16 %v3535
    %v3640 = vunpack.c.l.b16 %v3536
    %v3641 = vunpack.c.l.b16 %v3537
    %v3642 = vunpack.c.l.b16 %v3538
    %v3643 = vunpack.c.l.b16 %v3539
    %v3644 = vunpack.c.l.b16 %v3540
    %v3645 = vunpack.c.l.b16 %v3541
    %v3646 = vunpack.c.l.b16 %v3542
    %v3647 = vunpack.c.l.b16 %v3543
    %v3648 = vunpack.c.l.b16 %v3544
    %v3649 = vunpack.c.l.b16 %v3545
    %v3650 = vunpack.c.l.b16 %v3546
    %v3651 = vunpack.c.l.b16 %v3547
    %v3652 = vunpack.c.l.b16 %v3548
    %v3653 = vunpack.c.l.b16 %v3549
    %v3654 = vunpack.c.l.b16 %v3550
    %v3655 = vunpack.c.l.b16 %v3551
    %v3656 = vunpack.c.l.b16 %v3552
    %v3657 = vunpack.c.l.b16 %v3553
    %v3658 = vunpack.c.l.b16 %v3554
    %v3659 = vunpack.c.l.b16 %v3555
    %v3660 = vunpack.c.l.b16 %v3556
    %v3661 = vunpack.c.l.b16 %v3557
    %v3662 = vunpack.c.l.b16 %v3558
    %v3663 = vunpack.c.l.b16 %v3559
    %v3664 = vunpack.c.l.b16 %v3560
    %v3665 = vunpack.c.l.b16 %v3561
    %v3666 = vunpack.c.l.b16 %v3562
    %v3667 = vunpack.c.l.b16 %v3563
    %v3668 = vunpack.c.l.b16 %v3564
    %v3669 = vunpack.c.l.b16 %v3565
    %v3670 = vunpack.c.l.b16 %v3566
    %v3671 = vunpack.c.l.b16 %v3567
    %v3672 = vunpack.c.l.b16 %v3568
    %v3673 = vunpack.c.l.b16 %v3569
    %v3674 = vunpack.c.l.b16 %v3570
    %v3675 = vunpack.c.l.b16 %v3571
    %v3676 = vunpack.c.l.b16 %v3572
    %v3677 = vunpack.c.l.b16 %v3573
    %v3678 = vunpack.c.l.b16 %v3574
    %v3679 = vunpack.c.l.b16 %v3575
    %v3680 = vunpack.c.l.b16 %v3576
    %v3681 = vpack.c.b16 %v3632, %v3631
    %v3682 = vpack.c.b16 %v3634, %v3633
    %v3683 = vpack.c.b16 %v3636, %v3635
    %v3684 = vpack.c.b16 %v3638, %v3637
    %v3685 = vpack.c.b16 %v3640, %v3639
    %v3686 = vpack.c.b16 %v3642, %v3641
    %v3687 = vpack.c.b16 %v3644, %v3643
    %v3688 = vpack.c.b16 %v3646, %v3645
    %v3689 = vpack.c.b16 %v3648, %v3647
    %v3690 = vpack.c.b16 %v3650, %v3649
    %v3691 = vpack.c.b16 %v3652, %v3651
    %v3692 = vpack.c.b16 %v3654, %v3653
    %v3693 = vpack.c.b16 %v3656, %v3655
    %v3694 = vpack.c.b16 %v3658, %v3657
    %v3695 = vpack.c.b16 %v3660, %v3659
    %v3696 = vpack.c.b16 %v3662, %v3661
    %v3697 = vpack.c.b16 %v3664, %v3663
    %v3698 = vpack.c.b16 %v3666, %v3665
    %v3699 = vpack.c.b16 %v3668, %v3667
    %v3700 = vpack.c.b16 %v3670, %v3669
    %v3701 = vpack.c.b16 %v3672, %v3671
    %v3702 = vpack.c.b16 %v3674, %v3673
    %v3703 = vpack.c.b16 %v3676, %v3675
    %v3704 = vpack.c.b16 %v3678, %v3677
    %v3705 = vpack.c.b16 %v3680, %v3679
    %v3732 = vsel %vm820, %v3526, 0
    %3734 = vmatpush.bf16.msra.mxu0 %v3688
    %3735 = vmatpush.bf16.msra.mxu0 %v3687
    %3736 = vmatpush.bf16.msra.mxu0 %v3686
    %3737 = vmatpush.bf16.msra.mxu0 %v3685
    %3738 = vmatpush.bf16.msra.mxu0 %v3684
    %3739 = vmatpush.bf16.msra.mxu0 %v3683
    %3740 = vmatpush.bf16.msra.mxu0 %v3682
    %3741 = vmatpush.bf16.msra.mxu0 %v3681
    %3742 = vmatmul.bf16.gmra.mxu0 %v3523
    %v3743 = vpop.f32.mrf.mxu0
    %v3744 = vadd.f32 %v3579, %v3743
    %v3745 = vpop.f32.mrf.mxu0
    %3746 = vdwg.mxu0
    %3747 = vmatpush.bf16.msra.mxu0 %v3696
    %3748 = vmatpush.bf16.msra.mxu0 %v3695
    %3749 = vmatpush.bf16.msra.mxu0 %v3694
    %3750 = vmatpush.bf16.msra.mxu0 %v3693
    %3751 = vmatpush.bf16.msra.mxu0 %v3692
    %3752 = vmatpush.bf16.msra.mxu0 %v3691
    %3753 = vmatpush.bf16.msra.mxu0 %v3690
    %3754 = vmatpush.bf16.msra.mxu0 %v3689
    %3755 = vmatmul.bf16.gmra.mxu0 %v3524
    %v3756 = vpop.f32.mrf.mxu0
    %v3757 = vadd.f32 %v3744, %v3756
    %v3758 = vpop.f32.mrf.mxu0
    %3759 = vdwg.mxu0
    %3760 = vmatpush.bf16.msra.mxu0 %v3704
    %3761 = vmatpush.bf16.msra.mxu0 %v3703
    %3762 = vmatpush.bf16.msra.mxu0 %v3702
    %3763 = vmatpush.bf16.msra.mxu0 %v3701
    %3764 = vmatpush.bf16.msra.mxu0 %v3700
    %3765 = vmatpush.bf16.msra.mxu0 %v3699
    %3766 = vmatpush.bf16.msra.mxu0 %v3698
    %3767 = vmatpush.bf16.msra.mxu0 %v3697
    %3768 = vmatmul.bf16.gmra.mxu0 %v3525
    %v3769 = vpop.f32.mrf.mxu0
    %v3770 = vadd.f32 %v3757, %v3769
    %v3771 = vpop.f32.mrf.mxu0
    %3772 = vdwg.mxu0
    %3773 = vmatpush.bf16.msra.mxu0 0
    %3774 = vmatpush.bf16.msra.mxu0 0
    %3775 = vmatpush.bf16.msra.mxu0 0
    %3776 = vmatpush.bf16.msra.mxu0 0
    %3777 = vmatpush.bf16.msra.mxu0 0
    %3778 = vmatpush.bf16.msra.mxu0 0
    %3779 = vmatpush.bf16.msra.mxu0 0
    %3780 = vmatpush.bf16.msra.mxu0 %v3705
    %3781 = vmatmul.bf16.gmra.mxu0 %v3732
    %v3782 = vpop.f32.mrf.mxu0
    %v3783 = vadd.f32 %v3770, %v3782
    %v3784 = vpop.f32.mrf.mxu0
    %3785 = vdwg.mxu0
    %v3786 = vsub.f32 0.0, %v3783
    %v3787 = vmin.f32 %v3786, 80.0
    %v3788 = vmul.f32 %v3787, 1.442695
    %v3789 = vpow.pop %v3788
    %v3790 = vadd.f32 %v3789, 1.0
    %v3791 = vrcp.pop %v3790
    %vm3792 = vcmask 9216
    %3793 = vst.msk [vmem:[#allocation10] sm:$0x3] %vm3792, %v3791
    // Predicated region
    $region70: #{qnet_forward.1} parent=1 // pred_check
      _
    $region71: #{qnet_forward.1} parent=1 // pred_check_branch
      %3795 = sbr.rel (0) target = $region73
    $region72: #{qnet_forward.1} parent=1 // pred_region
      %3797 = vsyncadd [#allocation4], 0
      %s3799 = sshll.u32 [#allocation10], 4
      %s3800 = int_to_ptr.vmem [resolvable:$true] %s3799
      %s3801 = sshll.u32 %s13, 4
      %s3802 = int_to_ptr.hbm [resolvable:$true] %s3801
      %3804 = dma.vmem_to_hbm [thread:$0]  %s3800, 32, %s3802, [#allocation4]
    $region73: #{qnet_forward.1} parent=1 // pred_fallthru
      _
    // Predicated region
    $region74: #{qnet_forward.1} parent=1 // pred_check
      _
    $region75: #{qnet_forward.1} parent=1 // pred_check_branch
      %3806 = sbr.rel (0) target = $region77
    $region76: #{qnet_forward.1} parent=1 // pred_region
      %3808 = dma.done [#allocation4], 32
    $region77: #{qnet_forward.1} parent=1 // pred_fallthru
      _
    %3809 = vsyncpa [#allocation3], 1
    %3810 = vsyncpa [#allocation6], 1
    %3811 = vsyncpa [#allocation9], 1
    %3812 = vsyncpa [#allocation4], 1

</llo_original>
